<compile_context>
chip_gen: v7x
topology: tpu7x:2x2x1
jax: 0.10.0
libtpu: 0.0.40
codegen_flags: <defaults>
</compile_context>

<pallas_src>
import functools

import jax
import jax.numpy as jnp
from jax.experimental import pallas as pl
from jax.experimental.pallas import tpu as pltpu

# Layer sizes for encoder / decoder.
ENC_DIMS = [784, 128, 64, 12, 3]
DEC_DIMS = [3, 12, 64, 128, 784]
ENC_PAD = 128           # lane-dense padding for the 3-wide bottleneck output
IN_DIM = ENC_DIMS[0]
OUT_DIM = DEC_DIMS[-1]


def _autoencoder_kernel(x_ref,
                        # encoder params (w: bf16, b: f32)
                        ew1, eb1, ew2, eb2, ew3, eb3, ew4, eb4,
                        # decoder params
                        dw1, db1, dw2, db2, dw3, db3, dw4, db4,
                        # outputs (both bf16)
                        enc_ref, dec_ref):
    def linear(h_bf16, w_ref, b_ref):
        # bf16 operands into the MXU, f32 accumulation, f32 bias add.
        return jnp.dot(h_bf16, w_ref[...],
                       preferred_element_type=jnp.float32) + b_ref[...]

    def relu_bf16(y_f32):
        # ReLU in f32, then carry the activation in bf16 into the next matmul
        # (halves VMEM/vreg traffic; the MXU consumes bf16 operands anyway).
        return jnp.maximum(y_f32, 0.0).astype(jnp.bfloat16)

    x = x_ref[...].astype(jnp.bfloat16)              # (TB, 784)

    # ----- encoder -----
    h = relu_bf16(linear(x, ew1, eb1))               # (TB, 128)
    h = relu_bf16(linear(h, ew2, eb2))               # (TB, 64)
    h = relu_bf16(linear(h, ew3, eb3))               # (TB, 12)
    # Bottleneck Linear(12, 3), no activation.  ew4 (12,3) / eb4 (1,3) are zero-padded to
    # 128 output lanes on the host, so `encoded` is lane-dense with columns 3.. exactly zero.
    encoded = linear(h, ew4, eb4)                    # (TB, 128) f32
    enc_ref[...] = encoded.astype(enc_ref.dtype)     # bf16 store

    # ----- decoder -----
    # dw1 has zero rows 3.., so the padded columns of `encoded` contribute exactly 0.
    h = encoded.astype(jnp.bfloat16)
    h = relu_bf16(linear(h, dw1, db1))               # (TB, 12)
    h = relu_bf16(linear(h, dw2, db2))               # (TB, 64)
    h = relu_bf16(linear(h, dw3, db3))               # (TB, 128)
    z = linear(h, dw4, db4)                          # (TB, 784) f32

    # Numerically stable sigmoid; the reciprocal goes to the EUP slot.
    # TODO(synk): on v6e/v7x the tail could run in bf16 for extra EUP throughput (kept f32
    # for v5e, whose VPU/EUP have no bf16 path).
    ez = jnp.exp(-jnp.abs(z))
    num = jnp.where(z >= 0, 1.0, ez)
    decoded = num * pl.reciprocal(1.0 + ez, approx=True)
    dec_ref[...] = decoded.astype(dec_ref.dtype)     # bf16 store


def init_params(key):
    """Deterministic PyTorch-style init: U(-1/sqrt(fan_in), 1/sqrt(fan_in)).
    Weights stored as (in_features, out_features); biases as (1, out_features)."""
    params = []
    for dims in (ENC_DIMS, DEC_DIMS):
        layer_params = []
        for fan_in, fan_out in zip(dims[:-1], dims[1:]):
            key, kw, kb = jax.random.split(key, 3)
            bound = 1.0 / jnp.sqrt(jnp.float32(fan_in))
            w = jax.random.uniform(kw, (fan_in, fan_out), jnp.float32, -bound, bound)
            b = jax.random.uniform(kb, (1, fan_out), jnp.float32, -bound, bound)
            layer_params.append((w, b))
        params.append(layer_params)
    enc_params, dec_params = params
    return enc_params, dec_params


@functools.partial(jax.jit, static_argnames=("block_b",))
def autoencoder_forward(x, enc_params, dec_params, *, block_b=512):
    B, D = x.shape
    assert D == IN_DIM, "expected 784 input features (28x28 flattened)"

    # Effective batch tile.  No host-side padding: grid = cdiv(B, block_b); Pallas pads the
    # ragged last input block and masks its out-of-bounds output writes (rows are
    # independent, so garbage pad rows never contaminate valid rows).
    if block_b >= B:
        block_b = B                              # single block == full dim, always legal
    else:
        block_b = max(8, (block_b // 8) * 8)     # keep sublane divisibility
    num_blocks = pl.cdiv(B, block_b)

    (ew1, eb1), (ew2, eb2), (ew3, eb3), (ew4, eb4) = enc_params
    (dw1, db1), (dw2, db2), (dw3, db3), (dw4, db4) = dec_params

    # Lane-dense bottleneck: pad the (12,3)/(1,3) weight & bias to 128 output lanes, and the
    # first decoder weight (3,12) with zero rows, so the math is exactly unchanged.
    ew4p = jnp.pad(ew4, ((0, 0), (0, ENC_PAD - ew4.shape[1])))
    eb4p = jnp.pad(eb4, ((0, 0), (0, ENC_PAD - eb4.shape[1])))
    dw1p = jnp.pad(dw1, ((0, ENC_PAD - dw1.shape[0]), (0, 0)))

    weights = [ew1, ew2, ew3, ew4p, dw1p, dw2, dw3, dw4]
    biases = [eb1, eb2, eb3, eb4p, db1, db2, db3, db4]
    flat_params = []
    for w, b in zip(weights, biases):
        flat_params.append(w.astype(jnp.bfloat16))   # bf16 weights for the MXU
        flat_params.append(b.astype(jnp.float32))    # f32 biases for exact add

    # BlockSpecs: tile over the batch axis only; parameters are full-size blocks whose block
    # index never changes, so they stay VMEM-resident across grid steps.
    x_spec = pl.BlockSpec((block_b, D), lambda i: (i, 0))
    param_specs = [pl.BlockSpec(p.shape, lambda i: (0, 0)) for p in flat_params]
    enc_spec = pl.BlockSpec((block_b, ENC_PAD), lambda i: (i, 0))
    dec_spec = pl.BlockSpec((block_b, OUT_DIM), lambda i: (i, 0))

    # bf16 outputs: decoded is the single largest HBM stream; bf16 halves it.
    out_shapes = (
        jax.ShapeDtypeStruct((B, ENC_PAD), jnp.bfloat16),    # encoded (padded lanes)
        jax.ShapeDtypeStruct((B, OUT_DIM), jnp.bfloat16),    # decoded
    )

    grid_spec = pltpu.PrefetchScalarGridSpec(
        num_scalar_prefetch=0,
        grid=(num_blocks,),
        in_specs=[x_spec] + param_specs,
        out_specs=[enc_spec, dec_spec],
    )

    # Advisory cost estimate for XLA's scheduler.
    layer_dims = list(zip(ENC_DIMS[:-1], ENC_DIMS[1:])) + list(zip(DEC_DIMS[:-1], DEC_DIMS[1:]))
    flops = 2 * B * sum(di * do for di, do in layer_dims)
    transcendentals = B * OUT_DIM
    param_bytes = sum(int(p.size) * p.dtype.itemsize for p in flat_params)
    bytes_accessed = (int(x.size) * x.dtype.itemsize
                      + B * ENC_PAD * 2
                      + B * OUT_DIM * 2
                      + param_bytes)
    cost = pl.CostEstimate(flops=flops, transcendentals=transcendentals,
                           bytes_accessed=bytes_accessed)

    encoded_pad, decoded = pl.pallas_call(
        _autoencoder_kernel,
        out_shape=out_shapes,
        grid_spec=grid_spec,
        cost_estimate=cost,
        compiler_params=pltpu.CompilerParams(
            dimension_semantics=("parallel",)),
    )(x, *flat_params)

    encoded = encoded_pad[:, :ENC_DIMS[-1]]   # tiny (B,3) slice; decoded needs no slice/copy
    return encoded, decoded


def reference_forward(x, enc_params, dec_params):
    """Pure-JAX f32 reference matching PyTorch semantics."""
    h = x
    for i, (w, b) in enumerate(enc_params):
        h = h @ w + b
        if i < len(enc_params) - 1:
            h = jnp.maximum(h, 0.0)
    encoded = h
    h = encoded
    for i, (w, b) in enumerate(dec_params):
        h = h @ w + b
        if i < len(dec_params) - 1:
            h = jnp.maximum(h, 0.0)
    decoded = jax.nn.sigmoid(h)
    return encoded, decoded


if __name__ == "__main__":
    key = jax.random.PRNGKey(0)
    key, kx, kp = jax.random.split(key, 3)

    # B is deliberately NOT a multiple of block_b: exercises the ragged last block
    # (no host padding, no output-slice copy) and gives a 2-step grid so both v7x
    # TensorCores get work.
    B = 200
    block_b = 128
    x_f32 = jax.random.uniform(kx, (B, IN_DIM), jnp.float32)   # MNIST-like input in [0, 1)
    x = x_f32.astype(jnp.bfloat16)   # caller-provided bf16 input: halves x HBM traffic
    enc_params, dec_params = init_params(kp)

    encoded, decoded = autoencoder_forward(x, enc_params, dec_params, block_b=block_b)
    jax.block_until_ready((encoded, decoded))

    # Correctness check against the f32 pure-JAX reference on the same bf16-quantized input
    # (tolerance loosened for bf16 MXU operands, bf16 outputs, and the approx reciprocal).
    enc_ref, dec_ref = reference_forward(x.astype(jnp.float32), enc_params, dec_params)
    assert encoded.shape == (B, ENC_DIMS[-1]) and decoded.shape == (B, OUT_DIM)
    assert encoded.dtype == jnp.bfloat16 and decoded.dtype == jnp.bfloat16
    assert jnp.allclose(encoded.astype(jnp.float32), enc_ref, atol=2e-2, rtol=2e-2)
    assert jnp.allclose(decoded.astype(jnp.float32), dec_ref, atol=2e-2, rtol=2e-2)

    print("KERNEL_OK")
</pallas_src>

<mosaic_0001>
module attributes {stable_mosaic.version = 11 : i64} {
  func.func @_autoencoder_kernel(%arg0: i32, %arg1: memref<128x784xbf16, #tpu.memory_space<vmem>>, %arg2: memref<784x128xbf16, #tpu.memory_space<vmem>>, %arg3: memref<1x128xf32, #tpu.memory_space<vmem>>, %arg4: memref<128x64xbf16, #tpu.memory_space<vmem>>, %arg5: memref<1x64xf32, #tpu.memory_space<vmem>>, %arg6: memref<64x12xbf16, #tpu.memory_space<vmem>>, %arg7: memref<1x12xf32, #tpu.memory_space<vmem>>, %arg8: memref<12x128xbf16, #tpu.memory_space<vmem>>, %arg9: memref<1x128xf32, #tpu.memory_space<vmem>>, %arg10: memref<128x12xbf16, #tpu.memory_space<vmem>>, %arg11: memref<1x12xf32, #tpu.memory_space<vmem>>, %arg12: memref<12x64xbf16, #tpu.memory_space<vmem>>, %arg13: memref<1x64xf32, #tpu.memory_space<vmem>>, %arg14: memref<64x128xbf16, #tpu.memory_space<vmem>>, %arg15: memref<1x128xf32, #tpu.memory_space<vmem>>, %arg16: memref<128x784xbf16, #tpu.memory_space<vmem>>, %arg17: memref<1x784xf32, #tpu.memory_space<vmem>>, %arg18: memref<128x128xbf16, #tpu.memory_space<vmem>>, %arg19: memref<128x784xbf16, #tpu.memory_space<vmem>>) attributes {dimension_semantics = [#tpu.dimension_semantics<parallel>], iteration_bounds = array<i64: 2>, scalar_prefetch = 0 : i64, scratch_operands = 0 : i64, tpu.core_type = #tpu.core_type<tc>, window_params = [{transform_indices = @transform_0, window_bounds = array<i64: 128, 784>}, {pipeline_mode = #tpu.pipeline_mode<synchronous>, transform_indices = @transform_1, window_bounds = array<i64: 784, 128>}, {pipeline_mode = #tpu.pipeline_mode<synchronous>, transform_indices = @transform_2, window_bounds = array<i64: 1, 128>}, {pipeline_mode = #tpu.pipeline_mode<synchronous>, transform_indices = @transform_3, window_bounds = array<i64: 128, 64>}, {pipeline_mode = #tpu.pipeline_mode<synchronous>, transform_indices = @transform_4, window_bounds = array<i64: 1, 64>}, {pipeline_mode = #tpu.pipeline_mode<synchronous>, transform_indices = @transform_5, window_bounds = array<i64: 64, 12>}, {pipeline_mode = #tpu.pipeline_mode<synchronous>, transform_indices = @transform_6, window_bounds = array<i64: 1, 12>}, {pipeline_mode = #tpu.pipeline_mode<synchronous>, transform_indices = @transform_7, window_bounds = array<i64: 12, 128>}, {pipeline_mode = #tpu.pipeline_mode<synchronous>, transform_indices = @transform_8, window_bounds = array<i64: 1, 128>}, {pipeline_mode = #tpu.pipeline_mode<synchronous>, transform_indices = @transform_9, window_bounds = array<i64: 128, 12>}, {pipeline_mode = #tpu.pipeline_mode<synchronous>, transform_indices = @transform_10, window_bounds = array<i64: 1, 12>}, {pipeline_mode = #tpu.pipeline_mode<synchronous>, transform_indices = @transform_11, window_bounds = array<i64: 12, 64>}, {pipeline_mode = #tpu.pipeline_mode<synchronous>, transform_indices = @transform_12, window_bounds = array<i64: 1, 64>}, {pipeline_mode = #tpu.pipeline_mode<synchronous>, transform_indices = @transform_13, window_bounds = array<i64: 64, 128>}, {pipeline_mode = #tpu.pipeline_mode<synchronous>, transform_indices = @transform_14, window_bounds = array<i64: 1, 128>}, {pipeline_mode = #tpu.pipeline_mode<synchronous>, transform_indices = @transform_15, window_bounds = array<i64: 128, 784>}, {pipeline_mode = #tpu.pipeline_mode<synchronous>, transform_indices = @transform_16, window_bounds = array<i64: 1, 784>}, {transform_indices = @transform_17, window_bounds = array<i64: 128, 128>}, {transform_indices = @transform_18, window_bounds = array<i64: 128, 784>}]} {
    %c0 = arith.constant 0 : index
    %c0_0 = arith.constant 0 : index
    %0 = vector.load %arg1[%c0, %c0_0] : memref<128x784xbf16, #tpu.memory_space<vmem>>, vector<128x784xbf16>
    %c0_1 = arith.constant 0 : index
    %c0_2 = arith.constant 0 : index
    %1 = vector.load %arg2[%c0_1, %c0_2] : memref<784x128xbf16, #tpu.memory_space<vmem>>, vector<784x128xbf16>
    %cst = arith.constant dense<0.000000e+00> : vector<128x128xf32>
    %2 = tpu.matmul %0, %1, %cst {dimension_numbers = #tpu.dot_dimension_numbers<[1], [0], [0], [1], [0, 0, 1, 1], [], []>} : vector<128x784xbf16>, vector<784x128xbf16>, vector<128x128xf32> -> vector<128x128xf32>
    %c0_3 = arith.constant 0 : index
    %c0_4 = arith.constant 0 : index
    %3 = vector.load %arg3[%c0_3, %c0_4] : memref<1x128xf32, #tpu.memory_space<vmem>>, vector<1x128xf32>
    %4 = vector.broadcast %3 : vector<1x128xf32> to vector<128x128xf32>
    %5 = arith.addf %2, %4 : vector<128x128xf32>
    %cst_5 = arith.constant 0.000000e+00 : f32
    %6 = vector.broadcast %cst_5 : f32 to vector<128x128xf32>
    %7 = arith.maximumf %5, %6 : vector<128x128xf32>
    %8 = arith.truncf %7 : vector<128x128xf32> to vector<128x128xbf16>
    %c0_6 = arith.constant 0 : index
    %c0_7 = arith.constant 0 : index
    %9 = vector.load %arg4[%c0_6, %c0_7] : memref<128x64xbf16, #tpu.memory_space<vmem>>, vector<128x64xbf16>
    %cst_8 = arith.constant dense<0.000000e+00> : vector<128x64xf32>
    %10 = tpu.matmul %8, %9, %cst_8 {dimension_numbers = #tpu.dot_dimension_numbers<[1], [0], [0], [1], [0, 0, 1, 1], [], []>} : vector<128x128xbf16>, vector<128x64xbf16>, vector<128x64xf32> -> vector<128x64xf32>
    %c0_9 = arith.constant 0 : index
    %c0_10 = arith.constant 0 : index
    %11 = vector.load %arg5[%c0_9, %c0_10] : memref<1x64xf32, #tpu.memory_space<vmem>>, vector<1x64xf32>
    %12 = vector.broadcast %11 : vector<1x64xf32> to vector<128x64xf32>
    %13 = arith.addf %10, %12 : vector<128x64xf32>
    %cst_11 = arith.constant 0.000000e+00 : f32
    %14 = vector.broadcast %cst_11 : f32 to vector<128x64xf32>
    %15 = arith.maximumf %13, %14 : vector<128x64xf32>
    %16 = arith.truncf %15 : vector<128x64xf32> to vector<128x64xbf16>
    %c0_12 = arith.constant 0 : index
    %c0_13 = arith.constant 0 : index
    %17 = vector.load %arg6[%c0_12, %c0_13] : memref<64x12xbf16, #tpu.memory_space<vmem>>, vector<64x12xbf16>
    %cst_14 = arith.constant dense<0.000000e+00> : vector<128x12xf32>
    %18 = tpu.matmul %16, %17, %cst_14 {dimension_numbers = #tpu.dot_dimension_numbers<[1], [0], [0], [1], [0, 0, 1, 1], [], []>} : vector<128x64xbf16>, vector<64x12xbf16>, vector<128x12xf32> -> vector<128x12xf32>
    %c0_15 = arith.constant 0 : index
    %c0_16 = arith.constant 0 : index
    %19 = vector.load %arg7[%c0_15, %c0_16] : memref<1x12xf32, #tpu.memory_space<vmem>>, vector<1x12xf32>
    %20 = vector.broadcast %19 : vector<1x12xf32> to vector<128x12xf32>
    %21 = arith.addf %18, %20 : vector<128x12xf32>
    %cst_17 = arith.constant 0.000000e+00 : f32
    %22 = vector.broadcast %cst_17 : f32 to vector<128x12xf32>
    %23 = arith.maximumf %21, %22 : vector<128x12xf32>
    %24 = arith.truncf %23 : vector<128x12xf32> to vector<128x12xbf16>
    %c0_18 = arith.constant 0 : index
    %c0_19 = arith.constant 0 : index
    %25 = vector.load %arg8[%c0_18, %c0_19] : memref<12x128xbf16, #tpu.memory_space<vmem>>, vector<12x128xbf16>
    %cst_20 = arith.constant dense<0.000000e+00> : vector<128x128xf32>
    %26 = tpu.matmul %24, %25, %cst_20 {dimension_numbers = #tpu.dot_dimension_numbers<[1], [0], [0], [1], [0, 0, 1, 1], [], []>} : vector<128x12xbf16>, vector<12x128xbf16>, vector<128x128xf32> -> vector<128x128xf32>
    %c0_21 = arith.constant 0 : index
    %c0_22 = arith.constant 0 : index
    %27 = vector.load %arg9[%c0_21, %c0_22] : memref<1x128xf32, #tpu.memory_space<vmem>>, vector<1x128xf32>
    %28 = vector.broadcast %27 : vector<1x128xf32> to vector<128x128xf32>
    %29 = arith.addf %26, %28 : vector<128x128xf32>
    %30 = arith.truncf %29 : vector<128x128xf32> to vector<128x128xbf16>
    %c0_23 = arith.constant 0 : index
    %c0_24 = arith.constant 0 : index
    %31 = vector.load %arg18[%c0_23, %c0_24] : memref<128x128xbf16, #tpu.memory_space<vmem>>, vector<128x128xbf16>
    tpu.vector_store %arg18[%c0_23, %c0_24], %30 {strides = array<i32>} : memref<128x128xbf16, #tpu.memory_space<vmem>>, vector<128x128xbf16>,
    %32 = arith.truncf %29 : vector<128x128xf32> to vector<128x128xbf16>
    %c0_25 = arith.constant 0 : index
    %c0_26 = arith.constant 0 : index
    %33 = vector.load %arg10[%c0_25, %c0_26] : memref<128x12xbf16, #tpu.memory_space<vmem>>, vector<128x12xbf16>
    %cst_27 = arith.constant dense<0.000000e+00> : vector<128x12xf32>
    %34 = tpu.matmul %32, %33, %cst_27 {dimension_numbers = #tpu.dot_dimension_numbers<[1], [0], [0], [1], [0, 0, 1, 1], [], []>} : vector<128x128xbf16>, vector<128x12xbf16>, vector<128x12xf32> -> vector<128x12xf32>
    %c0_28 = arith.constant 0 : index
    %c0_29 = arith.constant 0 : index
    %35 = vector.load %arg11[%c0_28, %c0_29] : memref<1x12xf32, #tpu.memory_space<vmem>>, vector<1x12xf32>
    %36 = vector.broadcast %35 : vector<1x12xf32> to vector<128x12xf32>
    %37 = arith.addf %34, %36 : vector<128x12xf32>
    %cst_30 = arith.constant 0.000000e+00 : f32
    %38 = vector.broadcast %cst_30 : f32 to vector<128x12xf32>
    %39 = arith.maximumf %37, %38 : vector<128x12xf32>
    %40 = arith.truncf %39 : vector<128x12xf32> to vector<128x12xbf16>
    %c0_31 = arith.constant 0 : index
    %c0_32 = arith.constant 0 : index
    %41 = vector.load %arg12[%c0_31, %c0_32] : memref<12x64xbf16, #tpu.memory_space<vmem>>, vector<12x64xbf16>
    %cst_33 = arith.constant dense<0.000000e+00> : vector<128x64xf32>
    %42 = tpu.matmul %40, %41, %cst_33 {dimension_numbers = #tpu.dot_dimension_numbers<[1], [0], [0], [1], [0, 0, 1, 1], [], []>} : vector<128x12xbf16>, vector<12x64xbf16>, vector<128x64xf32> -> vector<128x64xf32>
    %c0_34 = arith.constant 0 : index
    %c0_35 = arith.constant 0 : index
    %43 = vector.load %arg13[%c0_34, %c0_35] : memref<1x64xf32, #tpu.memory_space<vmem>>, vector<1x64xf32>
    %44 = vector.broadcast %43 : vector<1x64xf32> to vector<128x64xf32>
    %45 = arith.addf %42, %44 : vector<128x64xf32>
    %cst_36 = arith.constant 0.000000e+00 : f32
    %46 = vector.broadcast %cst_36 : f32 to vector<128x64xf32>
    %47 = arith.maximumf %45, %46 : vector<128x64xf32>
    %48 = arith.truncf %47 : vector<128x64xf32> to vector<128x64xbf16>
    %c0_37 = arith.constant 0 : index
    %c0_38 = arith.constant 0 : index
    %49 = vector.load %arg14[%c0_37, %c0_38] : memref<64x128xbf16, #tpu.memory_space<vmem>>, vector<64x128xbf16>
    %cst_39 = arith.constant dense<0.000000e+00> : vector<128x128xf32>
    %50 = tpu.matmul %48, %49, %cst_39 {dimension_numbers = #tpu.dot_dimension_numbers<[1], [0], [0], [1], [0, 0, 1, 1], [], []>} : vector<128x64xbf16>, vector<64x128xbf16>, vector<128x128xf32> -> vector<128x128xf32>
    %c0_40 = arith.constant 0 : index
    %c0_41 = arith.constant 0 : index
    %51 = vector.load %arg15[%c0_40, %c0_41] : memref<1x128xf32, #tpu.memory_space<vmem>>, vector<1x128xf32>
    %52 = vector.broadcast %51 : vector<1x128xf32> to vector<128x128xf32>
    %53 = arith.addf %50, %52 : vector<128x128xf32>
    %cst_42 = arith.constant 0.000000e+00 : f32
    %54 = vector.broadcast %cst_42 : f32 to vector<128x128xf32>
    %55 = arith.maximumf %53, %54 : vector<128x128xf32>
    %56 = arith.truncf %55 : vector<128x128xf32> to vector<128x128xbf16>
    %c0_43 = arith.constant 0 : index
    %c0_44 = arith.constant 0 : index
    %57 = vector.load %arg16[%c0_43, %c0_44] : memref<128x784xbf16, #tpu.memory_space<vmem>>, vector<128x784xbf16>
    %cst_45 = arith.constant dense<0.000000e+00> : vector<128x784xf32>
    %58 = tpu.matmul %56, %57, %cst_45 {dimension_numbers = #tpu.dot_dimension_numbers<[1], [0], [0], [1], [0, 0, 1, 1], [], []>} : vector<128x128xbf16>, vector<128x784xbf16>, vector<128x784xf32> -> vector<128x784xf32>
    %c0_46 = arith.constant 0 : index
    %c0_47 = arith.constant 0 : index
    %59 = vector.load %arg17[%c0_46, %c0_47] : memref<1x784xf32, #tpu.memory_space<vmem>>, vector<1x784xf32>
    %60 = vector.broadcast %59 : vector<1x784xf32> to vector<128x784xf32>
    %61 = arith.addf %58, %60 : vector<128x784xf32>
    %62 = math.absf %61 : vector<128x784xf32>
    %cst_48 = arith.constant 0.000000e+00 : f32
    %63 = vector.broadcast %cst_48 : f32 to vector<128x784xf32>
    %64 = arith.subf %63, %62 : vector<128x784xf32>
    %65 = math.exp %64 : vector<128x784xf32>
    %cst_49 = arith.constant 0.000000e+00 : f32
    %66 = vector.broadcast %cst_49 : f32 to vector<128x784xf32>
    %67 = arith.cmpf oge, %61, %66 : vector<128x784xf32>
    %cst_50 = arith.constant 1.000000e+00 : f32
    %68 = vector.broadcast %cst_50 : f32 to vector<128x784xf32>
    %69 = arith.select %67, %68, %65 : vector<128x784xi1>, vector<128x784xf32>
    %cst_51 = arith.constant 1.000000e+00 : f32
    %70 = vector.broadcast %cst_51 : f32 to vector<128x784xf32>
    %71 = arith.addf %70, %65 : vector<128x784xf32>
    %72 = tpu.reciprocal %71 {approx = true} : vector<128x784xf32> -> vector<128x784xf32>
    %73 = arith.mulf %69, %72 : vector<128x784xf32>
    %74 = arith.truncf %73 : vector<128x784xf32> to vector<128x784xbf16>
    %c0_52 = arith.constant 0 : index
    %c0_53 = arith.constant 0 : index
    %75 = vector.load %arg19[%c0_52, %c0_53] : memref<128x784xbf16, #tpu.memory_space<vmem>>, vector<128x784xbf16>
    tpu.vector_store %arg19[%c0_52, %c0_53], %74 {strides = array<i32>} : memref<128x784xbf16, #tpu.memory_space<vmem>>, vector<128x784xbf16>,
    return
  }
  func.func @transform_0(%arg0: i32) -> (i32, i32) {
    %c0_i32 = arith.constant 0 : i32
    %c0_i32_0 = arith.constant 0 : i32
    return %arg0, %c0_i32 : i32, i32
  }
  func.func @transform_1(%arg0: i32) -> (i32, i32) {
    %c0_i32 = arith.constant 0 : i32
    %c0_i32_0 = arith.constant 0 : i32
    %c0_i32_1 = arith.constant 0 : i32
    return %c0_i32, %c0_i32_0 : i32, i32
  }
  func.func @transform_2(%arg0: i32) -> (i32, i32) {
    %c0_i32 = arith.constant 0 : i32
    %c0_i32_0 = arith.constant 0 : i32
    %c0_i32_1 = arith.constant 0 : i32
    return %c0_i32, %c0_i32_0 : i32, i32
  }
  func.func @transform_3(%arg0: i32) -> (i32, i32) {
    %c0_i32 = arith.constant 0 : i32
    %c0_i32_0 = arith.constant 0 : i32
    %c0_i32_1 = arith.constant 0 : i32
    return %c0_i32, %c0_i32_0 : i32, i32
  }
  func.func @transform_4(%arg0: i32) -> (i32, i32) {
    %c0_i32 = arith.constant 0 : i32
    %c0_i32_0 = arith.constant 0 : i32
    %c0_i32_1 = arith.constant 0 : i32
    return %c0_i32, %c0_i32_0 : i32, i32
  }
  func.func @transform_5(%arg0: i32) -> (i32, i32) {
    %c0_i32 = arith.constant 0 : i32
    %c0_i32_0 = arith.constant 0 : i32
    %c0_i32_1 = arith.constant 0 : i32
    return %c0_i32, %c0_i32_0 : i32, i32
  }
  func.func @transform_6(%arg0: i32) -> (i32, i32) {
    %c0_i32 = arith.constant 0 : i32
    %c0_i32_0 = arith.constant 0 : i32
    %c0_i32_1 = arith.constant 0 : i32
    return %c0_i32, %c0_i32_0 : i32, i32
  }
  func.func @transform_7(%arg0: i32) -> (i32, i32) {
    %c0_i32 = arith.constant 0 : i32
    %c0_i32_0 = arith.constant 0 : i32
    %c0_i32_1 = arith.constant 0 : i32
    return %c0_i32, %c0_i32_0 : i32, i32
  }
  func.func @transform_8(%arg0: i32) -> (i32, i32) {
    %c0_i32 = arith.constant 0 : i32
    %c0_i32_0 = arith.constant 0 : i32
    %c0_i32_1 = arith.constant 0 : i32
    return %c0_i32, %c0_i32_0 : i32, i32
  }
  func.func @transform_9(%arg0: i32) -> (i32, i32) {
    %c0_i32 = arith.constant 0 : i32
    %c0_i32_0 = arith.constant 0 : i32
    %c0_i32_1 = arith.constant 0 : i32
    return %c0_i32, %c0_i32_0 : i32, i32
  }
  func.func @transform_10(%arg0: i32) -> (i32, i32) {
    %c0_i32 = arith.constant 0 : i32
    %c0_i32_0 = arith.constant 0 : i32
    %c0_i32_1 = arith.constant 0 : i32
    return %c0_i32, %c0_i32_0 : i32, i32
  }
  func.func @transform_11(%arg0: i32) -> (i32, i32) {
    %c0_i32 = arith.constant 0 : i32
    %c0_i32_0 = arith.constant 0 : i32
    %c0_i32_1 = arith.constant 0 : i32
    return %c0_i32, %c0_i32_0 : i32, i32
  }
  func.func @transform_12(%arg0: i32) -> (i32, i32) {
    %c0_i32 = arith.constant 0 : i32
    %c0_i32_0 = arith.constant 0 : i32
    %c0_i32_1 = arith.constant 0 : i32
    return %c0_i32, %c0_i32_0 : i32, i32
  }
  func.func @transform_13(%arg0: i32) -> (i32, i32) {
    %c0_i32 = arith.constant 0 : i32
    %c0_i32_0 = arith.constant 0 : i32
    %c0_i32_1 = arith.constant 0 : i32
    return %c0_i32, %c0_i32_0 : i32, i32
  }
  func.func @transform_14(%arg0: i32) -> (i32, i32) {
    %c0_i32 = arith.constant 0 : i32
    %c0_i32_0 = arith.constant 0 : i32
    %c0_i32_1 = arith.constant 0 : i32
    return %c0_i32, %c0_i32_0 : i32, i32
  }
  func.func @transform_15(%arg0: i32) -> (i32, i32) {
    %c0_i32 = arith.constant 0 : i32
    %c0_i32_0 = arith.constant 0 : i32
    %c0_i32_1 = arith.constant 0 : i32
    return %c0_i32, %c0_i32_0 : i32, i32
  }
  func.func @transform_16(%arg0: i32) -> (i32, i32) {
    %c0_i32 = arith.constant 0 : i32
    %c0_i32_0 = arith.constant 0 : i32
    %c0_i32_1 = arith.constant 0 : i32
    return %c0_i32, %c0_i32_0 : i32, i32
  }
  func.func @transform_17(%arg0: i32) -> (i32, i32) {
    %c0_i32 = arith.constant 0 : i32
    %c0_i32_0 = arith.constant 0 : i32
    return %arg0, %c0_i32 : i32, i32
  }
  func.func @transform_18(%arg0: i32) -> (i32, i32) {
    %c0_i32 = arith.constant 0 : i32
    %c0_i32_0 = arith.constant 0 : i32
    return %arg0, %c0_i32 : i32, i32
  }
}

</mosaic_0001>

<llo_original>
// kernel: autoencoder_forward.1
$region0: #{autoencoder_forward.1}
  #allocation0 [shape = 'u32[]', space=smem, size = 0x4, offset = 0x4, fixed_abs, tag = 'smem constant byte address 0x4 - core index']
  #allocation1 [shape = 'u32[144,128]{1,0:T(1,128)}', space=vmem, size = 0x12000, scoped, tag = 'internal scratch']
  %s0 = inlined_call_operand.vmem [shape: bf16[200,784], index: 0, kind: input, shape index: {}]
  %s1 = inlined_call_operand.vmem [shape: bf16[784,128], index: 1, kind: input, shape index: {}]
  %s2 = inlined_call_operand.vmem [shape: f32[1,128], index: 2, kind: input, shape index: {}]
  %s3 = inlined_call_operand.vmem [shape: bf16[128,64], index: 3, kind: input, shape index: {}]
  %s4 = inlined_call_operand.vmem [shape: f32[1,64], index: 4, kind: input, shape index: {}]
  %s5 = inlined_call_operand.vmem [shape: bf16[64,12], index: 5, kind: input, shape index: {}]
  %s6 = inlined_call_operand.vmem [shape: f32[1,12], index: 6, kind: input, shape index: {}]
  %s7 = inlined_call_operand.vmem [shape: bf16[12,128], index: 7, kind: input, shape index: {}]
  %s8 = inlined_call_operand.vmem [shape: f32[1,128], index: 8, kind: input, shape index: {}]
  %s9 = inlined_call_operand.vmem [shape: bf16[128,12], index: 9, kind: input, shape index: {}]
  %s10 = inlined_call_operand.vmem [shape: f32[1,12], index: 10, kind: input, shape index: {}]
  %s11 = inlined_call_operand.vmem [shape: bf16[12,64], index: 11, kind: input, shape index: {}]
  %s12 = inlined_call_operand.vmem [shape: f32[1,64], index: 12, kind: input, shape index: {}]
  %s13 = inlined_call_operand.vmem [shape: bf16[64,128], index: 13, kind: input, shape index: {}]
  %s14 = inlined_call_operand.vmem [shape: f32[1,128], index: 14, kind: input, shape index: {}]
  %s15 = inlined_call_operand.vmem [shape: bf16[128,784], index: 15, kind: input, shape index: {}]
  %s16 = inlined_call_operand.vmem [shape: f32[1,784], index: 16, kind: input, shape index: {}]
  %s17 = inlined_call_operand.vmem [shape: bf16[200,128], index: 17, kind: output, shape index: {0}]
  %s18 = inlined_call_operand.hbm [shape: bf16[200,784], index: 18, kind: output, shape index: {1}]
  %19 = xla_tuple %s17, %s18
  %s20 = sld [smem:[#allocation0]]
  $region153: #{autoencoder_forward.1} parent=0
    _
  %s22 = ssub.s32 1, %s20
  %s23 = scalar_select 0, %s22, %s20
  $region1: #{autoencoder_forward.1} parent=0
    #allocation2 [shape = 'u8[65536]{0}', space=vmem, size = 0x10000, scoped, tag = 'output window, operand 0']
    #allocation3 [shape = 'u8[458752]{0}', space=vmem, size = 0x70000, scoped, tag = 'output window, operand 1']
    #allocation4 [shape = 's32[2]{0}', space=sflag, size = 0x8, scoped, tag = 'scoped memory for autoencoder_forward.1']
    %24 = vsyncpa [#allocation4], 0
    %s25 = scalar_lea.sflag [#allocation4], 1
    %26 = vsyncpa %s25, 0
    loop: start=0, step=1, limit=4
    $region2: #{autoencoder_forward.1} parent=1 // loop_pre_header
      _
    $region3: #{autoencoder_forward.1} parent=1 // loop_header
      %s28 = sphi 0, %s32
      %p29 = scmp.ge.s32.totalorder %s28, 4
      %s38 = sphi 0, %s40
      %s41 = sphi 0, %s38
      %s42 = sphi 0, %s41
      %s58 = sphi 0, %s42
      %s62 = sphi 0, %s62
      %s64 = sphi 0, %s62
      %s65 = sphi 0, %s64
      %s79 = sphi 0, %s65
      %s83 = sphi 0, %s83
      %s85 = sphi 0, %s83
      %s86 = sphi 0, %s85
      %s100 = sphi 0, %s86
      %s104 = sphi 0, %s104
      %s106 = sphi 0, %s104
      %s107 = sphi 0, %s106
      %s121 = sphi 0, %s107
      %s125 = sphi 0, %s125
      %s127 = sphi 0, %s125
      %s128 = sphi 0, %s127
      %s142 = sphi 0, %s128
      %s146 = sphi 0, %s146
      %s148 = sphi 0, %s146
      %s149 = sphi 0, %s148
      %s163 = sphi 0, %s149
      %s167 = sphi 0, %s167
      %s169 = sphi 0, %s167
      %s170 = sphi 0, %s169
      %s184 = sphi 0, %s170
      %s188 = sphi 0, %s188
      %s190 = sphi 0, %s188
      %s191 = sphi 0, %s190
      %s205 = sphi 0, %s191
      %s209 = sphi 0, %s209
      %s211 = sphi 0, %s209
      %s212 = sphi 0, %s211
      %s226 = sphi 0, %s212
      %s230 = sphi 0, %s230
      %s232 = sphi 0, %s230
      %s233 = sphi 0, %s232
      %s247 = sphi 0, %s233
      %s251 = sphi 0, %s251
      %s253 = sphi 0, %s251
      %s254 = sphi 0, %s253
      %s268 = sphi 0, %s254
      %s272 = sphi 0, %s272
      %s274 = sphi 0, %s272
      %s275 = sphi 0, %s274
      %s289 = sphi 0, %s275
      %s293 = sphi 0, %s293
      %s295 = sphi 0, %s293
      %s296 = sphi 0, %s295
      %s310 = sphi 0, %s296
      %s314 = sphi 0, %s314
      %s316 = sphi 0, %s314
      %s317 = sphi 0, %s316
      %s331 = sphi 0, %s317
      %s335 = sphi 0, %s335
      %s337 = sphi 0, %s335
      %s338 = sphi 0, %s337
      %s352 = sphi 0, %s338
      %s356 = sphi 0, %s356
      %s358 = sphi 0, %s356
      %s359 = sphi 0, %s358
      %s373 = sphi 0, %s359
      %s377 = sphi 0, %s377
      %s379 = sphi 0, %s377
      %s380 = sphi 0, %s379
      %s394 = sphi 0, %s380
      %s400 = sphi 0, %s402
      %s403 = sphi 0, %s400
      %s404 = sphi 0, %s403
      %s420 = sphi 0, %s404
      %s426 = sphi 0, %s428
      %s429 = sphi 0, %s426
      %s430 = sphi 0, %s429
      %s446 = sphi 0, %s430
    $region4: #{autoencoder_forward.1} parent=1 // loop_header_branch
      %31 = sbr.rel (%p29) target = $region8
    $region5: #{autoencoder_forward.1} parent=1 // loop_body
      %s33 = ssub.s32 %s28, 1
      %s34 = ssub.s32 %s28, 2
      %s35 = sadd.s32 %s28, 1
      %s36 = ssub.s32 %s28, %s35
      %p37 = scmp.eq.s32.totalorder %s36, 0
      %s39 = sadd.s32 %s38, 1
      %s40 = scalar_select %p37, %s38, %s39
      %p43 = pneg %p37
      %p44 = scmp.eq.s32.totalorder %s28, 1
      %p45 = por %p43, %p44
      %p46 = scmp.ne.s32.totalorder %s38, %s41
      %p47 = scmp.eq.s32.totalorder %s28, 0
      %p48 = por %p46, %p47
      %p49 = scmp.ne.s32.totalorder %s38, %s41
      %p50 = scmp.eq.s32.totalorder %s33, 1
      %p51 = por %p49, %p50
      %p52 = scmp.ne.s32.totalorder %s41, %s42
      %p53 = scmp.eq.s32.totalorder %s33, 0
      %p54 = por %p52, %p53
      %p55 = scmp.ne.s32.totalorder %s41, %s42
      %p56 = scmp.eq.s32.totalorder %s34, 1
      %p57 = por %p55, %p56
      %p59 = scmp.ne.s32.totalorder %s42, %s58
      %p60 = scmp.eq.s32.totalorder %s34, 0
      %p61 = por %p59, %p60
      %s63 = sadd.s32 %s62, 1
      %p66 = scmp.eq.s32.totalorder %s28, 1
      %p67 = scmp.ne.s32.totalorder %s62, %s64
      %p68 = scmp.eq.s32.totalorder %s28, 0
      %p69 = por %p67, %p68
      %p70 = scmp.ne.s32.totalorder %s62, %s64
      %p71 = scmp.eq.s32.totalorder %s33, 1
      %p72 = por %p70, %p71
      %p73 = scmp.ne.s32.totalorder %s64, %s65
      %p74 = scmp.eq.s32.totalorder %s33, 0
      %p75 = por %p73, %p74
      %p76 = scmp.ne.s32.totalorder %s64, %s65
      %p77 = scmp.eq.s32.totalorder %s34, 1
      %p78 = por %p76, %p77
      %p80 = scmp.ne.s32.totalorder %s65, %s79
      %p81 = scmp.eq.s32.totalorder %s34, 0
      %p82 = por %p80, %p81
      %s84 = sadd.s32 %s83, 1
      %p87 = scmp.eq.s32.totalorder %s28, 1
      %p88 = scmp.ne.s32.totalorder %s83, %s85
      %p89 = scmp.eq.s32.totalorder %s28, 0
      %p90 = por %p88, %p89
      %p91 = scmp.ne.s32.totalorder %s83, %s85
      %p92 = scmp.eq.s32.totalorder %s33, 1
      %p93 = por %p91, %p92
      %p94 = scmp.ne.s32.totalorder %s85, %s86
      %p95 = scmp.eq.s32.totalorder %s33, 0
      %p96 = por %p94, %p95
      %p97 = scmp.ne.s32.totalorder %s85, %s86
      %p98 = scmp.eq.s32.totalorder %s34, 1
      %p99 = por %p97, %p98
      %p101 = scmp.ne.s32.totalorder %s86, %s100
      %p102 = scmp.eq.s32.totalorder %s34, 0
      %p103 = por %p101, %p102
      %s105 = sadd.s32 %s104, 1
      %p108 = scmp.eq.s32.totalorder %s28, 1
      %p109 = scmp.ne.s32.totalorder %s104, %s106
      %p110 = scmp.eq.s32.totalorder %s28, 0
      %p111 = por %p109, %p110
      %p112 = scmp.ne.s32.totalorder %s104, %s106
      %p113 = scmp.eq.s32.totalorder %s33, 1
      %p114 = por %p112, %p113
      %p115 = scmp.ne.s32.totalorder %s106, %s107
      %p116 = scmp.eq.s32.totalorder %s33, 0
      %p117 = por %p115, %p116
      %p118 = scmp.ne.s32.totalorder %s106, %s107
      %p119 = scmp.eq.s32.totalorder %s34, 1
      %p120 = por %p118, %p119
      %p122 = scmp.ne.s32.totalorder %s107, %s121
      %p123 = scmp.eq.s32.totalorder %s34, 0
      %p124 = por %p122, %p123
      %s126 = sadd.s32 %s125, 1
      %p129 = scmp.eq.s32.totalorder %s28, 1
      %p130 = scmp.ne.s32.totalorder %s125, %s127
      %p131 = scmp.eq.s32.totalorder %s28, 0
      %p132 = por %p130, %p131
      %p133 = scmp.ne.s32.totalorder %s125, %s127
      %p134 = scmp.eq.s32.totalorder %s33, 1
      %p135 = por %p133, %p134
      %p136 = scmp.ne.s32.totalorder %s127, %s128
      %p137 = scmp.eq.s32.totalorder %s33, 0
      %p138 = por %p136, %p137
      %p139 = scmp.ne.s32.totalorder %s127, %s128
      %p140 = scmp.eq.s32.totalorder %s34, 1
      %p141 = por %p139, %p140
      %p143 = scmp.ne.s32.totalorder %s128, %s142
      %p144 = scmp.eq.s32.totalorder %s34, 0
      %p145 = por %p143, %p144
      %s147 = sadd.s32 %s146, 1
      %p150 = scmp.eq.s32.totalorder %s28, 1
      %p151 = scmp.ne.s32.totalorder %s146, %s148
      %p152 = scmp.eq.s32.totalorder %s28, 0
      %p153 = por %p151, %p152
      %p154 = scmp.ne.s32.totalorder %s146, %s148
      %p155 = scmp.eq.s32.totalorder %s33, 1
      %p156 = por %p154, %p155
      %p157 = scmp.ne.s32.totalorder %s148, %s149
      %p158 = scmp.eq.s32.totalorder %s33, 0
      %p159 = por %p157, %p158
      %p160 = scmp.ne.s32.totalorder %s148, %s149
      %p161 = scmp.eq.s32.totalorder %s34, 1
      %p162 = por %p160, %p161
      %p164 = scmp.ne.s32.totalorder %s149, %s163
      %p165 = scmp.eq.s32.totalorder %s34, 0
      %p166 = por %p164, %p165
      %s168 = sadd.s32 %s167, 1
      %p171 = scmp.eq.s32.totalorder %s28, 1
      %p172 = scmp.ne.s32.totalorder %s167, %s169
      %p173 = scmp.eq.s32.totalorder %s28, 0
      %p174 = por %p172, %p173
      %p175 = scmp.ne.s32.totalorder %s167, %s169
      %p176 = scmp.eq.s32.totalorder %s33, 1
      %p177 = por %p175, %p176
      %p178 = scmp.ne.s32.totalorder %s169, %s170
      %p179 = scmp.eq.s32.totalorder %s33, 0
      %p180 = por %p178, %p179
      %p181 = scmp.ne.s32.totalorder %s169, %s170
      %p182 = scmp.eq.s32.totalorder %s34, 1
      %p183 = por %p181, %p182
      %p185 = scmp.ne.s32.totalorder %s170, %s184
      %p186 = scmp.eq.s32.totalorder %s34, 0
      %p187 = por %p185, %p186
      %s189 = sadd.s32 %s188, 1
      %p192 = scmp.eq.s32.totalorder %s28, 1
      %p193 = scmp.ne.s32.totalorder %s188, %s190
      %p194 = scmp.eq.s32.totalorder %s28, 0
      %p195 = por %p193, %p194
      %p196 = scmp.ne.s32.totalorder %s188, %s190
      %p197 = scmp.eq.s32.totalorder %s33, 1
      %p198 = por %p196, %p197
      %p199 = scmp.ne.s32.totalorder %s190, %s191
      %p200 = scmp.eq.s32.totalorder %s33, 0
      %p201 = por %p199, %p200
      %p202 = scmp.ne.s32.totalorder %s190, %s191
      %p203 = scmp.eq.s32.totalorder %s34, 1
      %p204 = por %p202, %p203
      %p206 = scmp.ne.s32.totalorder %s191, %s205
      %p207 = scmp.eq.s32.totalorder %s34, 0
      %p208 = por %p206, %p207
      %s210 = sadd.s32 %s209, 1
      %p213 = scmp.eq.s32.totalorder %s28, 1
      %p214 = scmp.ne.s32.totalorder %s209, %s211
      %p215 = scmp.eq.s32.totalorder %s28, 0
      %p216 = por %p214, %p215
      %p217 = scmp.ne.s32.totalorder %s209, %s211
      %p218 = scmp.eq.s32.totalorder %s33, 1
      %p219 = por %p217, %p218
      %p220 = scmp.ne.s32.totalorder %s211, %s212
      %p221 = scmp.eq.s32.totalorder %s33, 0
      %p222 = por %p220, %p221
      %p223 = scmp.ne.s32.totalorder %s211, %s212
      %p224 = scmp.eq.s32.totalorder %s34, 1
      %p225 = por %p223, %p224
      %p227 = scmp.ne.s32.totalorder %s212, %s226
      %p228 = scmp.eq.s32.totalorder %s34, 0
      %p229 = por %p227, %p228
      %s231 = sadd.s32 %s230, 1
      %p234 = scmp.eq.s32.totalorder %s28, 1
      %p235 = scmp.ne.s32.totalorder %s230, %s232
      %p236 = scmp.eq.s32.totalorder %s28, 0
      %p237 = por %p235, %p236
      %p238 = scmp.ne.s32.totalorder %s230, %s232
      %p239 = scmp.eq.s32.totalorder %s33, 1
      %p240 = por %p238, %p239
      %p241 = scmp.ne.s32.totalorder %s232, %s233
      %p242 = scmp.eq.s32.totalorder %s33, 0
      %p243 = por %p241, %p242
      %p244 = scmp.ne.s32.totalorder %s232, %s233
      %p245 = scmp.eq.s32.totalorder %s34, 1
      %p246 = por %p244, %p245
      %p248 = scmp.ne.s32.totalorder %s233, %s247
      %p249 = scmp.eq.s32.totalorder %s34, 0
      %p250 = por %p248, %p249
      %s252 = sadd.s32 %s251, 1
      %p255 = scmp.eq.s32.totalorder %s28, 1
      %p256 = scmp.ne.s32.totalorder %s251, %s253
      %p257 = scmp.eq.s32.totalorder %s28, 0
      %p258 = por %p256, %p257
      %p259 = scmp.ne.s32.totalorder %s251, %s253
      %p260 = scmp.eq.s32.totalorder %s33, 1
      %p261 = por %p259, %p260
      %p262 = scmp.ne.s32.totalorder %s253, %s254
      %p263 = scmp.eq.s32.totalorder %s33, 0
      %p264 = por %p262, %p263
      %p265 = scmp.ne.s32.totalorder %s253, %s254
      %p266 = scmp.eq.s32.totalorder %s34, 1
      %p267 = por %p265, %p266
      %p269 = scmp.ne.s32.totalorder %s254, %s268
      %p270 = scmp.eq.s32.totalorder %s34, 0
      %p271 = por %p269, %p270
      %s273 = sadd.s32 %s272, 1
      %p276 = scmp.eq.s32.totalorder %s28, 1
      %p277 = scmp.ne.s32.totalorder %s272, %s274
      %p278 = scmp.eq.s32.totalorder %s28, 0
      %p279 = por %p277, %p278
      %p280 = scmp.ne.s32.totalorder %s272, %s274
      %p281 = scmp.eq.s32.totalorder %s33, 1
      %p282 = por %p280, %p281
      %p283 = scmp.ne.s32.totalorder %s274, %s275
      %p284 = scmp.eq.s32.totalorder %s33, 0
      %p285 = por %p283, %p284
      %p286 = scmp.ne.s32.totalorder %s274, %s275
      %p287 = scmp.eq.s32.totalorder %s34, 1
      %p288 = por %p286, %p287
      %p290 = scmp.ne.s32.totalorder %s275, %s289
      %p291 = scmp.eq.s32.totalorder %s34, 0
      %p292 = por %p290, %p291
      %s294 = sadd.s32 %s293, 1
      %p297 = scmp.eq.s32.totalorder %s28, 1
      %p298 = scmp.ne.s32.totalorder %s293, %s295
      %p299 = scmp.eq.s32.totalorder %s28, 0
      %p300 = por %p298, %p299
      %p301 = scmp.ne.s32.totalorder %s293, %s295
      %p302 = scmp.eq.s32.totalorder %s33, 1
      %p303 = por %p301, %p302
      %p304 = scmp.ne.s32.totalorder %s295, %s296
      %p305 = scmp.eq.s32.totalorder %s33, 0
      %p306 = por %p304, %p305
      %p307 = scmp.ne.s32.totalorder %s295, %s296
      %p308 = scmp.eq.s32.totalorder %s34, 1
      %p309 = por %p307, %p308
      %p311 = scmp.ne.s32.totalorder %s296, %s310
      %p312 = scmp.eq.s32.totalorder %s34, 0
      %p313 = por %p311, %p312
      %s315 = sadd.s32 %s314, 1
      %p318 = scmp.eq.s32.totalorder %s28, 1
      %p319 = scmp.ne.s32.totalorder %s314, %s316
      %p320 = scmp.eq.s32.totalorder %s28, 0
      %p321 = por %p319, %p320
      %p322 = scmp.ne.s32.totalorder %s314, %s316
      %p323 = scmp.eq.s32.totalorder %s33, 1
      %p324 = por %p322, %p323
      %p325 = scmp.ne.s32.totalorder %s316, %s317
      %p326 = scmp.eq.s32.totalorder %s33, 0
      %p327 = por %p325, %p326
      %p328 = scmp.ne.s32.totalorder %s316, %s317
      %p329 = scmp.eq.s32.totalorder %s34, 1
      %p330 = por %p328, %p329
      %p332 = scmp.ne.s32.totalorder %s317, %s331
      %p333 = scmp.eq.s32.totalorder %s34, 0
      %p334 = por %p332, %p333
      %s336 = sadd.s32 %s335, 1
      %p339 = scmp.eq.s32.totalorder %s28, 1
      %p340 = scmp.ne.s32.totalorder %s335, %s337
      %p341 = scmp.eq.s32.totalorder %s28, 0
      %p342 = por %p340, %p341
      %p343 = scmp.ne.s32.totalorder %s335, %s337
      %p344 = scmp.eq.s32.totalorder %s33, 1
      %p345 = por %p343, %p344
      %p346 = scmp.ne.s32.totalorder %s337, %s338
      %p347 = scmp.eq.s32.totalorder %s33, 0
      %p348 = por %p346, %p347
      %p349 = scmp.ne.s32.totalorder %s337, %s338
      %p350 = scmp.eq.s32.totalorder %s34, 1
      %p351 = por %p349, %p350
      %p353 = scmp.ne.s32.totalorder %s338, %s352
      %p354 = scmp.eq.s32.totalorder %s34, 0
      %p355 = por %p353, %p354
      %s357 = sadd.s32 %s356, 1
      %p360 = scmp.eq.s32.totalorder %s28, 1
      %p361 = scmp.ne.s32.totalorder %s356, %s358
      %p362 = scmp.eq.s32.totalorder %s28, 0
      %p363 = por %p361, %p362
      %p364 = scmp.ne.s32.totalorder %s356, %s358
      %p365 = scmp.eq.s32.totalorder %s33, 1
      %p366 = por %p364, %p365
      %p367 = scmp.ne.s32.totalorder %s358, %s359
      %p368 = scmp.eq.s32.totalorder %s33, 0
      %p369 = por %p367, %p368
      %p370 = scmp.ne.s32.totalorder %s358, %s359
      %p371 = scmp.eq.s32.totalorder %s34, 1
      %p372 = por %p370, %p371
      %p374 = scmp.ne.s32.totalorder %s359, %s373
      %p375 = scmp.eq.s32.totalorder %s34, 0
      %p376 = por %p374, %p375
      %s378 = sadd.s32 %s377, 1
      %p381 = scmp.eq.s32.totalorder %s28, 1
      %p382 = scmp.ne.s32.totalorder %s377, %s379
      %p383 = scmp.eq.s32.totalorder %s28, 0
      %p384 = por %p382, %p383
      %p385 = scmp.ne.s32.totalorder %s377, %s379
      %p386 = scmp.eq.s32.totalorder %s33, 1
      %p387 = por %p385, %p386
      %p388 = scmp.ne.s32.totalorder %s379, %s380
      %p389 = scmp.eq.s32.totalorder %s33, 0
      %p390 = por %p388, %p389
      %p391 = scmp.ne.s32.totalorder %s379, %s380
      %p392 = scmp.eq.s32.totalorder %s34, 1
      %p393 = por %p391, %p392
      %p395 = scmp.ne.s32.totalorder %s380, %s394
      %p396 = scmp.eq.s32.totalorder %s34, 0
      %p397 = por %p395, %p396
      %s398 = ssub.s32 %s28, %s35
      %p399 = scmp.eq.s32.totalorder %s398, 0
      %s401 = sadd.s32 %s400, 1
      %s402 = scalar_select %p399, %s400, %s401
      %p405 = pneg %p399
      %p406 = scmp.eq.s32.totalorder %s28, 1
      %p407 = por %p405, %p406
      %p408 = scmp.ne.s32.totalorder %s400, %s403
      %p409 = scmp.eq.s32.totalorder %s28, 0
      %p410 = por %p408, %p409
      %p411 = scmp.ne.s32.totalorder %s400, %s403
      %p412 = scmp.eq.s32.totalorder %s33, 1
      %p413 = por %p411, %p412
      %p414 = scmp.ne.s32.totalorder %s403, %s404
      %p415 = scmp.eq.s32.totalorder %s33, 0
      %p416 = por %p414, %p415
      %p417 = scmp.ne.s32.totalorder %s403, %s404
      %p418 = scmp.eq.s32.totalorder %s34, 1
      %p419 = por %p417, %p418
      %p421 = scmp.ne.s32.totalorder %s404, %s420
      %p422 = scmp.eq.s32.totalorder %s34, 0
      %p423 = por %p421, %p422
      %s424 = ssub.s32 %s28, %s35
      %p425 = scmp.eq.s32.totalorder %s424, 0
      %s427 = sadd.s32 %s426, 1
      %s428 = scalar_select %p425, %s426, %s427
      %p431 = pneg %p425
      %p432 = scmp.eq.s32.totalorder %s28, 1
      %p433 = por %p431, %p432
      %p434 = scmp.ne.s32.totalorder %s426, %s429
      %p435 = scmp.eq.s32.totalorder %s28, 0
      %p436 = por %p434, %p435
      %p437 = scmp.ne.s32.totalorder %s426, %s429
      %p438 = scmp.eq.s32.totalorder %s33, 1
      %p439 = por %p437, %p438
      %p440 = scmp.ne.s32.totalorder %s429, %s430
      %p441 = scmp.eq.s32.totalorder %s33, 0
      %p442 = por %p440, %p441
      %p443 = scmp.ne.s32.totalorder %s429, %s430
      %p444 = scmp.eq.s32.totalorder %s34, 1
      %p445 = por %p443, %p444
      %p447 = scmp.ne.s32.totalorder %s430, %s446
      %p448 = scmp.eq.s32.totalorder %s34, 0
      %p449 = por %p447, %p448
      %p450 = scmp.le.s32.totalorder 1, %s28
      %p451 = scmp.lt.s32.totalorder %s28, 3
      %p452 = pnand %p450, %p451
      %p453 = pneg %p452
      // Predicated region
      $region9: #{autoencoder_forward.1} parent=5 // pred_check
        _
      $region10: #{autoencoder_forward.1} parent=5 // pred_check_branch
        %455 = sbr.rel (%p452) target = $region12
      $region11: #{autoencoder_forward.1} parent=5 // pred_region
        %s456 = ssub.s32 %s28, 1
        // Predicated region
        $region13: #{autoencoder_forward.1} parent=11 // pred_check
          %p457 = pneg %p75
        $region14: #{autoencoder_forward.1} parent=11 // pred_check_branch
          %459 = sbr.rel (%p457) target = $region16
        $region15: #{autoencoder_forward.1} parent=11 // pred_region
          _
        $region16: #{autoencoder_forward.1} parent=11 // pred_fallthru
          _
        // Predicated region
        $region17: #{autoencoder_forward.1} parent=11 // pred_check
          %p460 = pneg %p96
        $region18: #{autoencoder_forward.1} parent=11 // pred_check_branch
          %462 = sbr.rel (%p460) target = $region20
        $region19: #{autoencoder_forward.1} parent=11 // pred_region
          _
        $region20: #{autoencoder_forward.1} parent=11 // pred_fallthru
          _
        // Predicated region
        $region21: #{autoencoder_forward.1} parent=11 // pred_check
          %p463 = pneg %p117
        $region22: #{autoencoder_forward.1} parent=11 // pred_check_branch
          %465 = sbr.rel (%p463) target = $region24
        $region23: #{autoencoder_forward.1} parent=11 // pred_region
          _
        $region24: #{autoencoder_forward.1} parent=11 // pred_fallthru
          _
        // Predicated region
        $region25: #{autoencoder_forward.1} parent=11 // pred_check
          %p466 = pneg %p138
        $region26: #{autoencoder_forward.1} parent=11 // pred_check_branch
          %468 = sbr.rel (%p466) target = $region28
        $region27: #{autoencoder_forward.1} parent=11 // pred_region
          _
        $region28: #{autoencoder_forward.1} parent=11 // pred_fallthru
          _
        // Predicated region
        $region29: #{autoencoder_forward.1} parent=11 // pred_check
          %p469 = pneg %p159
        $region30: #{autoencoder_forward.1} parent=11 // pred_check_branch
          %471 = sbr.rel (%p469) target = $region32
        $region31: #{autoencoder_forward.1} parent=11 // pred_region
          _
        $region32: #{autoencoder_forward.1} parent=11 // pred_fallthru
          _
        // Predicated region
        $region33: #{autoencoder_forward.1} parent=11 // pred_check
          %p472 = pneg %p180
        $region34: #{autoencoder_forward.1} parent=11 // pred_check_branch
          %474 = sbr.rel (%p472) target = $region36
        $region35: #{autoencoder_forward.1} parent=11 // pred_region
          _
        $region36: #{autoencoder_forward.1} parent=11 // pred_fallthru
          _
        // Predicated region
        $region37: #{autoencoder_forward.1} parent=11 // pred_check
          %p475 = pneg %p201
        $region38: #{autoencoder_forward.1} parent=11 // pred_check_branch
          %477 = sbr.rel (%p475) target = $region40
        $region39: #{autoencoder_forward.1} parent=11 // pred_region
          _
        $region40: #{autoencoder_forward.1} parent=11 // pred_fallthru
          _
        // Predicated region
        $region41: #{autoencoder_forward.1} parent=11 // pred_check
          %p478 = pneg %p222
        $region42: #{autoencoder_forward.1} parent=11 // pred_check_branch
          %480 = sbr.rel (%p478) target = $region44
        $region43: #{autoencoder_forward.1} parent=11 // pred_region
          _
        $region44: #{autoencoder_forward.1} parent=11 // pred_fallthru
          _
        // Predicated region
        $region45: #{autoencoder_forward.1} parent=11 // pred_check
          %p481 = pneg %p243
        $region46: #{autoencoder_forward.1} parent=11 // pred_check_branch
          %483 = sbr.rel (%p481) target = $region48
        $region47: #{autoencoder_forward.1} parent=11 // pred_region
          _
        $region48: #{autoencoder_forward.1} parent=11 // pred_fallthru
          _
        // Predicated region
        $region49: #{autoencoder_forward.1} parent=11 // pred_check
          %p484 = pneg %p264
        $region50: #{autoencoder_forward.1} parent=11 // pred_check_branch
          %486 = sbr.rel (%p484) target = $region52
        $region51: #{autoencoder_forward.1} parent=11 // pred_region
          _
        $region52: #{autoencoder_forward.1} parent=11 // pred_fallthru
          _
        // Predicated region
        $region53: #{autoencoder_forward.1} parent=11 // pred_check
          %p487 = pneg %p285
        $region54: #{autoencoder_forward.1} parent=11 // pred_check_branch
          %489 = sbr.rel (%p487) target = $region56
        $region55: #{autoencoder_forward.1} parent=11 // pred_region
          _
        $region56: #{autoencoder_forward.1} parent=11 // pred_fallthru
          _
        // Predicated region
        $region57: #{autoencoder_forward.1} parent=11 // pred_check
          %p490 = pneg %p306
        $region58: #{autoencoder_forward.1} parent=11 // pred_check_branch
          %492 = sbr.rel (%p490) target = $region60
        $region59: #{autoencoder_forward.1} parent=11 // pred_region
          _
        $region60: #{autoencoder_forward.1} parent=11 // pred_fallthru
          _
        // Predicated region
        $region61: #{autoencoder_forward.1} parent=11 // pred_check
          %p493 = pneg %p327
        $region62: #{autoencoder_forward.1} parent=11 // pred_check_branch
          %495 = sbr.rel (%p493) target = $region64
        $region63: #{autoencoder_forward.1} parent=11 // pred_region
          _
        $region64: #{autoencoder_forward.1} parent=11 // pred_fallthru
          _
        // Predicated region
        $region65: #{autoencoder_forward.1} parent=11 // pred_check
          %p496 = pneg %p348
        $region66: #{autoencoder_forward.1} parent=11 // pred_check_branch
          %498 = sbr.rel (%p496) target = $region68
        $region67: #{autoencoder_forward.1} parent=11 // pred_region
          _
        $region68: #{autoencoder_forward.1} parent=11 // pred_fallthru
          _
        // Predicated region
        $region69: #{autoencoder_forward.1} parent=11 // pred_check
          %p499 = pneg %p369
        $region70: #{autoencoder_forward.1} parent=11 // pred_check_branch
          %501 = sbr.rel (%p499) target = $region72
        $region71: #{autoencoder_forward.1} parent=11 // pred_region
          _
        $region72: #{autoencoder_forward.1} parent=11 // pred_fallthru
          _
        // Predicated region
        $region73: #{autoencoder_forward.1} parent=11 // pred_check
          %p502 = pneg %p390
        $region74: #{autoencoder_forward.1} parent=11 // pred_check_branch
          %504 = sbr.rel (%p502) target = $region76
        $region75: #{autoencoder_forward.1} parent=11 // pred_region
          _
        $region76: #{autoencoder_forward.1} parent=11 // pred_fallthru
          _
      $region12: #{autoencoder_forward.1} parent=5 // pred_fallthru
        _
      %p505 = scmp.lt.s32.totalorder %s28, 2
      // Predicated region
      $region77: #{autoencoder_forward.1} parent=5 // pred_check
        %p506 = pneg %p505
      $region78: #{autoencoder_forward.1} parent=5 // pred_check_branch
        %508 = sbr.rel (%p506) target = $region80
      $region79: #{autoencoder_forward.1} parent=5 // pred_region
        // Predicated region
        $region81: #{autoencoder_forward.1} parent=79 // pred_check
          %p509 = pneg %p48
        $region82: #{autoencoder_forward.1} parent=79 // pred_check_branch
          %511 = sbr.rel (%p509) target = $region84
        $region83: #{autoencoder_forward.1} parent=79 // pred_region
          %s512 = smul.u32 16, %s28
          %s513 = ssub.s32 25, %s512
          %p514 = scmp.lt.s32.totalorder %s513, 16
          %s515 = scalar_select %p514, %s513, 16
          %s516 = smul.u32 64, %s515
          %s517 = smul.u32 %s516, 7
          %p518 = scmp.lt.s32.totalorder %s512, 24
          %s519 = scalar_select %p518, %s512, 24
          %s520 = smul.addr %s519, 7
          %s521 = smul.addr %s520, 4
          %s522 = scalar_lea.vmem %s0, %s521
          %s523 = smul.u32 16, %s28
          %s524 = ssub.s32 25, %s523
          %p525 = scmp.lt.s32.totalorder %s524, 16
          %s526 = scalar_select %p525, %s524, 16
          %s527 = smul.u32 64, %s526
          %s528 = smul.u32 %s527, 7
        $region84: #{autoencoder_forward.1} parent=79 // pred_fallthru
          _
      $region80: #{autoencoder_forward.1} parent=5 // pred_fallthru
        _
      %p529 = scmp.le.s32.totalorder 1, %s28
      %p530 = scmp.lt.s32.totalorder %s28, 3
      %p531 = pnand %p529, %p530
      %p532 = pneg %p531
      // Predicated region
      $region85: #{autoencoder_forward.1} parent=5 // pred_check
        _
      $region86: #{autoencoder_forward.1} parent=5 // pred_check_branch
        %534 = sbr.rel (%p531) target = $region88
      $region87: #{autoencoder_forward.1} parent=5 // pred_region
        %s535 = ssub.s32 %s28, 1
        %s536 = smul.u32 16, %s33
        %s537 = ssub.s32 25, %s536
        %p538 = scmp.lt.s32.totalorder %s537, 16
        %s539 = scalar_select %p538, %s537, 16
        %s540 = smul.u32 64, %s539
        %s541 = smul.u32 %s540, 7
        %p542 = scmp.lt.s32.totalorder %s536, 24
        %s543 = scalar_select %p542, %s536, 24
        %s544 = smul.addr %s543, 7
        %s545 = smul.addr %s544, 4
        %s546 = scalar_lea.vmem %s0, %s545
        %p547 = pneg %p54
        %p548 = pneg %p51
        %p549 = pneg %p75
        %p550 = pneg %p72
        %p551 = pneg %p96
        %p552 = pneg %p93
        %p553 = pneg %p117
        %p554 = pneg %p114
        %p555 = pneg %p138
        %p556 = pneg %p135
        %p557 = pneg %p159
        %p558 = pneg %p156
        %p559 = pneg %p180
        %p560 = pneg %p177
        %p561 = pneg %p201
        %p562 = pneg %p198
        %p563 = pneg %p222
        %p564 = pneg %p219
        %p565 = pneg %p243
        %p566 = pneg %p240
        %p567 = pneg %p264
        %p568 = pneg %p261
        %p569 = pneg %p285
        %p570 = pneg %p282
        %p571 = pneg %p306
        %p572 = pneg %p303
        %p573 = pneg %p327
        %p574 = pneg %p324
        %p575 = pneg %p348
        %p576 = pneg %p345
        %p577 = pneg %p369
        %p578 = pneg %p366
        %p579 = pneg %p390
        %p580 = pneg %p387
        %p581 = pneg %p416
        %p582 = pneg %p413
        %s583 = sand.u32 %s403, 1
        %s584 = sand.u32 %s403, 1
        %s585 = smul.addr %s584, 64
        %s586 = scalar_lea.vmem [#allocation2], %s585
        %p587 = pneg %p442
        %p588 = pneg %p439
        %s589 = sand.u32 %s429, 1
        %s590 = scalar_lea.sflag [#allocation4], %s589
        %s591 = sand.u32 %s429, 1
        %s592 = smul.addr %s591, 448
        %s593 = scalar_lea.vmem [#allocation3], %s592
        %s594 = smul.u32 16, %s33
        %s595 = ssub.s32 25, %s594
        %p596 = scmp.lt.s32.totalorder %s595, 16
        %s597 = scalar_select %p596, %s595, 16
        %s598 = smul.u32 64, %s597
        %s599 = smul.u32 %s598, 7
        %p600 = scmp.lt.s32.totalorder %s594, 24
        %s601 = scalar_select %p600, %s594, 24
        %s602 = smul.addr %s601, 7
        %s603 = smul.addr %s602, 4
        %s604 = scalar_lea.vmem %s0, %s603
        %s605 = smul.u32 16, %s33
        %s606 = ssub.s32 25, %s605
        %p607 = scmp.lt.s32.totalorder %s606, 16
        %s608 = scalar_select %p607, %s606, 16
        %s609 = smul.u32 64, %s608
        %s610 = smul.u32 %s609, 7
        %s611 = smul.u32 16, %s33
        %s612 = ssub.s32 25, %s611
        %p613 = scmp.lt.s32.totalorder %s612, 16
        %s614 = scalar_select %p613, %s612, 16
        %s615 = smul.u32 64, %s614
        %s616 = smul.u32 16, %s33
        %s617 = ssub.s32 25, %s616
        %p618 = scmp.lt.s32.totalorder %s617, 16
        %s619 = scalar_select %p618, %s617, 16
        %s620 = smul.u32 64, %s619
        %s621 = smul.u32 %s620, 7
        %v623 = vld [vmem:[%s604] sm:$0xff]
        %v624 = vld [vmem:[%s604 + $0x8] sm:$0xff]
        %v625 = vld [vmem:[%s604 + $0x10] sm:$0xff]
        %v626 = vld [vmem:[%s604 + $0x18] sm:$0xf]
        %v627 = vld [vmem:[%s604 + $0x1c] sm:$0xff]
        %v628 = vld [vmem:[%s604 + $0x24] sm:$0xff]
        %v629 = vld [vmem:[%s604 + $0x2c] sm:$0xff]
        %v630 = vld [vmem:[%s604 + $0x34] sm:$0xf]
        %v631 = vld [vmem:[%s604 + $0x38] sm:$0xff]
        %v632 = vld [vmem:[%s604 + $0x40] sm:$0xff]
        %v633 = vld [vmem:[%s604 + $0x48] sm:$0xff]
        %v634 = vld [vmem:[%s604 + $0x50] sm:$0xf]
        %v635 = vld [vmem:[%s604 + $0x54] sm:$0xff]
        %v636 = vld [vmem:[%s604 + $0x5c] sm:$0xff]
        %v637 = vld [vmem:[%s604 + $0x64] sm:$0xff]
        %v638 = vld [vmem:[%s604 + $0x6c] sm:$0xf]
        %v639 = vld [vmem:[%s604 + $0x70] sm:$0xff]
        %v640 = vld [vmem:[%s604 + $0x78] sm:$0xff]
        %v641 = vld [vmem:[%s604 + $0x80] sm:$0xff]
        %v642 = vld [vmem:[%s604 + $0x88] sm:$0xf]
        %v643 = vld [vmem:[%s604 + $0x8c] sm:$0xff]
        %v644 = vld [vmem:[%s604 + $0x94] sm:$0xff]
        %v645 = vld [vmem:[%s604 + $0x9c] sm:$0xff]
        %v646 = vld [vmem:[%s604 + $0xa4] sm:$0xf]
        %v647 = vld [vmem:[%s604 + $0xa8] sm:$0xff]
        %v648 = vld [vmem:[%s604 + $0xb0] sm:$0xff]
        %v649 = vld [vmem:[%s604 + $0xb8] sm:$0xff]
        %v650 = vld [vmem:[%s604 + $0xc0] sm:$0xf]
        %v651 = vld [vmem:[%s604 + $0xc4] sm:$0xff]
        %v652 = vld [vmem:[%s604 + $0xcc] sm:$0xff]
        %v653 = vld [vmem:[%s604 + $0xd4] sm:$0xff]
        %v654 = vld [vmem:[%s604 + $0xdc] sm:$0xf]
        %v655 = vld [vmem:[%s604 + $0xe0] sm:$0xff]
        %v656 = vld [vmem:[%s604 + $0xe8] sm:$0xff]
        %v657 = vld [vmem:[%s604 + $0xf0] sm:$0xff]
        %v658 = vld [vmem:[%s604 + $0xf8] sm:$0xf]
        %v659 = vld [vmem:[%s604 + $0xfc] sm:$0xff]
        %v660 = vld [vmem:[%s604 + $0x104] sm:$0xff]
        %v661 = vld [vmem:[%s604 + $0x10c] sm:$0xff]
        %v662 = vld [vmem:[%s604 + $0x114] sm:$0xf]
        %v663 = vld [vmem:[%s604 + $0x118] sm:$0xff]
        %v664 = vld [vmem:[%s604 + $0x120] sm:$0xff]
        %v665 = vld [vmem:[%s604 + $0x128] sm:$0xff]
        %v666 = vld [vmem:[%s604 + $0x130] sm:$0xf]
        %v667 = vld [vmem:[%s604 + $0x134] sm:$0xff]
        %v668 = vld [vmem:[%s604 + $0x13c] sm:$0xff]
        %v669 = vld [vmem:[%s604 + $0x144] sm:$0xff]
        %v670 = vld [vmem:[%s604 + $0x14c] sm:$0xf]
        %v671 = vld [vmem:[%s604 + $0x150] sm:$0xff]
        %v672 = vld [vmem:[%s604 + $0x158] sm:$0xff]
        %v673 = vld [vmem:[%s604 + $0x160] sm:$0xff]
        %v674 = vld [vmem:[%s604 + $0x168] sm:$0xf]
        %v675 = vld [vmem:[%s604 + $0x16c] sm:$0xff]
        %v676 = vld [vmem:[%s604 + $0x174] sm:$0xff]
        %v677 = vld [vmem:[%s604 + $0x17c] sm:$0xff]
        %v678 = vld [vmem:[%s604 + $0x184] sm:$0xf]
        %v679 = vld [vmem:[%s604 + $0x188] sm:$0xff]
        %v680 = vld [vmem:[%s604 + $0x190] sm:$0xff]
        %v681 = vld [vmem:[%s604 + $0x198] sm:$0xff]
        %v682 = vld [vmem:[%s604 + $0x1a0] sm:$0xf]
        %v683 = vld [vmem:[%s604 + $0x1a4] sm:$0xff]
        %v684 = vld [vmem:[%s604 + $0x1ac] sm:$0xff]
        %v685 = vld [vmem:[%s604 + $0x1b4] sm:$0xff]
        %v686 = vld [vmem:[%s604 + $0x1bc] sm:$0xf]
        %v687 = vld [vmem:[%s1] sm:$0xf]
        %v688 = vld [vmem:[%s1 + $0x4] sm:$0xf]
        %v689 = vld [vmem:[%s1 + $0x8] sm:$0xf]
        %v690 = vld [vmem:[%s1 + $0xc] sm:$0xf]
        %v691 = vld [vmem:[%s1 + $0x10] sm:$0xf]
        %v692 = vld [vmem:[%s1 + $0x14] sm:$0xf]
        %v693 = vld [vmem:[%s1 + $0x18] sm:$0xf]
        %v694 = vld [vmem:[%s1 + $0x1c] sm:$0xf]
        %v695 = vld [vmem:[%s1 + $0x20] sm:$0xf]
        %v696 = vld [vmem:[%s1 + $0x24] sm:$0xf]
        %v697 = vld [vmem:[%s1 + $0x28] sm:$0xf]
        %v698 = vld [vmem:[%s1 + $0x2c] sm:$0xf]
        %v699 = vld [vmem:[%s1 + $0x30] sm:$0xf]
        %v700 = vld [vmem:[%s1 + $0x34] sm:$0xf]
        %v701 = vld [vmem:[%s1 + $0x38] sm:$0xf]
        %v702 = vld [vmem:[%s1 + $0x3c] sm:$0xf]
        %v703 = vld [vmem:[%s1 + $0x40] sm:$0xf]
        %v704 = vld [vmem:[%s1 + $0x44] sm:$0xf]
        %v705 = vld [vmem:[%s1 + $0x48] sm:$0xf]
        %v706 = vld [vmem:[%s1 + $0x4c] sm:$0xf]
        %v707 = vld [vmem:[%s1 + $0x50] sm:$0xf]
        %v708 = vld [vmem:[%s1 + $0x54] sm:$0xf]
        %v709 = vld [vmem:[%s1 + $0x58] sm:$0xf]
        %v710 = vld [vmem:[%s1 + $0x5c] sm:$0xf]
        %v711 = vld [vmem:[%s1 + $0x60] sm:$0xf]
        %v712 = vld [vmem:[%s1 + $0x64] sm:$0xf]
        %v713 = vld [vmem:[%s1 + $0x68] sm:$0xf]
        %v714 = vld [vmem:[%s1 + $0x6c] sm:$0xf]
        %v715 = vld [vmem:[%s1 + $0x70] sm:$0xf]
        %v716 = vld [vmem:[%s1 + $0x74] sm:$0xf]
        %v717 = vld [vmem:[%s1 + $0x78] sm:$0xf]
        %v718 = vld [vmem:[%s1 + $0x7c] sm:$0xf]
        %v719 = vld [vmem:[%s1 + $0x80] sm:$0xf]
        %v720 = vld [vmem:[%s1 + $0x84] sm:$0xf]
        %v721 = vld [vmem:[%s1 + $0x88] sm:$0xf]
        %v722 = vld [vmem:[%s1 + $0x8c] sm:$0xf]
        %v723 = vld [vmem:[%s1 + $0x90] sm:$0xf]
        %v724 = vld [vmem:[%s1 + $0x94] sm:$0xf]
        %v725 = vld [vmem:[%s1 + $0x98] sm:$0xf]
        %v726 = vld [vmem:[%s1 + $0x9c] sm:$0xf]
        %v727 = vld [vmem:[%s1 + $0xa0] sm:$0xf]
        %v728 = vld [vmem:[%s1 + $0xa4] sm:$0xf]
        %v729 = vld [vmem:[%s1 + $0xa8] sm:$0xf]
        %v730 = vld [vmem:[%s1 + $0xac] sm:$0xf]
        %v731 = vld [vmem:[%s1 + $0xb0] sm:$0xf]
        %v732 = vld [vmem:[%s1 + $0xb4] sm:$0xf]
        %v733 = vld [vmem:[%s1 + $0xb8] sm:$0xf]
        %v734 = vld [vmem:[%s1 + $0xbc] sm:$0xf]
        %v735 = vld [vmem:[%s1 + $0xc0] sm:$0xf]
        %v736 = vld [vmem:[%s1 + $0xc4] sm:$0xf]
        %v737 = vld [vmem:[%s1 + $0xc8] sm:$0xf]
        %v738 = vld [vmem:[%s1 + $0xcc] sm:$0xf]
        %v739 = vld [vmem:[%s1 + $0xd0] sm:$0xf]
        %v740 = vld [vmem:[%s1 + $0xd4] sm:$0xf]
        %v741 = vld [vmem:[%s1 + $0xd8] sm:$0xf]
        %v742 = vld [vmem:[%s1 + $0xdc] sm:$0xf]
        %v743 = vld [vmem:[%s1 + $0xe0] sm:$0xf]
        %v744 = vld [vmem:[%s1 + $0xe4] sm:$0xf]
        %v745 = vld [vmem:[%s1 + $0xe8] sm:$0xf]
        %v746 = vld [vmem:[%s1 + $0xec] sm:$0xf]
        %v747 = vld [vmem:[%s1 + $0xf0] sm:$0xf]
        %v748 = vld [vmem:[%s1 + $0xf4] sm:$0xf]
        %v749 = vld [vmem:[%s1 + $0xf8] sm:$0xf]
        %v750 = vld [vmem:[%s1 + $0xfc] sm:$0xf]
        %v751 = vld [vmem:[%s1 + $0x100] sm:$0xf]
        %v752 = vld [vmem:[%s1 + $0x104] sm:$0xf]
        %v753 = vld [vmem:[%s1 + $0x108] sm:$0xf]
        %v754 = vld [vmem:[%s1 + $0x10c] sm:$0xf]
        %v755 = vld [vmem:[%s1 + $0x110] sm:$0xf]
        %v756 = vld [vmem:[%s1 + $0x114] sm:$0xf]
        %v757 = vld [vmem:[%s1 + $0x118] sm:$0xf]
        %v758 = vld [vmem:[%s1 + $0x11c] sm:$0xf]
        %v759 = vld [vmem:[%s1 + $0x120] sm:$0xf]
        %v760 = vld [vmem:[%s1 + $0x124] sm:$0xf]
        %v761 = vld [vmem:[%s1 + $0x128] sm:$0xf]
        %v762 = vld [vmem:[%s1 + $0x12c] sm:$0xf]
        %v763 = vld [vmem:[%s1 + $0x130] sm:$0xf]
        %v764 = vld [vmem:[%s1 + $0x134] sm:$0xf]
        %v765 = vld [vmem:[%s1 + $0x138] sm:$0xf]
        %v766 = vld [vmem:[%s1 + $0x13c] sm:$0xf]
        %v767 = vld [vmem:[%s1 + $0x140] sm:$0xf]
        %v768 = vld [vmem:[%s1 + $0x144] sm:$0xf]
        %v769 = vld [vmem:[%s1 + $0x148] sm:$0xf]
        %v770 = vld [vmem:[%s1 + $0x14c] sm:$0xf]
        %v771 = vld [vmem:[%s1 + $0x150] sm:$0xf]
        %v772 = vld [vmem:[%s1 + $0x154] sm:$0xf]
        %v773 = vld [vmem:[%s1 + $0x158] sm:$0xf]
        %v774 = vld [vmem:[%s1 + $0x15c] sm:$0xf]
        %v775 = vld [vmem:[%s1 + $0x160] sm:$0xf]
        %v776 = vld [vmem:[%s1 + $0x164] sm:$0xf]
        %v777 = vld [vmem:[%s1 + $0x168] sm:$0xf]
        %v778 = vld [vmem:[%s1 + $0x16c] sm:$0xf]
        %v779 = vld [vmem:[%s1 + $0x170] sm:$0xf]
        %v780 = vld [vmem:[%s1 + $0x174] sm:$0xf]
        %v781 = vld [vmem:[%s1 + $0x178] sm:$0xf]
        %v782 = vld [vmem:[%s1 + $0x17c] sm:$0xf]
        %v783 = vld [vmem:[%s1 + $0x180] sm:$0xf]
        %v784 = vld [vmem:[%s1 + $0x184] sm:$0xf]
        %v785 = vld [vmem:[%s2] sm:$0x1]
        %v787 = vlaneseq
        %v788 = vshrl.u32 %v787, 7
        %v789 = vsub.s32 0, %v788
        %v790 = vrot.slane %v785, %v789
        %v856 = vunpack.c.l.b16 %v623
        %v857 = vunpack.c.h.b16 %v623
        %v858 = vunpack.c.l.b16 %v624
        %v859 = vunpack.c.h.b16 %v624
        %v860 = vunpack.c.l.b16 %v625
        %v861 = vunpack.c.h.b16 %v625
        %v862 = vunpack.c.l.b16 %v626
        %v863 = vunpack.c.l.b16 %v627
        %v864 = vunpack.c.h.b16 %v627
        %v865 = vunpack.c.l.b16 %v628
        %v866 = vunpack.c.h.b16 %v628
        %v867 = vunpack.c.l.b16 %v629
        %v868 = vunpack.c.h.b16 %v629
        %v869 = vunpack.c.l.b16 %v630
        %v870 = vunpack.c.l.b16 %v631
        %v871 = vunpack.c.h.b16 %v631
        %v872 = vunpack.c.l.b16 %v632
        %v873 = vunpack.c.h.b16 %v632
        %v874 = vunpack.c.l.b16 %v633
        %v875 = vunpack.c.h.b16 %v633
        %v876 = vunpack.c.l.b16 %v634
        %v877 = vunpack.c.l.b16 %v635
        %v878 = vunpack.c.h.b16 %v635
        %v879 = vunpack.c.l.b16 %v636
        %v880 = vunpack.c.h.b16 %v636
        %v881 = vunpack.c.l.b16 %v637
        %v882 = vunpack.c.h.b16 %v637
        %v883 = vunpack.c.l.b16 %v638
        %v884 = vunpack.c.l.b16 %v639
        %v885 = vunpack.c.h.b16 %v639
        %v886 = vunpack.c.l.b16 %v640
        %v887 = vunpack.c.h.b16 %v640
        %v888 = vunpack.c.l.b16 %v641
        %v889 = vunpack.c.h.b16 %v641
        %v890 = vunpack.c.l.b16 %v642
        %v891 = vunpack.c.l.b16 %v643
        %v892 = vunpack.c.h.b16 %v643
        %v893 = vunpack.c.l.b16 %v644
        %v894 = vunpack.c.h.b16 %v644
        %v895 = vunpack.c.l.b16 %v645
        %v896 = vunpack.c.h.b16 %v645
        %v897 = vunpack.c.l.b16 %v646
        %v898 = vunpack.c.l.b16 %v647
        %v899 = vunpack.c.h.b16 %v647
        %v900 = vunpack.c.l.b16 %v648
        %v901 = vunpack.c.h.b16 %v648
        %v902 = vunpack.c.l.b16 %v649
        %v903 = vunpack.c.h.b16 %v649
        %v904 = vunpack.c.l.b16 %v650
        %v905 = vunpack.c.l.b16 %v651
        %v906 = vunpack.c.h.b16 %v651
        %v907 = vunpack.c.l.b16 %v652
        %v908 = vunpack.c.h.b16 %v652
        %v909 = vunpack.c.l.b16 %v653
        %v910 = vunpack.c.h.b16 %v653
        %v911 = vunpack.c.l.b16 %v654
        %v912 = vunpack.c.l.b16 %v655
        %v913 = vunpack.c.h.b16 %v655
        %v914 = vunpack.c.l.b16 %v656
        %v915 = vunpack.c.h.b16 %v656
        %v916 = vunpack.c.l.b16 %v657
        %v917 = vunpack.c.h.b16 %v657
        %v918 = vunpack.c.l.b16 %v658
        %v919 = vunpack.c.l.b16 %v659
        %v920 = vunpack.c.h.b16 %v659
        %v921 = vunpack.c.l.b16 %v660
        %v922 = vunpack.c.h.b16 %v660
        %v923 = vunpack.c.l.b16 %v661
        %v924 = vunpack.c.h.b16 %v661
        %v925 = vunpack.c.l.b16 %v662
        %v926 = vunpack.c.l.b16 %v663
        %v927 = vunpack.c.h.b16 %v663
        %v928 = vunpack.c.l.b16 %v664
        %v929 = vunpack.c.h.b16 %v664
        %v930 = vunpack.c.l.b16 %v665
        %v931 = vunpack.c.h.b16 %v665
        %v932 = vunpack.c.l.b16 %v666
        %v933 = vunpack.c.l.b16 %v667
        %v934 = vunpack.c.h.b16 %v667
        %v935 = vunpack.c.l.b16 %v668
        %v936 = vunpack.c.h.b16 %v668
        %v937 = vunpack.c.l.b16 %v669
        %v938 = vunpack.c.h.b16 %v669
        %v939 = vunpack.c.l.b16 %v670
        %v940 = vunpack.c.l.b16 %v671
        %v941 = vunpack.c.h.b16 %v671
        %v942 = vunpack.c.l.b16 %v672
        %v943 = vunpack.c.h.b16 %v672
        %v944 = vunpack.c.l.b16 %v673
        %v945 = vunpack.c.h.b16 %v673
        %v946 = vunpack.c.l.b16 %v674
        %v947 = vunpack.c.l.b16 %v675
        %v948 = vunpack.c.h.b16 %v675
        %v949 = vunpack.c.l.b16 %v676
        %v950 = vunpack.c.h.b16 %v676
        %v951 = vunpack.c.l.b16 %v677
        %v952 = vunpack.c.h.b16 %v677
        %v953 = vunpack.c.l.b16 %v678
        %v954 = vunpack.c.l.b16 %v679
        %v955 = vunpack.c.h.b16 %v679
        %v956 = vunpack.c.l.b16 %v680
        %v957 = vunpack.c.h.b16 %v680
        %v958 = vunpack.c.l.b16 %v681
        %v959 = vunpack.c.h.b16 %v681
        %v960 = vunpack.c.l.b16 %v682
        %v961 = vunpack.c.l.b16 %v683
        %v962 = vunpack.c.h.b16 %v683
        %v963 = vunpack.c.l.b16 %v684
        %v964 = vunpack.c.h.b16 %v684
        %v965 = vunpack.c.l.b16 %v685
        %v966 = vunpack.c.h.b16 %v685
        %v967 = vunpack.c.l.b16 %v686
        %v968 = vpack.c.b16 %v863, %v856
        %v969 = vpack.c.b16 %v864, %v857
        %v970 = vpack.c.b16 %v865, %v858
        %v971 = vpack.c.b16 %v866, %v859
        %v972 = vpack.c.b16 %v867, %v860
        %v973 = vpack.c.b16 %v868, %v861
        %v974 = vpack.c.b16 %v869, %v862
        %v975 = vpack.c.b16 %v877, %v870
        %v976 = vpack.c.b16 %v878, %v871
        %v977 = vpack.c.b16 %v879, %v872
        %v978 = vpack.c.b16 %v880, %v873
        %v979 = vpack.c.b16 %v881, %v874
        %v980 = vpack.c.b16 %v882, %v875
        %v981 = vpack.c.b16 %v883, %v876
        %v982 = vpack.c.b16 %v891, %v884
        %v983 = vpack.c.b16 %v892, %v885
        %v984 = vpack.c.b16 %v893, %v886
        %v985 = vpack.c.b16 %v894, %v887
        %v986 = vpack.c.b16 %v895, %v888
        %v987 = vpack.c.b16 %v896, %v889
        %v988 = vpack.c.b16 %v897, %v890
        %v989 = vpack.c.b16 %v905, %v898
        %v990 = vpack.c.b16 %v906, %v899
        %v991 = vpack.c.b16 %v907, %v900
        %v992 = vpack.c.b16 %v908, %v901
        %v993 = vpack.c.b16 %v909, %v902
        %v994 = vpack.c.b16 %v910, %v903
        %v995 = vpack.c.b16 %v911, %v904
        %v996 = vpack.c.b16 %v919, %v912
        %v997 = vpack.c.b16 %v920, %v913
        %v998 = vpack.c.b16 %v921, %v914
        %v999 = vpack.c.b16 %v922, %v915
        %v1000 = vpack.c.b16 %v923, %v916
        %v1001 = vpack.c.b16 %v924, %v917
        %v1002 = vpack.c.b16 %v925, %v918
        %v1003 = vpack.c.b16 %v933, %v926
        %v1004 = vpack.c.b16 %v934, %v927
        %v1005 = vpack.c.b16 %v935, %v928
        %v1006 = vpack.c.b16 %v936, %v929
        %v1007 = vpack.c.b16 %v937, %v930
        %v1008 = vpack.c.b16 %v938, %v931
        %v1009 = vpack.c.b16 %v939, %v932
        %v1010 = vpack.c.b16 %v947, %v940
        %v1011 = vpack.c.b16 %v948, %v941
        %v1012 = vpack.c.b16 %v949, %v942
        %v1013 = vpack.c.b16 %v950, %v943
        %v1014 = vpack.c.b16 %v951, %v944
        %v1015 = vpack.c.b16 %v952, %v945
        %v1016 = vpack.c.b16 %v953, %v946
        %v1017 = vpack.c.b16 %v961, %v954
        %v1018 = vpack.c.b16 %v962, %v955
        %v1019 = vpack.c.b16 %v963, %v956
        %v1020 = vpack.c.b16 %v964, %v957
        %v1021 = vpack.c.b16 %v965, %v958
        %v1022 = vpack.c.b16 %v966, %v959
        %v1023 = vpack.c.b16 %v967, %v960
        %v1170 = vunpack.c.l.b16 %v687
        %v1171 = vunpack.c.l.b16 %v688
        %v1172 = vunpack.c.l.b16 %v689
        %v1173 = vunpack.c.l.b16 %v690
        %v1174 = vunpack.c.l.b16 %v691
        %v1175 = vunpack.c.l.b16 %v692
        %v1176 = vunpack.c.l.b16 %v693
        %v1177 = vunpack.c.l.b16 %v694
        %v1178 = vunpack.c.l.b16 %v695
        %v1179 = vunpack.c.l.b16 %v696
        %v1180 = vunpack.c.l.b16 %v697
        %v1181 = vunpack.c.l.b16 %v698
        %v1182 = vunpack.c.l.b16 %v699
        %v1183 = vunpack.c.l.b16 %v700
        %v1184 = vunpack.c.l.b16 %v701
        %v1185 = vunpack.c.l.b16 %v702
        %v1186 = vunpack.c.l.b16 %v703
        %v1187 = vunpack.c.l.b16 %v704
        %v1188 = vunpack.c.l.b16 %v705
        %v1189 = vunpack.c.l.b16 %v706
        %v1190 = vunpack.c.l.b16 %v707
        %v1191 = vunpack.c.l.b16 %v708
        %v1192 = vunpack.c.l.b16 %v709
        %v1193 = vunpack.c.l.b16 %v710
        %v1194 = vunpack.c.l.b16 %v711
        %v1195 = vunpack.c.l.b16 %v712
        %v1196 = vunpack.c.l.b16 %v713
        %v1197 = vunpack.c.l.b16 %v714
        %v1198 = vunpack.c.l.b16 %v715
        %v1199 = vunpack.c.l.b16 %v716
        %v1200 = vunpack.c.l.b16 %v717
        %v1201 = vunpack.c.l.b16 %v718
        %v1202 = vunpack.c.l.b16 %v719
        %v1203 = vunpack.c.l.b16 %v720
        %v1204 = vunpack.c.l.b16 %v721
        %v1205 = vunpack.c.l.b16 %v722
        %v1206 = vunpack.c.l.b16 %v723
        %v1207 = vunpack.c.l.b16 %v724
        %v1208 = vunpack.c.l.b16 %v725
        %v1209 = vunpack.c.l.b16 %v726
        %v1210 = vunpack.c.l.b16 %v727
        %v1211 = vunpack.c.l.b16 %v728
        %v1212 = vunpack.c.l.b16 %v729
        %v1213 = vunpack.c.l.b16 %v730
        %v1214 = vunpack.c.l.b16 %v731
        %v1215 = vunpack.c.l.b16 %v732
        %v1216 = vunpack.c.l.b16 %v733
        %v1217 = vunpack.c.l.b16 %v734
        %v1218 = vunpack.c.l.b16 %v735
        %v1219 = vunpack.c.l.b16 %v736
        %v1220 = vunpack.c.l.b16 %v737
        %v1221 = vunpack.c.l.b16 %v738
        %v1222 = vunpack.c.l.b16 %v739
        %v1223 = vunpack.c.l.b16 %v740
        %v1224 = vunpack.c.l.b16 %v741
        %v1225 = vunpack.c.l.b16 %v742
        %v1226 = vunpack.c.l.b16 %v743
        %v1227 = vunpack.c.l.b16 %v744
        %v1228 = vunpack.c.l.b16 %v745
        %v1229 = vunpack.c.l.b16 %v746
        %v1230 = vunpack.c.l.b16 %v747
        %v1231 = vunpack.c.l.b16 %v748
        %v1232 = vunpack.c.l.b16 %v749
        %v1233 = vunpack.c.l.b16 %v750
        %v1234 = vunpack.c.l.b16 %v751
        %v1235 = vunpack.c.l.b16 %v752
        %v1236 = vunpack.c.l.b16 %v753
        %v1237 = vunpack.c.l.b16 %v754
        %v1238 = vunpack.c.l.b16 %v755
        %v1239 = vunpack.c.l.b16 %v756
        %v1240 = vunpack.c.l.b16 %v757
        %v1241 = vunpack.c.l.b16 %v758
        %v1242 = vunpack.c.l.b16 %v759
        %v1243 = vunpack.c.l.b16 %v760
        %v1244 = vunpack.c.l.b16 %v761
        %v1245 = vunpack.c.l.b16 %v762
        %v1246 = vunpack.c.l.b16 %v763
        %v1247 = vunpack.c.l.b16 %v764
        %v1248 = vunpack.c.l.b16 %v765
        %v1249 = vunpack.c.l.b16 %v766
        %v1250 = vunpack.c.l.b16 %v767
        %v1251 = vunpack.c.l.b16 %v768
        %v1252 = vunpack.c.l.b16 %v769
        %v1253 = vunpack.c.l.b16 %v770
        %v1254 = vunpack.c.l.b16 %v771
        %v1255 = vunpack.c.l.b16 %v772
        %v1256 = vunpack.c.l.b16 %v773
        %v1257 = vunpack.c.l.b16 %v774
        %v1258 = vunpack.c.l.b16 %v775
        %v1259 = vunpack.c.l.b16 %v776
        %v1260 = vunpack.c.l.b16 %v777
        %v1261 = vunpack.c.l.b16 %v778
        %v1262 = vunpack.c.l.b16 %v779
        %v1263 = vunpack.c.l.b16 %v780
        %v1264 = vunpack.c.l.b16 %v781
        %v1265 = vunpack.c.l.b16 %v782
        %v1266 = vunpack.c.l.b16 %v783
        %v1267 = vunpack.c.l.b16 %v784
        %v1268 = vpack.c.b16 %v1171, %v1170
        %v1269 = vpack.c.b16 %v1173, %v1172
        %v1270 = vpack.c.b16 %v1175, %v1174
        %v1271 = vpack.c.b16 %v1177, %v1176
        %v1272 = vpack.c.b16 %v1179, %v1178
        %v1273 = vpack.c.b16 %v1181, %v1180
        %v1274 = vpack.c.b16 %v1183, %v1182
        %v1275 = vpack.c.b16 %v1185, %v1184
        %v1276 = vpack.c.b16 %v1187, %v1186
        %v1277 = vpack.c.b16 %v1189, %v1188
        %v1278 = vpack.c.b16 %v1191, %v1190
        %v1279 = vpack.c.b16 %v1193, %v1192
        %v1280 = vpack.c.b16 %v1195, %v1194
        %v1281 = vpack.c.b16 %v1197, %v1196
        %v1282 = vpack.c.b16 %v1199, %v1198
        %v1283 = vpack.c.b16 %v1201, %v1200
        %v1284 = vpack.c.b16 %v1203, %v1202
        %v1285 = vpack.c.b16 %v1205, %v1204
        %v1286 = vpack.c.b16 %v1207, %v1206
        %v1287 = vpack.c.b16 %v1209, %v1208
        %v1288 = vpack.c.b16 %v1211, %v1210
        %v1289 = vpack.c.b16 %v1213, %v1212
        %v1290 = vpack.c.b16 %v1215, %v1214
        %v1291 = vpack.c.b16 %v1217, %v1216
        %v1292 = vpack.c.b16 %v1219, %v1218
        %v1293 = vpack.c.b16 %v1221, %v1220
        %v1294 = vpack.c.b16 %v1223, %v1222
        %v1295 = vpack.c.b16 %v1225, %v1224
        %v1296 = vpack.c.b16 %v1227, %v1226
        %v1297 = vpack.c.b16 %v1229, %v1228
        %v1298 = vpack.c.b16 %v1231, %v1230
        %v1299 = vpack.c.b16 %v1233, %v1232
        %v1300 = vpack.c.b16 %v1235, %v1234
        %v1301 = vpack.c.b16 %v1237, %v1236
        %v1302 = vpack.c.b16 %v1239, %v1238
        %v1303 = vpack.c.b16 %v1241, %v1240
        %v1304 = vpack.c.b16 %v1243, %v1242
        %v1305 = vpack.c.b16 %v1245, %v1244
        %v1306 = vpack.c.b16 %v1247, %v1246
        %v1307 = vpack.c.b16 %v1249, %v1248
        %v1308 = vpack.c.b16 %v1251, %v1250
        %v1309 = vpack.c.b16 %v1253, %v1252
        %v1310 = vpack.c.b16 %v1255, %v1254
        %v1311 = vpack.c.b16 %v1257, %v1256
        %v1312 = vpack.c.b16 %v1259, %v1258
        %v1313 = vpack.c.b16 %v1261, %v1260
        %v1314 = vpack.c.b16 %v1263, %v1262
        %v1315 = vpack.c.b16 %v1265, %v1264
        %v1316 = vpack.c.b16 %v1267, %v1266
        %vm1366 = vcmask 130048
        %v1368 = vsel %vm1366, %v974, 0
        %v1371 = vsel %vm1366, %v981, 0
        %v1374 = vsel %vm1366, %v988, 0
        %v1377 = vsel %vm1366, %v995, 0
        %v1380 = vsel %vm1366, %v1002, 0
        %v1383 = vsel %vm1366, %v1009, 0
        %v1386 = vsel %vm1366, %v1016, 0
        %v1389 = vsel %vm1366, %v1023, 0
        %1391 = vmatprep.subr.bf16.mxu0 0
        %1392 = vmatpush1.bf16.msra.mxu0 %v1268
        %1393 = vmatprep.subr.bf16.mxu0 0
        %1394 = vmatpush1.bf16.msra.mxu0 %v1269
        %1395 = vmatprep.subr.bf16.mxu0 0
        %1396 = vmatpush1.bf16.msra.mxu0 %v1270
        %1397 = vmatprep.subr.bf16.mxu0 0
        %1398 = vmatpush1.bf16.msra.mxu0 %v1271
        %1399 = vmatprep.subr.bf16.mxu0 0
        %1400 = vmatpush1.bf16.msra.mxu0 %v1272
        %1401 = vmatprep.subr.bf16.mxu0 0
        %1402 = vmatpush1.bf16.msra.mxu0 %v1273
        %1403 = vmatprep.subr.bf16.mxu0 0
        %1404 = vmatpush1.bf16.msra.mxu0 %v1274
        %1405 = vmatprep.subr.bf16.mxu0 0
        %1406 = vmatpush1.bf16.msra.mxu0 %v1275
        %1407 = vmatprep.subr.bf16.mxu0 0
        %1408 = vmatpush1.bf16.msra.mxu0 %v1276
        %1409 = vmatprep.subr.bf16.mxu0 0
        %1410 = vmatpush1.bf16.msra.mxu0 %v1277
        %1411 = vmatprep.subr.bf16.mxu0 0
        %1412 = vmatpush1.bf16.msra.mxu0 %v1278
        %1413 = vmatprep.subr.bf16.mxu0 0
        %1414 = vmatpush1.bf16.msra.mxu0 %v1279
        %1415 = vmatprep.subr.bf16.mxu0 0
        %1416 = vmatpush1.bf16.msra.mxu0 %v1280
        %1417 = vmatprep.subr.bf16.mxu0 0
        %1418 = vmatpush1.bf16.msra.mxu0 %v1281
        %1419 = vmatprep.subr.bf16.mxu0 0
        %1420 = vmatpush1.bf16.msra.mxu0 %v1282
        %1421 = vmatprep.subr.bf16.mxu0 0
        %1422 = vmatpush1.bf16.msra.mxu0 %v1283
        %1423 = vmatprep.mubr.bf16.mxu0 %v969
        %1424 = vmatmul.mubr.bf16.gmra.mrb[0].mxu0 %v968
        %v1425 = vpop.f32.mrb[0].mxu0
        %v1426 = vadd.f32 %v790, %v1425
        %v1427 = vpop.f32.mrb[0].mxu0
        %v1428 = vpop.f32.mrb[0].mxu0
        %v1429 = vadd.f32 %v790, %v1428
        %v1430 = vpop.f32.mrb[0].mxu0
        %1431 = vmatprep.mubr.bf16.mxu0 %v976
        %1432 = vmatmul.mubr.bf16.gmra.mrb[0].mxu0 %v975
        %v1433 = vpop.f32.mrb[0].mxu0
        %v1434 = vadd.f32 %v790, %v1433
        %v1435 = vpop.f32.mrb[0].mxu0
        %v1436 = vpop.f32.mrb[0].mxu0
        %v1437 = vadd.f32 %v790, %v1436
        %v1438 = vpop.f32.mrb[0].mxu0
        %1439 = vmatprep.mubr.bf16.mxu0 %v983
        %1440 = vmatmul.mubr.bf16.gmra.mrb[0].mxu0 %v982
        %v1441 = vpop.f32.mrb[0].mxu0
        %v1442 = vadd.f32 %v790, %v1441
        %v1443 = vpop.f32.mrb[0].mxu0
        %v1444 = vpop.f32.mrb[0].mxu0
        %v1445 = vadd.f32 %v790, %v1444
        %v1446 = vpop.f32.mrb[0].mxu0
        %1447 = vmatprep.mubr.bf16.mxu0 %v990
        %1448 = vmatmul.mubr.bf16.gmra.mrb[0].mxu0 %v989
        %v1449 = vpop.f32.mrb[0].mxu0
        %v1450 = vadd.f32 %v790, %v1449
        %v1451 = vpop.f32.mrb[0].mxu0
        %v1452 = vpop.f32.mrb[0].mxu0
        %v1453 = vadd.f32 %v790, %v1452
        %v1454 = vpop.f32.mrb[0].mxu0
        %1455 = vmatprep.mubr.bf16.mxu0 %v997
        %1456 = vmatmul.mubr.bf16.gmra.mrb[0].mxu0 %v996
        %v1457 = vpop.f32.mrb[0].mxu0
        %v1458 = vadd.f32 %v790, %v1457
        %v1459 = vpop.f32.mrb[0].mxu0
        %v1460 = vpop.f32.mrb[0].mxu0
        %v1461 = vadd.f32 %v790, %v1460
        %v1462 = vpop.f32.mrb[0].mxu0
        %1463 = vmatprep.mubr.bf16.mxu0 %v1004
        %1464 = vmatmul.mubr.bf16.gmra.mrb[0].mxu0 %v1003
        %v1465 = vpop.f32.mrb[0].mxu0
        %v1466 = vadd.f32 %v790, %v1465
        %v1467 = vpop.f32.mrb[0].mxu0
        %v1468 = vpop.f32.mrb[0].mxu0
        %v1469 = vadd.f32 %v790, %v1468
        %v1470 = vpop.f32.mrb[0].mxu0
        %1471 = vmatprep.mubr.bf16.mxu0 %v1011
        %1472 = vmatmul.mubr.bf16.gmra.mrb[0].mxu0 %v1010
        %v1473 = vpop.f32.mrb[0].mxu0
        %v1474 = vadd.f32 %v790, %v1473
        %v1475 = vpop.f32.mrb[0].mxu0
        %v1476 = vpop.f32.mrb[0].mxu0
        %v1477 = vadd.f32 %v790, %v1476
        %v1478 = vpop.f32.mrb[0].mxu0
        %1479 = vmatprep.mubr.bf16.mxu0 %v1018
        %1480 = vmatmul.mubr.bf16.gmra.mrb[0].mxu0 %v1017
        %v1481 = vpop.f32.mrb[0].mxu0
        %v1482 = vadd.f32 %v790, %v1481
        %v1483 = vpop.f32.mrb[0].mxu0
        %v1484 = vpop.f32.mrb[0].mxu0
        %v1485 = vadd.f32 %v790, %v1484
        %v1486 = vpop.f32.mrb[0].mxu0
        %1487 = vdwg.mxu0
        %1488 = vmatprep.subr.bf16.mxu0 0
        %1489 = vmatpush1.bf16.msra.mxu0 %v1284
        %1490 = vmatprep.subr.bf16.mxu0 0
        %1491 = vmatpush1.bf16.msra.mxu0 %v1285
        %1492 = vmatprep.subr.bf16.mxu0 0
        %1493 = vmatpush1.bf16.msra.mxu0 %v1286
        %1494 = vmatprep.subr.bf16.mxu0 0
        %1495 = vmatpush1.bf16.msra.mxu0 %v1287
        %1496 = vmatprep.subr.bf16.mxu0 0
        %1497 = vmatpush1.bf16.msra.mxu0 %v1288
        %1498 = vmatprep.subr.bf16.mxu0 0
        %1499 = vmatpush1.bf16.msra.mxu0 %v1289
        %1500 = vmatprep.subr.bf16.mxu0 0
        %1501 = vmatpush1.bf16.msra.mxu0 %v1290
        %1502 = vmatprep.subr.bf16.mxu0 0
        %1503 = vmatpush1.bf16.msra.mxu0 %v1291
        %1504 = vmatprep.subr.bf16.mxu0 0
        %1505 = vmatpush1.bf16.msra.mxu0 %v1292
        %1506 = vmatprep.subr.bf16.mxu0 0
        %1507 = vmatpush1.bf16.msra.mxu0 %v1293
        %1508 = vmatprep.subr.bf16.mxu0 0
        %1509 = vmatpush1.bf16.msra.mxu0 %v1294
        %1510 = vmatprep.subr.bf16.mxu0 0
        %1511 = vmatpush1.bf16.msra.mxu0 %v1295
        %1512 = vmatprep.subr.bf16.mxu0 0
        %1513 = vmatpush1.bf16.msra.mxu0 %v1296
        %1514 = vmatprep.subr.bf16.mxu0 0
        %1515 = vmatpush1.bf16.msra.mxu0 %v1297
        %1516 = vmatprep.subr.bf16.mxu0 0
        %1517 = vmatpush1.bf16.msra.mxu0 %v1298
        %1518 = vmatprep.subr.bf16.mxu0 0
        %1519 = vmatpush1.bf16.msra.mxu0 %v1299
        %1520 = vmatprep.mubr.bf16.mxu0 %v971
        %1521 = vmatmul.mubr.bf16.gmra.mrb[0].mxu0 %v970
        %v1522 = vpop.f32.mrb[0].mxu0
        %v1523 = vadd.f32 %v1426, %v1522
        %v1524 = vpop.f32.mrb[0].mxu0
        %v1525 = vpop.f32.mrb[0].mxu0
        %v1526 = vadd.f32 %v1429, %v1525
        %v1527 = vpop.f32.mrb[0].mxu0
        %1528 = vmatprep.mubr.bf16.mxu0 %v978
        %1529 = vmatmul.mubr.bf16.gmra.mrb[0].mxu0 %v977
        %v1530 = vpop.f32.mrb[0].mxu0
        %v1531 = vadd.f32 %v1434, %v1530
        %v1532 = vpop.f32.mrb[0].mxu0
        %v1533 = vpop.f32.mrb[0].mxu0
        %v1534 = vadd.f32 %v1437, %v1533
        %v1535 = vpop.f32.mrb[0].mxu0
        %1536 = vmatprep.mubr.bf16.mxu0 %v985
        %1537 = vmatmul.mubr.bf16.gmra.mrb[0].mxu0 %v984
        %v1538 = vpop.f32.mrb[0].mxu0
        %v1539 = vadd.f32 %v1442, %v1538
        %v1540 = vpop.f32.mrb[0].mxu0
        %v1541 = vpop.f32.mrb[0].mxu0
        %v1542 = vadd.f32 %v1445, %v1541
        %v1543 = vpop.f32.mrb[0].mxu0
        %1544 = vmatprep.mubr.bf16.mxu0 %v992
        %1545 = vmatmul.mubr.bf16.gmra.mrb[0].mxu0 %v991
        %v1546 = vpop.f32.mrb[0].mxu0
        %v1547 = vadd.f32 %v1450, %v1546
        %v1548 = vpop.f32.mrb[0].mxu0
        %v1549 = vpop.f32.mrb[0].mxu0
        %v1550 = vadd.f32 %v1453, %v1549
        %v1551 = vpop.f32.mrb[0].mxu0
        %1552 = vmatprep.mubr.bf16.mxu0 %v999
        %1553 = vmatmul.mubr.bf16.gmra.mrb[0].mxu0 %v998
        %v1554 = vpop.f32.mrb[0].mxu0
        %v1555 = vadd.f32 %v1458, %v1554
        %v1556 = vpop.f32.mrb[0].mxu0
        %v1557 = vpop.f32.mrb[0].mxu0
        %v1558 = vadd.f32 %v1461, %v1557
        %v1559 = vpop.f32.mrb[0].mxu0
        %1560 = vmatprep.mubr.bf16.mxu0 %v1006
        %1561 = vmatmul.mubr.bf16.gmra.mrb[0].mxu0 %v1005
        %v1562 = vpop.f32.mrb[0].mxu0
        %v1563 = vadd.f32 %v1466, %v1562
        %v1564 = vpop.f32.mrb[0].mxu0
        %v1565 = vpop.f32.mrb[0].mxu0
        %v1566 = vadd.f32 %v1469, %v1565
        %v1567 = vpop.f32.mrb[0].mxu0
        %1568 = vmatprep.mubr.bf16.mxu0 %v1013
        %1569 = vmatmul.mubr.bf16.gmra.mrb[0].mxu0 %v1012
        %v1570 = vpop.f32.mrb[0].mxu0
        %v1571 = vadd.f32 %v1474, %v1570
        %v1572 = vpop.f32.mrb[0].mxu0
        %v1573 = vpop.f32.mrb[0].mxu0
        %v1574 = vadd.f32 %v1477, %v1573
        %v1575 = vpop.f32.mrb[0].mxu0
        %1576 = vmatprep.mubr.bf16.mxu0 %v1020
        %1577 = vmatmul.mubr.bf16.gmra.mrb[0].mxu0 %v1019
        %v1578 = vpop.f32.mrb[0].mxu0
        %v1579 = vadd.f32 %v1482, %v1578
        %v1580 = vpop.f32.mrb[0].mxu0
        %v1581 = vpop.f32.mrb[0].mxu0
        %v1582 = vadd.f32 %v1485, %v1581
        %v1583 = vpop.f32.mrb[0].mxu0
        %1584 = vdwg.mxu0
        %1585 = vmatprep.subr.bf16.mxu0 0
        %1586 = vmatpush1.bf16.msra.mxu0 %v1300
        %1587 = vmatprep.subr.bf16.mxu0 0
        %1588 = vmatpush1.bf16.msra.mxu0 %v1301
        %1589 = vmatprep.subr.bf16.mxu0 0
        %1590 = vmatpush1.bf16.msra.mxu0 %v1302
        %1591 = vmatprep.subr.bf16.mxu0 0
        %1592 = vmatpush1.bf16.msra.mxu0 %v1303
        %1593 = vmatprep.subr.bf16.mxu0 0
        %1594 = vmatpush1.bf16.msra.mxu0 %v1304
        %1595 = vmatprep.subr.bf16.mxu0 0
        %1596 = vmatpush1.bf16.msra.mxu0 %v1305
        %1597 = vmatprep.subr.bf16.mxu0 0
        %1598 = vmatpush1.bf16.msra.mxu0 %v1306
        %1599 = vmatprep.subr.bf16.mxu0 0
        %1600 = vmatpush1.bf16.msra.mxu0 %v1307
        %1601 = vmatprep.subr.bf16.mxu0 0
        %1602 = vmatpush1.bf16.msra.mxu0 %v1308
        %1603 = vmatprep.subr.bf16.mxu0 0
        %1604 = vmatpush1.bf16.msra.mxu0 %v1309
        %1605 = vmatprep.subr.bf16.mxu0 0
        %1606 = vmatpush1.bf16.msra.mxu0 %v1310
        %1607 = vmatprep.subr.bf16.mxu0 0
        %1608 = vmatpush1.bf16.msra.mxu0 %v1311
        %1609 = vmatprep.subr.bf16.mxu0 0
        %1610 = vmatpush1.bf16.msra.mxu0 %v1312
        %1611 = vmatprep.subr.bf16.mxu0 0
        %1612 = vmatpush1.bf16.msra.mxu0 %v1313
        %1613 = vmatprep.subr.bf16.mxu0 0
        %1614 = vmatpush1.bf16.msra.mxu0 %v1314
        %1615 = vmatprep.subr.bf16.mxu0 0
        %1616 = vmatpush1.bf16.msra.mxu0 %v1315
        %1617 = vmatprep.mubr.bf16.mxu0 %v973
        %1618 = vmatmul.mubr.bf16.gmra.mrb[0].mxu0 %v972
        %v1619 = vpop.f32.mrb[0].mxu0
        %v1620 = vadd.f32 %v1523, %v1619
        %v1621 = vpop.f32.mrb[0].mxu0
        %v1622 = vpop.f32.mrb[0].mxu0
        %v1623 = vadd.f32 %v1526, %v1622
        %v1624 = vpop.f32.mrb[0].mxu0
        %1625 = vmatprep.mubr.bf16.mxu0 %v980
        %1626 = vmatmul.mubr.bf16.gmra.mrb[0].mxu0 %v979
        %v1627 = vpop.f32.mrb[0].mxu0
        %v1628 = vadd.f32 %v1531, %v1627
        %v1629 = vpop.f32.mrb[0].mxu0
        %v1630 = vpop.f32.mrb[0].mxu0
        %v1631 = vadd.f32 %v1534, %v1630
        %v1632 = vpop.f32.mrb[0].mxu0
        %1633 = vmatprep.mubr.bf16.mxu0 %v987
        %1634 = vmatmul.mubr.bf16.gmra.mrb[0].mxu0 %v986
        %v1635 = vpop.f32.mrb[0].mxu0
        %v1636 = vadd.f32 %v1539, %v1635
        %v1637 = vpop.f32.mrb[0].mxu0
        %v1638 = vpop.f32.mrb[0].mxu0
        %v1639 = vadd.f32 %v1542, %v1638
        %v1640 = vpop.f32.mrb[0].mxu0
        %1641 = vmatprep.mubr.bf16.mxu0 %v994
        %1642 = vmatmul.mubr.bf16.gmra.mrb[0].mxu0 %v993
        %v1643 = vpop.f32.mrb[0].mxu0
        %v1644 = vadd.f32 %v1547, %v1643
        %v1645 = vpop.f32.mrb[0].mxu0
        %v1646 = vpop.f32.mrb[0].mxu0
        %v1647 = vadd.f32 %v1550, %v1646
        %v1648 = vpop.f32.mrb[0].mxu0
        %1649 = vmatprep.mubr.bf16.mxu0 %v1001
        %1650 = vmatmul.mubr.bf16.gmra.mrb[0].mxu0 %v1000
        %v1651 = vpop.f32.mrb[0].mxu0
        %v1652 = vadd.f32 %v1555, %v1651
        %v1653 = vpop.f32.mrb[0].mxu0
        %v1654 = vpop.f32.mrb[0].mxu0
        %v1655 = vadd.f32 %v1558, %v1654
        %v1656 = vpop.f32.mrb[0].mxu0
        %1657 = vmatprep.mubr.bf16.mxu0 %v1008
        %1658 = vmatmul.mubr.bf16.gmra.mrb[0].mxu0 %v1007
        %v1659 = vpop.f32.mrb[0].mxu0
        %v1660 = vadd.f32 %v1563, %v1659
        %v1661 = vpop.f32.mrb[0].mxu0
        %v1662 = vpop.f32.mrb[0].mxu0
        %v1663 = vadd.f32 %v1566, %v1662
        %v1664 = vpop.f32.mrb[0].mxu0
        %1665 = vmatprep.mubr.bf16.mxu0 %v1015
        %1666 = vmatmul.mubr.bf16.gmra.mrb[0].mxu0 %v1014
        %v1667 = vpop.f32.mrb[0].mxu0
        %v1668 = vadd.f32 %v1571, %v1667
        %v1669 = vpop.f32.mrb[0].mxu0
        %v1670 = vpop.f32.mrb[0].mxu0
        %v1671 = vadd.f32 %v1574, %v1670
        %v1672 = vpop.f32.mrb[0].mxu0
        %1673 = vmatprep.mubr.bf16.mxu0 %v1022
        %1674 = vmatmul.mubr.bf16.gmra.mrb[0].mxu0 %v1021
        %v1675 = vpop.f32.mrb[0].mxu0
        %v1676 = vadd.f32 %v1579, %v1675
        %v1677 = vpop.f32.mrb[0].mxu0
        %v1678 = vpop.f32.mrb[0].mxu0
        %v1679 = vadd.f32 %v1582, %v1678
        %v1680 = vpop.f32.mrb[0].mxu0
        %1681 = vdwg.mxu0
        %1682 = vmatprep.subr.bf16.mxu0 0
        %1683 = vmatpush1.bf16.msra.mxu0 %v1316
        %1684 = vmatprep.subr.bf16.mxu0 0
        %1685 = vmatpush1.bf16.msra.mxu0 0
        %1686 = vmatprep.subr.bf16.mxu0 0
        %1687 = vmatpush1.bf16.msra.mxu0 0
        %1688 = vmatprep.subr.bf16.mxu0 0
        %1689 = vmatpush1.bf16.msra.mxu0 0
        %1690 = vmatprep.subr.bf16.mxu0 0
        %1691 = vmatpush1.bf16.msra.mxu0 0
        %1692 = vmatprep.subr.bf16.mxu0 0
        %1693 = vmatpush1.bf16.msra.mxu0 0
        %1694 = vmatprep.subr.bf16.mxu0 0
        %1695 = vmatpush1.bf16.msra.mxu0 0
        %1696 = vmatprep.subr.bf16.mxu0 0
        %1697 = vmatpush1.bf16.msra.mxu0 0
        %1698 = vmatprep.subr.bf16.mxu0 0
        %1699 = vmatpush1.bf16.msra.mxu0 0
        %1700 = vmatprep.subr.bf16.mxu0 0
        %1701 = vmatpush1.bf16.msra.mxu0 0
        %1702 = vmatprep.subr.bf16.mxu0 0
        %1703 = vmatpush1.bf16.msra.mxu0 0
        %1704 = vmatprep.subr.bf16.mxu0 0
        %1705 = vmatpush1.bf16.msra.mxu0 0
        %1706 = vmatprep.subr.bf16.mxu0 0
        %1707 = vmatpush1.bf16.msra.mxu0 0
        %1708 = vmatprep.subr.bf16.mxu0 0
        %1709 = vmatpush1.bf16.msra.mxu0 0
        %1710 = vmatprep.subr.bf16.mxu0 0
        %1711 = vmatpush1.bf16.msra.mxu0 0
        %1712 = vmatprep.subr.bf16.mxu0 0
        %1713 = vmatpush1.bf16.msra.mxu0 0
        %1714 = vmatprep.mubr.bf16.mxu0 0
        %1715 = vmatmul.mubr.bf16.gmra.mrb[0].mxu0 %v1368
        %v1716 = vpop.f32.mrb[0].mxu0
        %v1717 = vadd.f32 %v1620, %v1716
        %v1718 = vpop.f32.mrb[0].mxu0
        %v1719 = vpop.f32.mrb[0].mxu0
        %v1720 = vadd.f32 %v1623, %v1719
        %v1721 = vpop.f32.mrb[0].mxu0
        %1722 = vmatprep.mubr.bf16.mxu0 0
        %1723 = vmatmul.mubr.bf16.gmra.mrb[0].mxu0 %v1371
        %v1724 = vpop.f32.mrb[0].mxu0
        %v1725 = vadd.f32 %v1628, %v1724
        %v1726 = vpop.f32.mrb[0].mxu0
        %v1727 = vpop.f32.mrb[0].mxu0
        %v1728 = vadd.f32 %v1631, %v1727
        %v1729 = vpop.f32.mrb[0].mxu0
        %1730 = vmatprep.mubr.bf16.mxu0 0
        %1731 = vmatmul.mubr.bf16.gmra.mrb[0].mxu0 %v1374
        %v1732 = vpop.f32.mrb[0].mxu0
        %v1733 = vadd.f32 %v1636, %v1732
        %v1734 = vpop.f32.mrb[0].mxu0
        %v1735 = vpop.f32.mrb[0].mxu0
        %v1736 = vadd.f32 %v1639, %v1735
        %v1737 = vpop.f32.mrb[0].mxu0
        %1738 = vmatprep.mubr.bf16.mxu0 0
        %1739 = vmatmul.mubr.bf16.gmra.mrb[0].mxu0 %v1377
        %v1740 = vpop.f32.mrb[0].mxu0
        %v1741 = vadd.f32 %v1644, %v1740
        %v1742 = vpop.f32.mrb[0].mxu0
        %v1743 = vpop.f32.mrb[0].mxu0
        %v1744 = vadd.f32 %v1647, %v1743
        %v1745 = vpop.f32.mrb[0].mxu0
        %1746 = vmatprep.mubr.bf16.mxu0 0
        %1747 = vmatmul.mubr.bf16.gmra.mrb[0].mxu0 %v1380
        %v1748 = vpop.f32.mrb[0].mxu0
        %v1749 = vadd.f32 %v1652, %v1748
        %v1750 = vpop.f32.mrb[0].mxu0
        %v1751 = vpop.f32.mrb[0].mxu0
        %v1752 = vadd.f32 %v1655, %v1751
        %v1753 = vpop.f32.mrb[0].mxu0
        %1754 = vmatprep.mubr.bf16.mxu0 0
        %1755 = vmatmul.mubr.bf16.gmra.mrb[0].mxu0 %v1383
        %v1756 = vpop.f32.mrb[0].mxu0
        %v1757 = vadd.f32 %v1660, %v1756
        %v1758 = vpop.f32.mrb[0].mxu0
        %v1759 = vpop.f32.mrb[0].mxu0
        %v1760 = vadd.f32 %v1663, %v1759
        %v1761 = vpop.f32.mrb[0].mxu0
        %1762 = vmatprep.mubr.bf16.mxu0 0
        %1763 = vmatmul.mubr.bf16.gmra.mrb[0].mxu0 %v1386
        %v1764 = vpop.f32.mrb[0].mxu0
        %v1765 = vadd.f32 %v1668, %v1764
        %v1766 = vpop.f32.mrb[0].mxu0
        %v1767 = vpop.f32.mrb[0].mxu0
        %v1768 = vadd.f32 %v1671, %v1767
        %v1769 = vpop.f32.mrb[0].mxu0
        %1770 = vmatprep.mubr.bf16.mxu0 0
        %1771 = vmatmul.mubr.bf16.gmra.mrb[0].mxu0 %v1389
        %v1772 = vpop.f32.mrb[0].mxu0
        %v1773 = vadd.f32 %v1676, %v1772
        %v1774 = vpop.f32.mrb[0].mxu0
        %v1775 = vpop.f32.mrb[0].mxu0
        %v1776 = vadd.f32 %v1679, %v1775
        %v1777 = vpop.f32.mrb[0].mxu0
        %1778 = vdwg.mxu0
        %v1779 = vmax.f32 %v1717, 0.0
        %v1780 = vmax.f32 %v1720, 0.0
        %v1781 = vmax.f32 %v1725, 0.0
        %v1782 = vmax.f32 %v1728, 0.0
        %v1783 = vmax.f32 %v1733, 0.0
        %v1784 = vmax.f32 %v1736, 0.0
        %v1785 = vmax.f32 %v1741, 0.0
        %v1786 = vmax.f32 %v1744, 0.0
        %v1787 = vmax.f32 %v1749, 0.0
        %v1788 = vmax.f32 %v1752, 0.0
        %v1789 = vmax.f32 %v1757, 0.0
        %v1790 = vmax.f32 %v1760, 0.0
        %v1791 = vmax.f32 %v1765, 0.0
        %v1792 = vmax.f32 %v1768, 0.0
        %v1793 = vmax.f32 %v1773, 0.0
        %v1794 = vmax.f32 %v1776, 0.0
        %v1795 = vpack.c.bf16 %v1780, %v1779
        %v1796 = vpack.c.bf16 %v1782, %v1781
        %v1797 = vpack.c.bf16 %v1784, %v1783
        %v1798 = vpack.c.bf16 %v1786, %v1785
        %v1799 = vpack.c.bf16 %v1788, %v1787
        %v1800 = vpack.c.bf16 %v1790, %v1789
        %v1801 = vpack.c.bf16 %v1792, %v1791
        %v1802 = vpack.c.bf16 %v1794, %v1793
        %v1803 = vld [vmem:[%s3] sm:$0xf]
        %v1804 = vld [vmem:[%s3 + $0x4] sm:$0xf]
        %v1805 = vld [vmem:[%s3 + $0x8] sm:$0xf]
        %v1806 = vld [vmem:[%s3 + $0xc] sm:$0xf]
        %v1807 = vld [vmem:[%s3 + $0x10] sm:$0xf]
        %v1808 = vld [vmem:[%s3 + $0x14] sm:$0xf]
        %v1809 = vld [vmem:[%s3 + $0x18] sm:$0xf]
        %v1810 = vld [vmem:[%s3 + $0x1c] sm:$0xf]
        %v1811 = vld [vmem:[%s3 + $0x20] sm:$0xf]
        %v1812 = vld [vmem:[%s3 + $0x24] sm:$0xf]
        %v1813 = vld [vmem:[%s3 + $0x28] sm:$0xf]
        %v1814 = vld [vmem:[%s3 + $0x2c] sm:$0xf]
        %v1815 = vld [vmem:[%s3 + $0x30] sm:$0xf]
        %v1816 = vld [vmem:[%s3 + $0x34] sm:$0xf]
        %v1817 = vld [vmem:[%s3 + $0x38] sm:$0xf]
        %v1818 = vld [vmem:[%s3 + $0x3c] sm:$0xf]
        %v1819 = vld [vmem:[%s4] sm:$0x1]
        %v1821 = vlaneseq
        %v1822 = vshrl.u32 %v1821, 7
        %v1823 = vsub.s32 0, %v1822
        %v1824 = vrot.slane %v1819, %v1823
        %v1842 = vunpack.c.l.b16 %v1803
        %v1843 = vunpack.c.l.b16 %v1804
        %v1844 = vunpack.c.l.b16 %v1805
        %v1845 = vunpack.c.l.b16 %v1806
        %v1846 = vunpack.c.l.b16 %v1807
        %v1847 = vunpack.c.l.b16 %v1808
        %v1848 = vunpack.c.l.b16 %v1809
        %v1849 = vunpack.c.l.b16 %v1810
        %v1850 = vunpack.c.l.b16 %v1811
        %v1851 = vunpack.c.l.b16 %v1812
        %v1852 = vunpack.c.l.b16 %v1813
        %v1853 = vunpack.c.l.b16 %v1814
        %v1854 = vunpack.c.l.b16 %v1815
        %v1855 = vunpack.c.l.b16 %v1816
        %v1856 = vunpack.c.l.b16 %v1817
        %v1857 = vunpack.c.l.b16 %v1818
        %v1858 = vpack.c.b16 %v1843, %v1842
        %v1859 = vpack.c.b16 %v1845, %v1844
        %v1860 = vpack.c.b16 %v1847, %v1846
        %v1861 = vpack.c.b16 %v1849, %v1848
        %v1862 = vpack.c.b16 %v1851, %v1850
        %v1863 = vpack.c.b16 %v1853, %v1852
        %v1864 = vpack.c.b16 %v1855, %v1854
        %v1865 = vpack.c.b16 %v1857, %v1856
        %1874 = vmatprep.subr.bf16.mxu0 0
        %1875 = vmatpush1.bf16.msra.mxu0 %v1858
        %1876 = vmatprep.subr.bf16.mxu0 0
        %1877 = vmatpush1.bf16.msra.mxu0 %v1859
        %1878 = vmatprep.subr.bf16.mxu0 0
        %1879 = vmatpush1.bf16.msra.mxu0 %v1860
        %1880 = vmatprep.subr.bf16.mxu0 0
        %1881 = vmatpush1.bf16.msra.mxu0 %v1861
        %1882 = vmatprep.subr.bf16.mxu0 0
        %1883 = vmatpush1.bf16.msra.mxu0 %v1862
        %1884 = vmatprep.subr.bf16.mxu0 0
        %1885 = vmatpush1.bf16.msra.mxu0 %v1863
        %1886 = vmatprep.subr.bf16.mxu0 0
        %1887 = vmatpush1.bf16.msra.mxu0 %v1864
        %1888 = vmatprep.subr.bf16.mxu0 0
        %1889 = vmatpush1.bf16.msra.mxu0 %v1865
        %1890 = vmatprep.subr.bf16.mxu0 0
        %1891 = vmatpush1.bf16.msra.mxu0 0
        %1892 = vmatprep.subr.bf16.mxu0 0
        %1893 = vmatpush1.bf16.msra.mxu0 0
        %1894 = vmatprep.subr.bf16.mxu0 0
        %1895 = vmatpush1.bf16.msra.mxu0 0
        %1896 = vmatprep.subr.bf16.mxu0 0
        %1897 = vmatpush1.bf16.msra.mxu0 0
        %1898 = vmatprep.subr.bf16.mxu0 0
        %1899 = vmatpush1.bf16.msra.mxu0 0
        %1900 = vmatprep.subr.bf16.mxu0 0
        %1901 = vmatpush1.bf16.msra.mxu0 0
        %1902 = vmatprep.subr.bf16.mxu0 0
        %1903 = vmatpush1.bf16.msra.mxu0 0
        %1904 = vmatprep.subr.bf16.mxu0 0
        %1905 = vmatpush1.bf16.msra.mxu0 0
        %1906 = vmatprep.mubr.bf16.mxu0 0
        %1907 = vmatmul.mubr.bf16.gmra.mrb[0].mxu0 %v1795
        %v1908 = vpop.f32.mrb[0].mxu0
        %v1909 = vadd.f32 %v1824, %v1908
        %v1910 = vpop.f32.mrb[0].mxu0
        %v1911 = vpop.f32.mrb[0].mxu0
        %v1912 = vadd.f32 %v1824, %v1911
        %v1913 = vpop.f32.mrb[0].mxu0
        %1914 = vmatprep.mubr.bf16.mxu0 0
        %1915 = vmatmul.mubr.bf16.gmra.mrb[0].mxu0 %v1796
        %v1916 = vpop.f32.mrb[0].mxu0
        %v1917 = vadd.f32 %v1824, %v1916
        %v1918 = vpop.f32.mrb[0].mxu0
        %v1919 = vpop.f32.mrb[0].mxu0
        %v1920 = vadd.f32 %v1824, %v1919
        %v1921 = vpop.f32.mrb[0].mxu0
        %1922 = vmatprep.mubr.bf16.mxu0 0
        %1923 = vmatmul.mubr.bf16.gmra.mrb[0].mxu0 %v1797
        %v1924 = vpop.f32.mrb[0].mxu0
        %v1925 = vadd.f32 %v1824, %v1924
        %v1926 = vpop.f32.mrb[0].mxu0
        %v1927 = vpop.f32.mrb[0].mxu0
        %v1928 = vadd.f32 %v1824, %v1927
        %v1929 = vpop.f32.mrb[0].mxu0
        %1930 = vmatprep.mubr.bf16.mxu0 0
        %1931 = vmatmul.mubr.bf16.gmra.mrb[0].mxu0 %v1798
        %v1932 = vpop.f32.mrb[0].mxu0
        %v1933 = vadd.f32 %v1824, %v1932
        %v1934 = vpop.f32.mrb[0].mxu0
        %v1935 = vpop.f32.mrb[0].mxu0
        %v1936 = vadd.f32 %v1824, %v1935
        %v1937 = vpop.f32.mrb[0].mxu0
        %1938 = vmatprep.mubr.bf16.mxu0 0
        %1939 = vmatmul.mubr.bf16.gmra.mrb[0].mxu0 %v1799
        %v1940 = vpop.f32.mrb[0].mxu0
        %v1941 = vadd.f32 %v1824, %v1940
        %v1942 = vpop.f32.mrb[0].mxu0
        %v1943 = vpop.f32.mrb[0].mxu0
        %v1944 = vadd.f32 %v1824, %v1943
        %v1945 = vpop.f32.mrb[0].mxu0
        %1946 = vmatprep.mubr.bf16.mxu0 0
        %1947 = vmatmul.mubr.bf16.gmra.mrb[0].mxu0 %v1800
        %v1948 = vpop.f32.mrb[0].mxu0
        %v1949 = vadd.f32 %v1824, %v1948
        %v1950 = vpop.f32.mrb[0].mxu0
        %v1951 = vpop.f32.mrb[0].mxu0
        %v1952 = vadd.f32 %v1824, %v1951
        %v1953 = vpop.f32.mrb[0].mxu0
        %1954 = vmatprep.mubr.bf16.mxu0 0
        %1955 = vmatmul.mubr.bf16.gmra.mrb[0].mxu0 %v1801
        %v1956 = vpop.f32.mrb[0].mxu0
        %v1957 = vadd.f32 %v1824, %v1956
        %v1958 = vpop.f32.mrb[0].mxu0
        %v1959 = vpop.f32.mrb[0].mxu0
        %v1960 = vadd.f32 %v1824, %v1959
        %v1961 = vpop.f32.mrb[0].mxu0
        %1962 = vmatprep.mubr.bf16.mxu0 0
        %1963 = vmatmul.mubr.bf16.gmra.mrb[0].mxu0 %v1802
        %v1964 = vpop.f32.mrb[0].mxu0
        %v1965 = vadd.f32 %v1824, %v1964
        %v1966 = vpop.f32.mrb[0].mxu0
        %v1967 = vpop.f32.mrb[0].mxu0
        %v1968 = vadd.f32 %v1824, %v1967
        %v1969 = vpop.f32.mrb[0].mxu0
        %1970 = vdwg.mxu0
        %v1971 = vmax.f32 %v1909, 0.0
        %v1972 = vmax.f32 %v1912, 0.0
        %v1973 = vmax.f32 %v1917, 0.0
        %v1974 = vmax.f32 %v1920, 0.0
        %v1975 = vmax.f32 %v1925, 0.0
        %v1976 = vmax.f32 %v1928, 0.0
        %v1977 = vmax.f32 %v1933, 0.0
        %v1978 = vmax.f32 %v1936, 0.0
        %v1979 = vmax.f32 %v1941, 0.0
        %v1980 = vmax.f32 %v1944, 0.0
        %v1981 = vmax.f32 %v1949, 0.0
        %v1982 = vmax.f32 %v1952, 0.0
        %v1983 = vmax.f32 %v1957, 0.0
        %v1984 = vmax.f32 %v1960, 0.0
        %v1985 = vmax.f32 %v1965, 0.0
        %v1986 = vmax.f32 %v1968, 0.0
        %v1987 = vpack.c.bf16 %v1972, %v1971
        %v1988 = vpack.c.bf16 %v1974, %v1973
        %v1989 = vpack.c.bf16 %v1976, %v1975
        %v1990 = vpack.c.bf16 %v1978, %v1977
        %v1991 = vpack.c.bf16 %v1980, %v1979
        %v1992 = vpack.c.bf16 %v1982, %v1981
        %v1993 = vpack.c.bf16 %v1984, %v1983
        %v1994 = vpack.c.bf16 %v1986, %v1985
        %v1995 = vld [vmem:[%s5] sm:$0xf]
        %v1996 = vld [vmem:[%s5 + $0x4] sm:$0xf]
        %v1997 = vld [vmem:[%s5 + $0x8] sm:$0xf]
        %v1998 = vld [vmem:[%s5 + $0xc] sm:$0xf]
        %v1999 = vld [vmem:[%s5 + $0x10] sm:$0xf]
        %v2000 = vld [vmem:[%s5 + $0x14] sm:$0xf]
        %v2001 = vld [vmem:[%s5 + $0x18] sm:$0xf]
        %v2002 = vld [vmem:[%s5 + $0x1c] sm:$0xf]
        %v2003 = vld [vmem:[%s6] sm:$0x1]
        %v2005 = vlaneseq
        %v2006 = vshrl.u32 %v2005, 7
        %v2007 = vsub.s32 0, %v2006
        %v2008 = vrot.slane %v2003, %v2007
        %v2018 = vunpack.c.l.b16 %v1995
        %v2019 = vunpack.c.l.b16 %v1996
        %v2020 = vunpack.c.l.b16 %v1997
        %v2021 = vunpack.c.l.b16 %v1998
        %v2022 = vunpack.c.l.b16 %v1999
        %v2023 = vunpack.c.l.b16 %v2000
        %v2024 = vunpack.c.l.b16 %v2001
        %v2025 = vunpack.c.l.b16 %v2002
        %v2026 = vpack.c.b16 %v2019, %v2018
        %v2027 = vpack.c.b16 %v2021, %v2020
        %v2028 = vpack.c.b16 %v2023, %v2022
        %v2029 = vpack.c.b16 %v2025, %v2024
        %vm2034 = vcmask 523264
        %v2036 = vsel %vm2034, %v1987, 0
        %v2039 = vsel %vm2034, %v1988, 0
        %v2042 = vsel %vm2034, %v1989, 0
        %v2045 = vsel %vm2034, %v1990, 0
        %v2048 = vsel %vm2034, %v1991, 0
        %v2051 = vsel %vm2034, %v1992, 0
        %v2054 = vsel %vm2034, %v1993, 0
        %v2057 = vsel %vm2034, %v1994, 0
        %2059 = vmatprep.subr.bf16.mxu0 0
        %2060 = vmatpush1.bf16.msra.mxu0 %v2026
        %2061 = vmatprep.subr.bf16.mxu0 0
        %2062 = vmatpush1.bf16.msra.mxu0 %v2027
        %2063 = vmatprep.subr.bf16.mxu0 0
        %2064 = vmatpush1.bf16.msra.mxu0 %v2028
        %2065 = vmatprep.subr.bf16.mxu0 0
        %2066 = vmatpush1.bf16.msra.mxu0 %v2029
        %2067 = vmatprep.subr.bf16.mxu0 0
        %2068 = vmatpush1.bf16.msra.mxu0 0
        %2069 = vmatprep.subr.bf16.mxu0 0
        %2070 = vmatpush1.bf16.msra.mxu0 0
        %2071 = vmatprep.subr.bf16.mxu0 0
        %2072 = vmatpush1.bf16.msra.mxu0 0
        %2073 = vmatprep.subr.bf16.mxu0 0
        %2074 = vmatpush1.bf16.msra.mxu0 0
        %2075 = vmatprep.subr.bf16.mxu0 0
        %2076 = vmatpush1.bf16.msra.mxu0 0
        %2077 = vmatprep.subr.bf16.mxu0 0
        %2078 = vmatpush1.bf16.msra.mxu0 0
        %2079 = vmatprep.subr.bf16.mxu0 0
        %2080 = vmatpush1.bf16.msra.mxu0 0
        %2081 = vmatprep.subr.bf16.mxu0 0
        %2082 = vmatpush1.bf16.msra.mxu0 0
        %2083 = vmatprep.subr.bf16.mxu0 0
        %2084 = vmatpush1.bf16.msra.mxu0 0
        %2085 = vmatprep.subr.bf16.mxu0 0
        %2086 = vmatpush1.bf16.msra.mxu0 0
        %2087 = vmatprep.subr.bf16.mxu0 0
        %2088 = vmatpush1.bf16.msra.mxu0 0
        %2089 = vmatprep.subr.bf16.mxu0 0
        %2090 = vmatpush1.bf16.msra.mxu0 0
        %2091 = vmatprep.mubr.bf16.mxu0 0
        %2092 = vmatmul.mubr.bf16.gmra.mrb[0].mxu0 %v2036
        %v2093 = vpop.f32.mrb[0].mxu0
        %v2094 = vadd.f32 %v2008, %v2093
        %v2095 = vpop.f32.mrb[0].mxu0
        %v2096 = vpop.f32.mrb[0].mxu0
        %v2097 = vadd.f32 %v2008, %v2096
        %v2098 = vpop.f32.mrb[0].mxu0
        %2099 = vmatprep.mubr.bf16.mxu0 0
        %2100 = vmatmul.mubr.bf16.gmra.mrb[0].mxu0 %v2039
        %v2101 = vpop.f32.mrb[0].mxu0
        %v2102 = vadd.f32 %v2008, %v2101
        %v2103 = vpop.f32.mrb[0].mxu0
        %v2104 = vpop.f32.mrb[0].mxu0
        %v2105 = vadd.f32 %v2008, %v2104
        %v2106 = vpop.f32.mrb[0].mxu0
        %2107 = vmatprep.mubr.bf16.mxu0 0
        %2108 = vmatmul.mubr.bf16.gmra.mrb[0].mxu0 %v2042
        %v2109 = vpop.f32.mrb[0].mxu0
        %v2110 = vadd.f32 %v2008, %v2109
        %v2111 = vpop.f32.mrb[0].mxu0
        %v2112 = vpop.f32.mrb[0].mxu0
        %v2113 = vadd.f32 %v2008, %v2112
        %v2114 = vpop.f32.mrb[0].mxu0
        %2115 = vmatprep.mubr.bf16.mxu0 0
        %2116 = vmatmul.mubr.bf16.gmra.mrb[0].mxu0 %v2045
        %v2117 = vpop.f32.mrb[0].mxu0
        %v2118 = vadd.f32 %v2008, %v2117
        %v2119 = vpop.f32.mrb[0].mxu0
        %v2120 = vpop.f32.mrb[0].mxu0
        %v2121 = vadd.f32 %v2008, %v2120
        %v2122 = vpop.f32.mrb[0].mxu0
        %2123 = vmatprep.mubr.bf16.mxu0 0
        %2124 = vmatmul.mubr.bf16.gmra.mrb[0].mxu0 %v2048
        %v2125 = vpop.f32.mrb[0].mxu0
        %v2126 = vadd.f32 %v2008, %v2125
        %v2127 = vpop.f32.mrb[0].mxu0
        %v2128 = vpop.f32.mrb[0].mxu0
        %v2129 = vadd.f32 %v2008, %v2128
        %v2130 = vpop.f32.mrb[0].mxu0
        %2131 = vmatprep.mubr.bf16.mxu0 0
        %2132 = vmatmul.mubr.bf16.gmra.mrb[0].mxu0 %v2051
        %v2133 = vpop.f32.mrb[0].mxu0
        %v2134 = vadd.f32 %v2008, %v2133
        %v2135 = vpop.f32.mrb[0].mxu0
        %v2136 = vpop.f32.mrb[0].mxu0
        %v2137 = vadd.f32 %v2008, %v2136
        %v2138 = vpop.f32.mrb[0].mxu0
        %2139 = vmatprep.mubr.bf16.mxu0 0
        %2140 = vmatmul.mubr.bf16.gmra.mrb[0].mxu0 %v2054
        %v2141 = vpop.f32.mrb[0].mxu0
        %v2142 = vadd.f32 %v2008, %v2141
        %v2143 = vpop.f32.mrb[0].mxu0
        %v2144 = vpop.f32.mrb[0].mxu0
        %v2145 = vadd.f32 %v2008, %v2144
        %v2146 = vpop.f32.mrb[0].mxu0
        %2147 = vmatprep.mubr.bf16.mxu0 0
        %2148 = vmatmul.mubr.bf16.gmra.mrb[0].mxu0 %v2057
        %v2149 = vpop.f32.mrb[0].mxu0
        %v2150 = vadd.f32 %v2008, %v2149
        %v2151 = vpop.f32.mrb[0].mxu0
        %v2152 = vpop.f32.mrb[0].mxu0
        %v2153 = vadd.f32 %v2008, %v2152
        %v2154 = vpop.f32.mrb[0].mxu0
        %2155 = vdwg.mxu0
        %v2156 = vmax.f32 %v2094, 0.0
        %v2157 = vmax.f32 %v2097, 0.0
        %v2158 = vmax.f32 %v2102, 0.0
        %v2159 = vmax.f32 %v2105, 0.0
        %v2160 = vmax.f32 %v2110, 0.0
        %v2161 = vmax.f32 %v2113, 0.0
        %v2162 = vmax.f32 %v2118, 0.0
        %v2163 = vmax.f32 %v2121, 0.0
        %v2164 = vmax.f32 %v2126, 0.0
        %v2165 = vmax.f32 %v2129, 0.0
        %v2166 = vmax.f32 %v2134, 0.0
        %v2167 = vmax.f32 %v2137, 0.0
        %v2168 = vmax.f32 %v2142, 0.0
        %v2169 = vmax.f32 %v2145, 0.0
        %v2170 = vmax.f32 %v2150, 0.0
        %v2171 = vmax.f32 %v2153, 0.0
        %v2172 = vpack.c.bf16 %v2157, %v2156
        %v2173 = vpack.c.bf16 %v2159, %v2158
        %v2174 = vpack.c.bf16 %v2161, %v2160
        %v2175 = vpack.c.bf16 %v2163, %v2162
        %v2176 = vpack.c.bf16 %v2165, %v2164
        %v2177 = vpack.c.bf16 %v2167, %v2166
        %v2178 = vpack.c.bf16 %v2169, %v2168
        %v2179 = vpack.c.bf16 %v2171, %v2170
        %v2180 = vld [vmem:[%s7] sm:$0xf]
        %v2181 = vld [vmem:[%s7 + $0x4] sm:$0x3]
        %v2182 = vld [vmem:[%s8] sm:$0x1]
        %v2184 = vlaneseq
        %v2185 = vshrl.u32 %v2184, 7
        %v2186 = vsub.s32 0, %v2185
        %v2187 = vrot.slane %v2182, %v2186
        %v2191 = vunpack.c.l.b16 %v2180
        %v2192 = vunpack.c.l.b16 %v2181
        %v2193 = vpack.c.b16 %v2192, %v2191
        %vm2194 = vcmask 97280
        %v2196 = vsel %vm2194, %v2172, 0
        %v2199 = vsel %vm2194, %v2173, 0
        %v2202 = vsel %vm2194, %v2174, 0
        %v2205 = vsel %vm2194, %v2175, 0
        %v2208 = vsel %vm2194, %v2176, 0
        %v2211 = vsel %vm2194, %v2177, 0
        %v2214 = vsel %vm2194, %v2178, 0
        %v2217 = vsel %vm2194, %v2179, 0
        %vm2219 = vcmask 1045504
        %v2221 = vsel %vm2219, %v2193, 0
        %2223 = vmatprep.subr.bf16.mxu0 0
        %2224 = vmatpush1.bf16.msra.mxu0 %v2221
        %2225 = vmatprep.subr.bf16.mxu0 0
        %2226 = vmatpush1.bf16.msra.mxu0 0
        %2227 = vmatprep.subr.bf16.mxu0 0
        %2228 = vmatpush1.bf16.msra.mxu0 0
        %2229 = vmatprep.subr.bf16.mxu0 0
        %2230 = vmatpush1.bf16.msra.mxu0 0
        %2231 = vmatprep.subr.bf16.mxu0 0
        %2232 = vmatpush1.bf16.msra.mxu0 0
        %2233 = vmatprep.subr.bf16.mxu0 0
        %2234 = vmatpush1.bf16.msra.mxu0 0
        %2235 = vmatprep.subr.bf16.mxu0 0
        %2236 = vmatpush1.bf16.msra.mxu0 0
        %2237 = vmatprep.subr.bf16.mxu0 0
        %2238 = vmatpush1.bf16.msra.mxu0 0
        %2239 = vmatprep.subr.bf16.mxu0 0
        %2240 = vmatpush1.bf16.msra.mxu0 0
        %2241 = vmatprep.subr.bf16.mxu0 0
        %2242 = vmatpush1.bf16.msra.mxu0 0
        %2243 = vmatprep.subr.bf16.mxu0 0
        %2244 = vmatpush1.bf16.msra.mxu0 0
        %2245 = vmatprep.subr.bf16.mxu0 0
        %2246 = vmatpush1.bf16.msra.mxu0 0
        %2247 = vmatprep.subr.bf16.mxu0 0
        %2248 = vmatpush1.bf16.msra.mxu0 0
        %2249 = vmatprep.subr.bf16.mxu0 0
        %2250 = vmatpush1.bf16.msra.mxu0 0
        %2251 = vmatprep.subr.bf16.mxu0 0
        %2252 = vmatpush1.bf16.msra.mxu0 0
        %2253 = vmatprep.subr.bf16.mxu0 0
        %2254 = vmatpush1.bf16.msra.mxu0 0
        %2255 = vmatprep.mubr.bf16.mxu0 0
        %2256 = vmatmul.mubr.bf16.gmra.mrb[0].mxu0 %v2196
        %v2257 = vpop.f32.mrb[0].mxu0
        %v2258 = vadd.f32 %v2187, %v2257
        %v2259 = vpop.f32.mrb[0].mxu0
        %v2260 = vpop.f32.mrb[0].mxu0
        %v2261 = vadd.f32 %v2187, %v2260
        %v2262 = vpop.f32.mrb[0].mxu0
        %2263 = vmatprep.mubr.bf16.mxu0 0
        %2264 = vmatmul.mubr.bf16.gmra.mrb[0].mxu0 %v2199
        %v2265 = vpop.f32.mrb[0].mxu0
        %v2266 = vadd.f32 %v2187, %v2265
        %v2267 = vpop.f32.mrb[0].mxu0
        %v2268 = vpop.f32.mrb[0].mxu0
        %v2269 = vadd.f32 %v2187, %v2268
        %v2270 = vpop.f32.mrb[0].mxu0
        %2271 = vmatprep.mubr.bf16.mxu0 0
        %2272 = vmatmul.mubr.bf16.gmra.mrb[0].mxu0 %v2202
        %v2273 = vpop.f32.mrb[0].mxu0
        %v2274 = vadd.f32 %v2187, %v2273
        %v2275 = vpop.f32.mrb[0].mxu0
        %v2276 = vpop.f32.mrb[0].mxu0
        %v2277 = vadd.f32 %v2187, %v2276
        %v2278 = vpop.f32.mrb[0].mxu0
        %2279 = vmatprep.mubr.bf16.mxu0 0
        %2280 = vmatmul.mubr.bf16.gmra.mrb[0].mxu0 %v2205
        %v2281 = vpop.f32.mrb[0].mxu0
        %v2282 = vadd.f32 %v2187, %v2281
        %v2283 = vpop.f32.mrb[0].mxu0
        %v2284 = vpop.f32.mrb[0].mxu0
        %v2285 = vadd.f32 %v2187, %v2284
        %v2286 = vpop.f32.mrb[0].mxu0
        %2287 = vmatprep.mubr.bf16.mxu0 0
        %2288 = vmatmul.mubr.bf16.gmra.mrb[0].mxu0 %v2208
        %v2289 = vpop.f32.mrb[0].mxu0
        %v2290 = vadd.f32 %v2187, %v2289
        %v2291 = vpop.f32.mrb[0].mxu0
        %v2292 = vpop.f32.mrb[0].mxu0
        %v2293 = vadd.f32 %v2187, %v2292
        %v2294 = vpop.f32.mrb[0].mxu0
        %2295 = vmatprep.mubr.bf16.mxu0 0
        %2296 = vmatmul.mubr.bf16.gmra.mrb[0].mxu0 %v2211
        %v2297 = vpop.f32.mrb[0].mxu0
        %v2298 = vadd.f32 %v2187, %v2297
        %v2299 = vpop.f32.mrb[0].mxu0
        %v2300 = vpop.f32.mrb[0].mxu0
        %v2301 = vadd.f32 %v2187, %v2300
        %v2302 = vpop.f32.mrb[0].mxu0
        %2303 = vmatprep.mubr.bf16.mxu0 0
        %2304 = vmatmul.mubr.bf16.gmra.mrb[0].mxu0 %v2214
        %v2305 = vpop.f32.mrb[0].mxu0
        %v2306 = vadd.f32 %v2187, %v2305
        %v2307 = vpop.f32.mrb[0].mxu0
        %v2308 = vpop.f32.mrb[0].mxu0
        %v2309 = vadd.f32 %v2187, %v2308
        %v2310 = vpop.f32.mrb[0].mxu0
        %2311 = vmatprep.mubr.bf16.mxu0 0
        %2312 = vmatmul.mubr.bf16.gmra.mrb[0].mxu0 %v2217
        %v2313 = vpop.f32.mrb[0].mxu0
        %v2314 = vadd.f32 %v2187, %v2313
        %v2315 = vpop.f32.mrb[0].mxu0
        %v2316 = vpop.f32.mrb[0].mxu0
        %v2317 = vadd.f32 %v2187, %v2316
        %v2318 = vpop.f32.mrb[0].mxu0
        %2319 = vdwg.mxu0
        %v2320 = vpack.c.bf16 %v2261, %v2258
        %v2321 = vpack.c.bf16 %v2269, %v2266
        %v2322 = vpack.c.bf16 %v2277, %v2274
        %v2323 = vpack.c.bf16 %v2285, %v2282
        %v2324 = vpack.c.bf16 %v2293, %v2290
        %v2325 = vpack.c.bf16 %v2301, %v2298
        %v2326 = vpack.c.bf16 %v2309, %v2306
        %v2327 = vpack.c.bf16 %v2317, %v2314
        %v2336 = vunpack.c.l.b16 %v2320
        %v2337 = vunpack.c.h.b16 %v2320
        %v2338 = vunpack.c.l.b16 %v2321
        %v2339 = vunpack.c.h.b16 %v2321
        %v2340 = vunpack.c.l.b16 %v2322
        %v2341 = vunpack.c.h.b16 %v2322
        %v2342 = vunpack.c.l.b16 %v2323
        %v2343 = vunpack.c.h.b16 %v2323
        %v2344 = vunpack.c.l.b16 %v2324
        %v2345 = vunpack.c.h.b16 %v2324
        %v2346 = vunpack.c.l.b16 %v2325
        %v2347 = vunpack.c.h.b16 %v2325
        %v2348 = vunpack.c.l.b16 %v2326
        %v2349 = vunpack.c.h.b16 %v2326
        %v2350 = vunpack.c.l.b16 %v2327
        %v2351 = vunpack.c.h.b16 %v2327
        %v2352 = vpack.c.b16 %v2336, %v2336
        %v2353 = vpack.c.b16 %v2337, %v2337
        %v2354 = vpack.c.b16 %v2338, %v2338
        %v2355 = vpack.c.b16 %v2339, %v2339
        %v2356 = vpack.c.b16 %v2340, %v2340
        %v2357 = vpack.c.b16 %v2341, %v2341
        %v2358 = vpack.c.b16 %v2342, %v2342
        %v2359 = vpack.c.b16 %v2343, %v2343
        %v2360 = vpack.c.b16 %v2344, %v2344
        %v2361 = vpack.c.b16 %v2345, %v2345
        %v2362 = vpack.c.b16 %v2346, %v2346
        %v2363 = vpack.c.b16 %v2347, %v2347
        %v2364 = vpack.c.b16 %v2348, %v2348
        %v2365 = vpack.c.b16 %v2349, %v2349
        %v2366 = vpack.c.b16 %v2350, %v2350
        %v2367 = vpack.c.b16 %v2351, %v2351
        %2384 = vst [vmem:[%s586] sm:$0xf] %v2352
        %2385 = vst [vmem:[%s586 + $0x4] sm:$0xf] %v2353
        %2386 = vst [vmem:[%s586 + $0x8] sm:$0xf] %v2354
        %2387 = vst [vmem:[%s586 + $0xc] sm:$0xf] %v2355
        %2388 = vst [vmem:[%s586 + $0x10] sm:$0xf] %v2356
        %2389 = vst [vmem:[%s586 + $0x14] sm:$0xf] %v2357
        %2390 = vst [vmem:[%s586 + $0x18] sm:$0xf] %v2358
        %2391 = vst [vmem:[%s586 + $0x1c] sm:$0xf] %v2359
        %2392 = vst [vmem:[%s586 + $0x20] sm:$0xf] %v2360
        %2393 = vst [vmem:[%s586 + $0x24] sm:$0xf] %v2361
        %2394 = vst [vmem:[%s586 + $0x28] sm:$0xf] %v2362
        %2395 = vst [vmem:[%s586 + $0x2c] sm:$0xf] %v2363
        %2396 = vst [vmem:[%s586 + $0x30] sm:$0xf] %v2364
        %2397 = vst [vmem:[%s586 + $0x34] sm:$0xf] %v2365
        %2398 = vst [vmem:[%s586 + $0x38] sm:$0xf] %v2366
        %2399 = vst [vmem:[%s586 + $0x3c] sm:$0xf] %v2367
        %v2400 = vld [vmem:[%s9] sm:$0xf]
        %v2401 = vld [vmem:[%s9 + $0x4] sm:$0xf]
        %v2402 = vld [vmem:[%s9 + $0x8] sm:$0xf]
        %v2403 = vld [vmem:[%s9 + $0xc] sm:$0xf]
        %v2404 = vld [vmem:[%s9 + $0x10] sm:$0xf]
        %v2405 = vld [vmem:[%s9 + $0x14] sm:$0xf]
        %v2406 = vld [vmem:[%s9 + $0x18] sm:$0xf]
        %v2407 = vld [vmem:[%s9 + $0x1c] sm:$0xf]
        %v2408 = vld [vmem:[%s9 + $0x20] sm:$0xf]
        %v2409 = vld [vmem:[%s9 + $0x24] sm:$0xf]
        %v2410 = vld [vmem:[%s9 + $0x28] sm:$0xf]
        %v2411 = vld [vmem:[%s9 + $0x2c] sm:$0xf]
        %v2412 = vld [vmem:[%s9 + $0x30] sm:$0xf]
        %v2413 = vld [vmem:[%s9 + $0x34] sm:$0xf]
        %v2414 = vld [vmem:[%s9 + $0x38] sm:$0xf]
        %v2415 = vld [vmem:[%s9 + $0x3c] sm:$0xf]
        %v2416 = vld [vmem:[%s10] sm:$0x1]
        %v2418 = vlaneseq
        %v2419 = vshrl.u32 %v2418, 7
        %v2420 = vsub.s32 0, %v2419
        %v2421 = vrot.slane %v2416, %v2420
        %v2439 = vunpack.c.l.b16 %v2400
        %v2440 = vunpack.c.l.b16 %v2401
        %v2441 = vunpack.c.l.b16 %v2402
        %v2442 = vunpack.c.l.b16 %v2403
        %v2443 = vunpack.c.l.b16 %v2404
        %v2444 = vunpack.c.l.b16 %v2405
        %v2445 = vunpack.c.l.b16 %v2406
        %v2446 = vunpack.c.l.b16 %v2407
        %v2447 = vunpack.c.l.b16 %v2408
        %v2448 = vunpack.c.l.b16 %v2409
        %v2449 = vunpack.c.l.b16 %v2410
        %v2450 = vunpack.c.l.b16 %v2411
        %v2451 = vunpack.c.l.b16 %v2412
        %v2452 = vunpack.c.l.b16 %v2413
        %v2453 = vunpack.c.l.b16 %v2414
        %v2454 = vunpack.c.l.b16 %v2415
        %v2455 = vpack.c.b16 %v2440, %v2439
        %v2456 = vpack.c.b16 %v2442, %v2441
        %v2457 = vpack.c.b16 %v2444, %v2443
        %v2458 = vpack.c.b16 %v2446, %v2445
        %v2459 = vpack.c.b16 %v2448, %v2447
        %v2460 = vpack.c.b16 %v2450, %v2449
        %v2461 = vpack.c.b16 %v2452, %v2451
        %v2462 = vpack.c.b16 %v2454, %v2453
        %2471 = vmatprep.subr.bf16.mxu0 0
        %2472 = vmatpush1.bf16.msra.mxu0 %v2455
        %2473 = vmatprep.subr.bf16.mxu0 0
        %2474 = vmatpush1.bf16.msra.mxu0 %v2456
        %2475 = vmatprep.subr.bf16.mxu0 0
        %2476 = vmatpush1.bf16.msra.mxu0 %v2457
        %2477 = vmatprep.subr.bf16.mxu0 0
        %2478 = vmatpush1.bf16.msra.mxu0 %v2458
        %2479 = vmatprep.subr.bf16.mxu0 0
        %2480 = vmatpush1.bf16.msra.mxu0 %v2459
        %2481 = vmatprep.subr.bf16.mxu0 0
        %2482 = vmatpush1.bf16.msra.mxu0 %v2460
        %2483 = vmatprep.subr.bf16.mxu0 0
        %2484 = vmatpush1.bf16.msra.mxu0 %v2461
        %2485 = vmatprep.subr.bf16.mxu0 0
        %2486 = vmatpush1.bf16.msra.mxu0 %v2462
        %2487 = vmatprep.subr.bf16.mxu0 0
        %2488 = vmatpush1.bf16.msra.mxu0 0
        %2489 = vmatprep.subr.bf16.mxu0 0
        %2490 = vmatpush1.bf16.msra.mxu0 0
        %2491 = vmatprep.subr.bf16.mxu0 0
        %2492 = vmatpush1.bf16.msra.mxu0 0
        %2493 = vmatprep.subr.bf16.mxu0 0
        %2494 = vmatpush1.bf16.msra.mxu0 0
        %2495 = vmatprep.subr.bf16.mxu0 0
        %2496 = vmatpush1.bf16.msra.mxu0 0
        %2497 = vmatprep.subr.bf16.mxu0 0
        %2498 = vmatpush1.bf16.msra.mxu0 0
        %2499 = vmatprep.subr.bf16.mxu0 0
        %2500 = vmatpush1.bf16.msra.mxu0 0
        %2501 = vmatprep.subr.bf16.mxu0 0
        %2502 = vmatpush1.bf16.msra.mxu0 0
        %2503 = vmatprep.mubr.bf16.mxu0 0
        %2504 = vmatmul.mubr.bf16.gmra.mrb[0].mxu0 %v2320
        %v2505 = vpop.f32.mrb[0].mxu0
        %v2506 = vadd.f32 %v2421, %v2505
        %v2507 = vpop.f32.mrb[0].mxu0
        %v2508 = vpop.f32.mrb[0].mxu0
        %v2509 = vadd.f32 %v2421, %v2508
        %v2510 = vpop.f32.mrb[0].mxu0
        %2511 = vmatprep.mubr.bf16.mxu0 0
        %2512 = vmatmul.mubr.bf16.gmra.mrb[0].mxu0 %v2321
        %v2513 = vpop.f32.mrb[0].mxu0
        %v2514 = vadd.f32 %v2421, %v2513
        %v2515 = vpop.f32.mrb[0].mxu0
        %v2516 = vpop.f32.mrb[0].mxu0
        %v2517 = vadd.f32 %v2421, %v2516
        %v2518 = vpop.f32.mrb[0].mxu0
        %2519 = vmatprep.mubr.bf16.mxu0 0
        %2520 = vmatmul.mubr.bf16.gmra.mrb[0].mxu0 %v2322
        %v2521 = vpop.f32.mrb[0].mxu0
        %v2522 = vadd.f32 %v2421, %v2521
        %v2523 = vpop.f32.mrb[0].mxu0
        %v2524 = vpop.f32.mrb[0].mxu0
        %v2525 = vadd.f32 %v2421, %v2524
        %v2526 = vpop.f32.mrb[0].mxu0
        %2527 = vmatprep.mubr.bf16.mxu0 0
        %2528 = vmatmul.mubr.bf16.gmra.mrb[0].mxu0 %v2323
        %v2529 = vpop.f32.mrb[0].mxu0
        %v2530 = vadd.f32 %v2421, %v2529
        %v2531 = vpop.f32.mrb[0].mxu0
        %v2532 = vpop.f32.mrb[0].mxu0
        %v2533 = vadd.f32 %v2421, %v2532
        %v2534 = vpop.f32.mrb[0].mxu0
        %2535 = vmatprep.mubr.bf16.mxu0 0
        %2536 = vmatmul.mubr.bf16.gmra.mrb[0].mxu0 %v2324
        %v2537 = vpop.f32.mrb[0].mxu0
        %v2538 = vadd.f32 %v2421, %v2537
        %v2539 = vpop.f32.mrb[0].mxu0
        %v2540 = vpop.f32.mrb[0].mxu0
        %v2541 = vadd.f32 %v2421, %v2540
        %v2542 = vpop.f32.mrb[0].mxu0
        %2543 = vmatprep.mubr.bf16.mxu0 0
        %2544 = vmatmul.mubr.bf16.gmra.mrb[0].mxu0 %v2325
        %v2545 = vpop.f32.mrb[0].mxu0
        %v2546 = vadd.f32 %v2421, %v2545
        %v2547 = vpop.f32.mrb[0].mxu0
        %v2548 = vpop.f32.mrb[0].mxu0
        %v2549 = vadd.f32 %v2421, %v2548
        %v2550 = vpop.f32.mrb[0].mxu0
        %2551 = vmatprep.mubr.bf16.mxu0 0
        %2552 = vmatmul.mubr.bf16.gmra.mrb[0].mxu0 %v2326
        %v2553 = vpop.f32.mrb[0].mxu0
        %v2554 = vadd.f32 %v2421, %v2553
        %v2555 = vpop.f32.mrb[0].mxu0
        %v2556 = vpop.f32.mrb[0].mxu0
        %v2557 = vadd.f32 %v2421, %v2556
        %v2558 = vpop.f32.mrb[0].mxu0
        %2559 = vmatprep.mubr.bf16.mxu0 0
        %2560 = vmatmul.mubr.bf16.gmra.mrb[0].mxu0 %v2327
        %v2561 = vpop.f32.mrb[0].mxu0
        %v2562 = vadd.f32 %v2421, %v2561
        %v2563 = vpop.f32.mrb[0].mxu0
        %v2564 = vpop.f32.mrb[0].mxu0
        %v2565 = vadd.f32 %v2421, %v2564
        %v2566 = vpop.f32.mrb[0].mxu0
        %2567 = vdwg.mxu0
        %v2568 = vmax.f32 %v2506, 0.0
        %v2569 = vmax.f32 %v2509, 0.0
        %v2570 = vmax.f32 %v2514, 0.0
        %v2571 = vmax.f32 %v2517, 0.0
        %v2572 = vmax.f32 %v2522, 0.0
        %v2573 = vmax.f32 %v2525, 0.0
        %v2574 = vmax.f32 %v2530, 0.0
        %v2575 = vmax.f32 %v2533, 0.0
        %v2576 = vmax.f32 %v2538, 0.0
        %v2577 = vmax.f32 %v2541, 0.0
        %v2578 = vmax.f32 %v2546, 0.0
        %v2579 = vmax.f32 %v2549, 0.0
        %v2580 = vmax.f32 %v2554, 0.0
        %v2581 = vmax.f32 %v2557, 0.0
        %v2582 = vmax.f32 %v2562, 0.0
        %v2583 = vmax.f32 %v2565, 0.0
        %v2584 = vpack.c.bf16 %v2569, %v2568
        %v2585 = vpack.c.bf16 %v2571, %v2570
        %v2586 = vpack.c.bf16 %v2573, %v2572
        %v2587 = vpack.c.bf16 %v2575, %v2574
        %v2588 = vpack.c.bf16 %v2577, %v2576
        %v2589 = vpack.c.bf16 %v2579, %v2578
        %v2590 = vpack.c.bf16 %v2581, %v2580
        %v2591 = vpack.c.bf16 %v2583, %v2582
        %v2592 = vld [vmem:[%s11] sm:$0xf]
        %v2593 = vld [vmem:[%s11 + $0x4] sm:$0x3]
        %v2594 = vld [vmem:[%s12] sm:$0x1]
        %v2596 = vlaneseq
        %v2597 = vshrl.u32 %v2596, 7
        %v2598 = vsub.s32 0, %v2597
        %v2599 = vrot.slane %v2594, %v2598
        %v2603 = vunpack.c.l.b16 %v2592
        %v2604 = vunpack.c.l.b16 %v2593
        %v2605 = vpack.c.b16 %v2604, %v2603
        %v2607 = vsel %vm2194, %v2584, 0
        %v2610 = vsel %vm2194, %v2585, 0
        %v2613 = vsel %vm2194, %v2586, 0
        %v2616 = vsel %vm2194, %v2587, 0
        %v2619 = vsel %vm2194, %v2588, 0
        %v2622 = vsel %vm2194, %v2589, 0
        %v2625 = vsel %vm2194, %v2590, 0
        %v2628 = vsel %vm2194, %v2591, 0
        %v2631 = vsel %vm2219, %v2605, 0
        %2633 = vmatprep.subr.bf16.mxu0 0
        %2634 = vmatpush1.bf16.msra.mxu0 %v2631
        %2635 = vmatprep.subr.bf16.mxu0 0
        %2636 = vmatpush1.bf16.msra.mxu0 0
        %2637 = vmatprep.subr.bf16.mxu0 0
        %2638 = vmatpush1.bf16.msra.mxu0 0
        %2639 = vmatprep.subr.bf16.mxu0 0
        %2640 = vmatpush1.bf16.msra.mxu0 0
        %2641 = vmatprep.subr.bf16.mxu0 0
        %2642 = vmatpush1.bf16.msra.mxu0 0
        %2643 = vmatprep.subr.bf16.mxu0 0
        %2644 = vmatpush1.bf16.msra.mxu0 0
        %2645 = vmatprep.subr.bf16.mxu0 0
        %2646 = vmatpush1.bf16.msra.mxu0 0
        %2647 = vmatprep.subr.bf16.mxu0 0
        %2648 = vmatpush1.bf16.msra.mxu0 0
        %2649 = vmatprep.subr.bf16.mxu0 0
        %2650 = vmatpush1.bf16.msra.mxu0 0
        %2651 = vmatprep.subr.bf16.mxu0 0
        %2652 = vmatpush1.bf16.msra.mxu0 0
        %2653 = vmatprep.subr.bf16.mxu0 0
        %2654 = vmatpush1.bf16.msra.mxu0 0
        %2655 = vmatprep.subr.bf16.mxu0 0
        %2656 = vmatpush1.bf16.msra.mxu0 0
        %2657 = vmatprep.subr.bf16.mxu0 0
        %2658 = vmatpush1.bf16.msra.mxu0 0
        %2659 = vmatprep.subr.bf16.mxu0 0
        %2660 = vmatpush1.bf16.msra.mxu0 0
        %2661 = vmatprep.subr.bf16.mxu0 0
        %2662 = vmatpush1.bf16.msra.mxu0 0
        %2663 = vmatprep.subr.bf16.mxu0 0
        %2664 = vmatpush1.bf16.msra.mxu0 0
        %2665 = vmatprep.mubr.bf16.mxu0 0
        %2666 = vmatmul.mubr.bf16.gmra.mrb[0].mxu0 %v2607
        %v2667 = vpop.f32.mrb[0].mxu0
        %v2668 = vadd.f32 %v2599, %v2667
        %v2669 = vpop.f32.mrb[0].mxu0
        %v2670 = vpop.f32.mrb[0].mxu0
        %v2671 = vadd.f32 %v2599, %v2670
        %v2672 = vpop.f32.mrb[0].mxu0
        %2673 = vmatprep.mubr.bf16.mxu0 0
        %2674 = vmatmul.mubr.bf16.gmra.mrb[0].mxu0 %v2610
        %v2675 = vpop.f32.mrb[0].mxu0
        %v2676 = vadd.f32 %v2599, %v2675
        %v2677 = vpop.f32.mrb[0].mxu0
        %v2678 = vpop.f32.mrb[0].mxu0
        %v2679 = vadd.f32 %v2599, %v2678
        %v2680 = vpop.f32.mrb[0].mxu0
        %2681 = vmatprep.mubr.bf16.mxu0 0
        %2682 = vmatmul.mubr.bf16.gmra.mrb[0].mxu0 %v2613
        %v2683 = vpop.f32.mrb[0].mxu0
        %v2684 = vadd.f32 %v2599, %v2683
        %v2685 = vpop.f32.mrb[0].mxu0
        %v2686 = vpop.f32.mrb[0].mxu0
        %v2687 = vadd.f32 %v2599, %v2686
        %v2688 = vpop.f32.mrb[0].mxu0
        %2689 = vmatprep.mubr.bf16.mxu0 0
        %2690 = vmatmul.mubr.bf16.gmra.mrb[0].mxu0 %v2616
        %v2691 = vpop.f32.mrb[0].mxu0
        %v2692 = vadd.f32 %v2599, %v2691
        %v2693 = vpop.f32.mrb[0].mxu0
        %v2694 = vpop.f32.mrb[0].mxu0
        %v2695 = vadd.f32 %v2599, %v2694
        %v2696 = vpop.f32.mrb[0].mxu0
        %2697 = vmatprep.mubr.bf16.mxu0 0
        %2698 = vmatmul.mubr.bf16.gmra.mrb[0].mxu0 %v2619
        %v2699 = vpop.f32.mrb[0].mxu0
        %v2700 = vadd.f32 %v2599, %v2699
        %v2701 = vpop.f32.mrb[0].mxu0
        %v2702 = vpop.f32.mrb[0].mxu0
        %v2703 = vadd.f32 %v2599, %v2702
        %v2704 = vpop.f32.mrb[0].mxu0
        %2705 = vmatprep.mubr.bf16.mxu0 0
        %2706 = vmatmul.mubr.bf16.gmra.mrb[0].mxu0 %v2622
        %v2707 = vpop.f32.mrb[0].mxu0
        %v2708 = vadd.f32 %v2599, %v2707
        %v2709 = vpop.f32.mrb[0].mxu0
        %v2710 = vpop.f32.mrb[0].mxu0
        %v2711 = vadd.f32 %v2599, %v2710
        %v2712 = vpop.f32.mrb[0].mxu0
        %2713 = vmatprep.mubr.bf16.mxu0 0
        %2714 = vmatmul.mubr.bf16.gmra.mrb[0].mxu0 %v2625
        %v2715 = vpop.f32.mrb[0].mxu0
        %v2716 = vadd.f32 %v2599, %v2715
        %v2717 = vpop.f32.mrb[0].mxu0
        %v2718 = vpop.f32.mrb[0].mxu0
        %v2719 = vadd.f32 %v2599, %v2718
        %v2720 = vpop.f32.mrb[0].mxu0
        %2721 = vmatprep.mubr.bf16.mxu0 0
        %2722 = vmatmul.mubr.bf16.gmra.mrb[0].mxu0 %v2628
        %v2723 = vpop.f32.mrb[0].mxu0
        %v2724 = vadd.f32 %v2599, %v2723
        %v2725 = vpop.f32.mrb[0].mxu0
        %v2726 = vpop.f32.mrb[0].mxu0
        %v2727 = vadd.f32 %v2599, %v2726
        %v2728 = vpop.f32.mrb[0].mxu0
        %2729 = vdwg.mxu0
        %v2730 = vmax.f32 %v2668, 0.0
        %v2731 = vmax.f32 %v2671, 0.0
        %v2732 = vmax.f32 %v2676, 0.0
        %v2733 = vmax.f32 %v2679, 0.0
        %v2734 = vmax.f32 %v2684, 0.0
        %v2735 = vmax.f32 %v2687, 0.0
        %v2736 = vmax.f32 %v2692, 0.0
        %v2737 = vmax.f32 %v2695, 0.0
        %v2738 = vmax.f32 %v2700, 0.0
        %v2739 = vmax.f32 %v2703, 0.0
        %v2740 = vmax.f32 %v2708, 0.0
        %v2741 = vmax.f32 %v2711, 0.0
        %v2742 = vmax.f32 %v2716, 0.0
        %v2743 = vmax.f32 %v2719, 0.0
        %v2744 = vmax.f32 %v2724, 0.0
        %v2745 = vmax.f32 %v2727, 0.0
        %v2746 = vpack.c.bf16 %v2731, %v2730
        %v2747 = vpack.c.bf16 %v2733, %v2732
        %v2748 = vpack.c.bf16 %v2735, %v2734
        %v2749 = vpack.c.bf16 %v2737, %v2736
        %v2750 = vpack.c.bf16 %v2739, %v2738
        %v2751 = vpack.c.bf16 %v2741, %v2740
        %v2752 = vpack.c.bf16 %v2743, %v2742
        %v2753 = vpack.c.bf16 %v2745, %v2744
        %v2754 = vld [vmem:[%s13] sm:$0xf]
        %v2755 = vld [vmem:[%s13 + $0x4] sm:$0xf]
        %v2756 = vld [vmem:[%s13 + $0x8] sm:$0xf]
        %v2757 = vld [vmem:[%s13 + $0xc] sm:$0xf]
        %v2758 = vld [vmem:[%s13 + $0x10] sm:$0xf]
        %v2759 = vld [vmem:[%s13 + $0x14] sm:$0xf]
        %v2760 = vld [vmem:[%s13 + $0x18] sm:$0xf]
        %v2761 = vld [vmem:[%s13 + $0x1c] sm:$0xf]
        %v2762 = vld [vmem:[%s14] sm:$0x1]
        %v2764 = vlaneseq
        %v2765 = vshrl.u32 %v2764, 7
        %v2766 = vsub.s32 0, %v2765
        %v2767 = vrot.slane %v2762, %v2766
        %v2777 = vunpack.c.l.b16 %v2754
        %v2778 = vunpack.c.l.b16 %v2755
        %v2779 = vunpack.c.l.b16 %v2756
        %v2780 = vunpack.c.l.b16 %v2757
        %v2781 = vunpack.c.l.b16 %v2758
        %v2782 = vunpack.c.l.b16 %v2759
        %v2783 = vunpack.c.l.b16 %v2760
        %v2784 = vunpack.c.l.b16 %v2761
        %v2785 = vpack.c.b16 %v2778, %v2777
        %v2786 = vpack.c.b16 %v2780, %v2779
        %v2787 = vpack.c.b16 %v2782, %v2781
        %v2788 = vpack.c.b16 %v2784, %v2783
        %v2794 = vsel %vm2034, %v2746, 0
        %v2797 = vsel %vm2034, %v2747, 0
        %v2800 = vsel %vm2034, %v2748, 0
        %v2803 = vsel %vm2034, %v2749, 0
        %v2806 = vsel %vm2034, %v2750, 0
        %v2809 = vsel %vm2034, %v2751, 0
        %v2812 = vsel %vm2034, %v2752, 0
        %v2815 = vsel %vm2034, %v2753, 0
        %2817 = vmatprep.subr.bf16.mxu0 0
        %2818 = vmatpush1.bf16.msra.mxu0 %v2785
        %2819 = vmatprep.subr.bf16.mxu0 0
        %2820 = vmatpush1.bf16.msra.mxu0 %v2786
        %2821 = vmatprep.subr.bf16.mxu0 0
        %2822 = vmatpush1.bf16.msra.mxu0 %v2787
        %2823 = vmatprep.subr.bf16.mxu0 0
        %2824 = vmatpush1.bf16.msra.mxu0 %v2788
        %2825 = vmatprep.subr.bf16.mxu0 0
        %2826 = vmatpush1.bf16.msra.mxu0 0
        %2827 = vmatprep.subr.bf16.mxu0 0
        %2828 = vmatpush1.bf16.msra.mxu0 0
        %2829 = vmatprep.subr.bf16.mxu0 0
        %2830 = vmatpush1.bf16.msra.mxu0 0
        %2831 = vmatprep.subr.bf16.mxu0 0
        %2832 = vmatpush1.bf16.msra.mxu0 0
        %2833 = vmatprep.subr.bf16.mxu0 0
        %2834 = vmatpush1.bf16.msra.mxu0 0
        %2835 = vmatprep.subr.bf16.mxu0 0
        %2836 = vmatpush1.bf16.msra.mxu0 0
        %2837 = vmatprep.subr.bf16.mxu0 0
        %2838 = vmatpush1.bf16.msra.mxu0 0
        %2839 = vmatprep.subr.bf16.mxu0 0
        %2840 = vmatpush1.bf16.msra.mxu0 0
        %2841 = vmatprep.subr.bf16.mxu0 0
        %2842 = vmatpush1.bf16.msra.mxu0 0
        %2843 = vmatprep.subr.bf16.mxu0 0
        %2844 = vmatpush1.bf16.msra.mxu0 0
        %2845 = vmatprep.subr.bf16.mxu0 0
        %2846 = vmatpush1.bf16.msra.mxu0 0
        %2847 = vmatprep.subr.bf16.mxu0 0
        %2848 = vmatpush1.bf16.msra.mxu0 0
        %2849 = vmatprep.mubr.bf16.mxu0 0
        %2850 = vmatmul.mubr.bf16.gmra.mrb[0].mxu0 %v2794
        %v2851 = vpop.f32.mrb[0].mxu0
        %v2852 = vadd.f32 %v2767, %v2851
        %v2853 = vpop.f32.mrb[0].mxu0
        %v2854 = vpop.f32.mrb[0].mxu0
        %v2855 = vadd.f32 %v2767, %v2854
        %v2856 = vpop.f32.mrb[0].mxu0
        %2857 = vmatprep.mubr.bf16.mxu0 0
        %2858 = vmatmul.mubr.bf16.gmra.mrb[0].mxu0 %v2797
        %v2859 = vpop.f32.mrb[0].mxu0
        %v2860 = vadd.f32 %v2767, %v2859
        %v2861 = vpop.f32.mrb[0].mxu0
        %v2862 = vpop.f32.mrb[0].mxu0
        %v2863 = vadd.f32 %v2767, %v2862
        %v2864 = vpop.f32.mrb[0].mxu0
        %2865 = vmatprep.mubr.bf16.mxu0 0
        %2866 = vmatmul.mubr.bf16.gmra.mrb[0].mxu0 %v2800
        %v2867 = vpop.f32.mrb[0].mxu0
        %v2868 = vadd.f32 %v2767, %v2867
        %v2869 = vpop.f32.mrb[0].mxu0
        %v2870 = vpop.f32.mrb[0].mxu0
        %v2871 = vadd.f32 %v2767, %v2870
        %v2872 = vpop.f32.mrb[0].mxu0
        %2873 = vmatprep.mubr.bf16.mxu0 0
        %2874 = vmatmul.mubr.bf16.gmra.mrb[0].mxu0 %v2803
        %v2875 = vpop.f32.mrb[0].mxu0
        %v2876 = vadd.f32 %v2767, %v2875
        %v2877 = vpop.f32.mrb[0].mxu0
        %v2878 = vpop.f32.mrb[0].mxu0
        %v2879 = vadd.f32 %v2767, %v2878
        %v2880 = vpop.f32.mrb[0].mxu0
        %2881 = vmatprep.mubr.bf16.mxu0 0
        %2882 = vmatmul.mubr.bf16.gmra.mrb[0].mxu0 %v2806
        %v2883 = vpop.f32.mrb[0].mxu0
        %v2884 = vadd.f32 %v2767, %v2883
        %v2885 = vpop.f32.mrb[0].mxu0
        %v2886 = vpop.f32.mrb[0].mxu0
        %v2887 = vadd.f32 %v2767, %v2886
        %v2888 = vpop.f32.mrb[0].mxu0
        %2889 = vmatprep.mubr.bf16.mxu0 0
        %2890 = vmatmul.mubr.bf16.gmra.mrb[0].mxu0 %v2809
        %v2891 = vpop.f32.mrb[0].mxu0
        %v2892 = vadd.f32 %v2767, %v2891
        %v2893 = vpop.f32.mrb[0].mxu0
        %v2894 = vpop.f32.mrb[0].mxu0
        %v2895 = vadd.f32 %v2767, %v2894
        %v2896 = vpop.f32.mrb[0].mxu0
        %2897 = vmatprep.mubr.bf16.mxu0 0
        %2898 = vmatmul.mubr.bf16.gmra.mrb[0].mxu0 %v2812
        %v2899 = vpop.f32.mrb[0].mxu0
        %v2900 = vadd.f32 %v2767, %v2899
        %v2901 = vpop.f32.mrb[0].mxu0
        %v2902 = vpop.f32.mrb[0].mxu0
        %v2903 = vadd.f32 %v2767, %v2902
        %v2904 = vpop.f32.mrb[0].mxu0
        %2905 = vmatprep.mubr.bf16.mxu0 0
        %2906 = vmatmul.mubr.bf16.gmra.mrb[0].mxu0 %v2815
        %v2907 = vpop.f32.mrb[0].mxu0
        %v2908 = vadd.f32 %v2767, %v2907
        %v2909 = vpop.f32.mrb[0].mxu0
        %v2910 = vpop.f32.mrb[0].mxu0
        %v2911 = vadd.f32 %v2767, %v2910
        %v2912 = vpop.f32.mrb[0].mxu0
        %2913 = vdwg.mxu0
        %v2914 = vmax.f32 %v2852, 0.0
        %v2915 = vmax.f32 %v2855, 0.0
        %v2916 = vmax.f32 %v2860, 0.0
        %v2917 = vmax.f32 %v2863, 0.0
        %v2918 = vmax.f32 %v2868, 0.0
        %v2919 = vmax.f32 %v2871, 0.0
        %v2920 = vmax.f32 %v2876, 0.0
        %v2921 = vmax.f32 %v2879, 0.0
        %v2922 = vmax.f32 %v2884, 0.0
        %v2923 = vmax.f32 %v2887, 0.0
        %v2924 = vmax.f32 %v2892, 0.0
        %v2925 = vmax.f32 %v2895, 0.0
        %v2926 = vmax.f32 %v2900, 0.0
        %v2927 = vmax.f32 %v2903, 0.0
        %v2928 = vmax.f32 %v2908, 0.0
        %v2929 = vmax.f32 %v2911, 0.0
        %v2930 = vpack.c.bf16 %v2915, %v2914
        %v2931 = vpack.c.bf16 %v2917, %v2916
        %v2932 = vpack.c.bf16 %v2919, %v2918
        %v2933 = vpack.c.bf16 %v2921, %v2920
        %v2934 = vpack.c.bf16 %v2923, %v2922
        %v2935 = vpack.c.bf16 %v2925, %v2924
        %v2936 = vpack.c.bf16 %v2927, %v2926
        %v2937 = vpack.c.bf16 %v2929, %v2928
        %v2938 = vld [vmem:[%s15] sm:$0xff]
        %v2939 = vld [vmem:[%s15 + $0x8] sm:$0xff]
        %v2940 = vld [vmem:[%s15 + $0x10] sm:$0xff]
        %v2941 = vld [vmem:[%s15 + $0x18] sm:$0xf]
        %v2942 = vld [vmem:[%s15 + $0x1c] sm:$0xff]
        %v2943 = vld [vmem:[%s15 + $0x24] sm:$0xff]
        %v2944 = vld [vmem:[%s15 + $0x2c] sm:$0xff]
        %v2945 = vld [vmem:[%s15 + $0x34] sm:$0xf]
        %v2946 = vld [vmem:[%s15 + $0x38] sm:$0xff]
        %v2947 = vld [vmem:[%s15 + $0x40] sm:$0xff]
        %v2948 = vld [vmem:[%s15 + $0x48] sm:$0xff]
        %v2949 = vld [vmem:[%s15 + $0x50] sm:$0xf]
        %v2950 = vld [vmem:[%s15 + $0x54] sm:$0xff]
        %v2951 = vld [vmem:[%s15 + $0x5c] sm:$0xff]
        %v2952 = vld [vmem:[%s15 + $0x64] sm:$0xff]
        %v2953 = vld [vmem:[%s15 + $0x6c] sm:$0xf]
        %v2954 = vld [vmem:[%s15 + $0x70] sm:$0xff]
        %v2955 = vld [vmem:[%s15 + $0x78] sm:$0xff]
        %v2956 = vld [vmem:[%s15 + $0x80] sm:$0xff]
        %v2957 = vld [vmem:[%s15 + $0x88] sm:$0xf]
        %v2958 = vld [vmem:[%s15 + $0x8c] sm:$0xff]
        %v2959 = vld [vmem:[%s15 + $0x94] sm:$0xff]
        %v2960 = vld [vmem:[%s15 + $0x9c] sm:$0xff]
        %v2961 = vld [vmem:[%s15 + $0xa4] sm:$0xf]
        %v2962 = vld [vmem:[%s15 + $0xa8] sm:$0xff]
        %v2963 = vld [vmem:[%s15 + $0xb0] sm:$0xff]
        %v2964 = vld [vmem:[%s15 + $0xb8] sm:$0xff]
        %v2965 = vld [vmem:[%s15 + $0xc0] sm:$0xf]
        %v2966 = vld [vmem:[%s15 + $0xc4] sm:$0xff]
        %v2967 = vld [vmem:[%s15 + $0xcc] sm:$0xff]
        %v2968 = vld [vmem:[%s15 + $0xd4] sm:$0xff]
        %v2969 = vld [vmem:[%s15 + $0xdc] sm:$0xf]
        %v2970 = vld [vmem:[%s15 + $0xe0] sm:$0xff]
        %v2971 = vld [vmem:[%s15 + $0xe8] sm:$0xff]
        %v2972 = vld [vmem:[%s15 + $0xf0] sm:$0xff]
        %v2973 = vld [vmem:[%s15 + $0xf8] sm:$0xf]
        %v2974 = vld [vmem:[%s15 + $0xfc] sm:$0xff]
        %v2975 = vld [vmem:[%s15 + $0x104] sm:$0xff]
        %v2976 = vld [vmem:[%s15 + $0x10c] sm:$0xff]
        %v2977 = vld [vmem:[%s15 + $0x114] sm:$0xf]
        %v2978 = vld [vmem:[%s15 + $0x118] sm:$0xff]
        %v2979 = vld [vmem:[%s15 + $0x120] sm:$0xff]
        %v2980 = vld [vmem:[%s15 + $0x128] sm:$0xff]
        %v2981 = vld [vmem:[%s15 + $0x130] sm:$0xf]
        %v2982 = vld [vmem:[%s15 + $0x134] sm:$0xff]
        %v2983 = vld [vmem:[%s15 + $0x13c] sm:$0xff]
        %v2984 = vld [vmem:[%s15 + $0x144] sm:$0xff]
        %v2985 = vld [vmem:[%s15 + $0x14c] sm:$0xf]
        %v2986 = vld [vmem:[%s15 + $0x150] sm:$0xff]
        %v2987 = vld [vmem:[%s15 + $0x158] sm:$0xff]
        %v2988 = vld [vmem:[%s15 + $0x160] sm:$0xff]
        %v2989 = vld [vmem:[%s15 + $0x168] sm:$0xf]
        %v2990 = vld [vmem:[%s15 + $0x16c] sm:$0xff]
        %v2991 = vld [vmem:[%s15 + $0x174] sm:$0xff]
        %v2992 = vld [vmem:[%s15 + $0x17c] sm:$0xff]
        %v2993 = vld [vmem:[%s15 + $0x184] sm:$0xf]
        %v2994 = vld [vmem:[%s15 + $0x188] sm:$0xff]
        %v2995 = vld [vmem:[%s15 + $0x190] sm:$0xff]
        %v2996 = vld [vmem:[%s15 + $0x198] sm:$0xff]
        %v2997 = vld [vmem:[%s15 + $0x1a0] sm:$0xf]
        %v2998 = vld [vmem:[%s15 + $0x1a4] sm:$0xff]
        %v2999 = vld [vmem:[%s15 + $0x1ac] sm:$0xff]
        %v3000 = vld [vmem:[%s15 + $0x1b4] sm:$0xff]
        %v3001 = vld [vmem:[%s15 + $0x1bc] sm:$0xf]
        %v3002 = vld [vmem:[%s16] sm:$0x7f]
        %v3004 = vlaneseq
        %v3005 = vshrl.u32 %v3004, 7
        %v3006 = vsub.s32 0, %v3005
        %v3007 = vrot.slane %v3002, %v3006
        %v3008 = vlaneseq
        %v3009 = vshrl.u32 %v3008, 7
        %v3010 = vsub.s32 1, %v3009
        %v3011 = vrot.slane %v3002, %v3010
        %v3012 = vlaneseq
        %v3013 = vshrl.u32 %v3012, 7
        %v3014 = vsub.s32 2, %v3013
        %v3015 = vrot.slane %v3002, %v3014
        %v3016 = vlaneseq
        %v3017 = vshrl.u32 %v3016, 7
        %v3018 = vsub.s32 3, %v3017
        %v3019 = vrot.slane %v3002, %v3018
        %v3020 = vlaneseq
        %v3021 = vshrl.u32 %v3020, 7
        %v3022 = vsub.s32 4, %v3021
        %v3023 = vrot.slane %v3002, %v3022
        %v3024 = vlaneseq
        %v3025 = vshrl.u32 %v3024, 7
        %v3026 = vsub.s32 5, %v3025
        %v3027 = vrot.slane %v3002, %v3026
        %v3028 = vlaneseq
        %v3029 = vshrl.u32 %v3028, 7
        %v3030 = vsub.s32 6, %v3029
        %v3031 = vrot.slane %v3002, %v3030
        %v3103 = vunpack.c.l.b16 %v2938
        %v3104 = vunpack.c.h.b16 %v2938
        %v3105 = vunpack.c.l.b16 %v2939
        %v3106 = vunpack.c.h.b16 %v2939
        %v3107 = vunpack.c.l.b16 %v2940
        %v3108 = vunpack.c.h.b16 %v2940
        %v3109 = vunpack.c.l.b16 %v2941
        %v3110 = vunpack.c.l.b16 %v2942
        %v3111 = vunpack.c.h.b16 %v2942
        %v3112 = vunpack.c.l.b16 %v2943
        %v3113 = vunpack.c.h.b16 %v2943
        %v3114 = vunpack.c.l.b16 %v2944
        %v3115 = vunpack.c.h.b16 %v2944
        %v3116 = vunpack.c.l.b16 %v2945
        %v3117 = vunpack.c.l.b16 %v2946
        %v3118 = vunpack.c.h.b16 %v2946
        %v3119 = vunpack.c.l.b16 %v2947
        %v3120 = vunpack.c.h.b16 %v2947
        %v3121 = vunpack.c.l.b16 %v2948
        %v3122 = vunpack.c.h.b16 %v2948
        %v3123 = vunpack.c.l.b16 %v2949
        %v3124 = vunpack.c.l.b16 %v2950
        %v3125 = vunpack.c.h.b16 %v2950
        %v3126 = vunpack.c.l.b16 %v2951
        %v3127 = vunpack.c.h.b16 %v2951
        %v3128 = vunpack.c.l.b16 %v2952
        %v3129 = vunpack.c.h.b16 %v2952
        %v3130 = vunpack.c.l.b16 %v2953
        %v3131 = vunpack.c.l.b16 %v2954
        %v3132 = vunpack.c.h.b16 %v2954
        %v3133 = vunpack.c.l.b16 %v2955
        %v3134 = vunpack.c.h.b16 %v2955
        %v3135 = vunpack.c.l.b16 %v2956
        %v3136 = vunpack.c.h.b16 %v2956
        %v3137 = vunpack.c.l.b16 %v2957
        %v3138 = vunpack.c.l.b16 %v2958
        %v3139 = vunpack.c.h.b16 %v2958
        %v3140 = vunpack.c.l.b16 %v2959
        %v3141 = vunpack.c.h.b16 %v2959
        %v3142 = vunpack.c.l.b16 %v2960
        %v3143 = vunpack.c.h.b16 %v2960
        %v3144 = vunpack.c.l.b16 %v2961
        %v3145 = vunpack.c.l.b16 %v2962
        %v3146 = vunpack.c.h.b16 %v2962
        %v3147 = vunpack.c.l.b16 %v2963
        %v3148 = vunpack.c.h.b16 %v2963
        %v3149 = vunpack.c.l.b16 %v2964
        %v3150 = vunpack.c.h.b16 %v2964
        %v3151 = vunpack.c.l.b16 %v2965
        %v3152 = vunpack.c.l.b16 %v2966
        %v3153 = vunpack.c.h.b16 %v2966
        %v3154 = vunpack.c.l.b16 %v2967
        %v3155 = vunpack.c.h.b16 %v2967
        %v3156 = vunpack.c.l.b16 %v2968
        %v3157 = vunpack.c.h.b16 %v2968
        %v3158 = vunpack.c.l.b16 %v2969
        %v3159 = vunpack.c.l.b16 %v2970
        %v3160 = vunpack.c.h.b16 %v2970
        %v3161 = vunpack.c.l.b16 %v2971
        %v3162 = vunpack.c.h.b16 %v2971
        %v3163 = vunpack.c.l.b16 %v2972
        %v3164 = vunpack.c.h.b16 %v2972
        %v3165 = vunpack.c.l.b16 %v2973
        %v3166 = vunpack.c.l.b16 %v2974
        %v3167 = vunpack.c.h.b16 %v2974
        %v3168 = vunpack.c.l.b16 %v2975
        %v3169 = vunpack.c.h.b16 %v2975
        %v3170 = vunpack.c.l.b16 %v2976
        %v3171 = vunpack.c.h.b16 %v2976
        %v3172 = vunpack.c.l.b16 %v2977
        %v3173 = vunpack.c.l.b16 %v2978
        %v3174 = vunpack.c.h.b16 %v2978
        %v3175 = vunpack.c.l.b16 %v2979
        %v3176 = vunpack.c.h.b16 %v2979
        %v3177 = vunpack.c.l.b16 %v2980
        %v3178 = vunpack.c.h.b16 %v2980
        %v3179 = vunpack.c.l.b16 %v2981
        %v3180 = vunpack.c.l.b16 %v2982
        %v3181 = vunpack.c.h.b16 %v2982
        %v3182 = vunpack.c.l.b16 %v2983
        %v3183 = vunpack.c.h.b16 %v2983
        %v3184 = vunpack.c.l.b16 %v2984
        %v3185 = vunpack.c.h.b16 %v2984
        %v3186 = vunpack.c.l.b16 %v2985
        %v3187 = vunpack.c.l.b16 %v2986
        %v3188 = vunpack.c.h.b16 %v2986
        %v3189 = vunpack.c.l.b16 %v2987
        %v3190 = vunpack.c.h.b16 %v2987
        %v3191 = vunpack.c.l.b16 %v2988
        %v3192 = vunpack.c.h.b16 %v2988
        %v3193 = vunpack.c.l.b16 %v2989
        %v3194 = vunpack.c.l.b16 %v2990
        %v3195 = vunpack.c.h.b16 %v2990
        %v3196 = vunpack.c.l.b16 %v2991
        %v3197 = vunpack.c.h.b16 %v2991
        %v3198 = vunpack.c.l.b16 %v2992
        %v3199 = vunpack.c.h.b16 %v2992
        %v3200 = vunpack.c.l.b16 %v2993
        %v3201 = vunpack.c.l.b16 %v2994
        %v3202 = vunpack.c.h.b16 %v2994
        %v3203 = vunpack.c.l.b16 %v2995
        %v3204 = vunpack.c.h.b16 %v2995
        %v3205 = vunpack.c.l.b16 %v2996
        %v3206 = vunpack.c.h.b16 %v2996
        %v3207 = vunpack.c.l.b16 %v2997
        %v3208 = vunpack.c.l.b16 %v2998
        %v3209 = vunpack.c.h.b16 %v2998
        %v3210 = vunpack.c.l.b16 %v2999
        %v3211 = vunpack.c.h.b16 %v2999
        %v3212 = vunpack.c.l.b16 %v3000
        %v3213 = vunpack.c.h.b16 %v3000
        %v3214 = vunpack.c.l.b16 %v3001
        %v3215 = vpack.c.b16 %v3110, %v3103
        %v3216 = vpack.c.b16 %v3111, %v3104
        %v3217 = vpack.c.b16 %v3112, %v3105
        %v3218 = vpack.c.b16 %v3113, %v3106
        %v3219 = vpack.c.b16 %v3114, %v3107
        %v3220 = vpack.c.b16 %v3115, %v3108
        %v3221 = vpack.c.b16 %v3116, %v3109
        %v3222 = vpack.c.b16 %v3124, %v3117
        %v3223 = vpack.c.b16 %v3125, %v3118
        %v3224 = vpack.c.b16 %v3126, %v3119
        %v3225 = vpack.c.b16 %v3127, %v3120
        %v3226 = vpack.c.b16 %v3128, %v3121
        %v3227 = vpack.c.b16 %v3129, %v3122
        %v3228 = vpack.c.b16 %v3130, %v3123
        %v3229 = vpack.c.b16 %v3138, %v3131
        %v3230 = vpack.c.b16 %v3139, %v3132
        %v3231 = vpack.c.b16 %v3140, %v3133
        %v3232 = vpack.c.b16 %v3141, %v3134
        %v3233 = vpack.c.b16 %v3142, %v3135
        %v3234 = vpack.c.b16 %v3143, %v3136
        %v3235 = vpack.c.b16 %v3144, %v3137
        %v3236 = vpack.c.b16 %v3152, %v3145
        %v3237 = vpack.c.b16 %v3153, %v3146
        %v3238 = vpack.c.b16 %v3154, %v3147
        %v3239 = vpack.c.b16 %v3155, %v3148
        %v3240 = vpack.c.b16 %v3156, %v3149
        %v3241 = vpack.c.b16 %v3157, %v3150
        %v3242 = vpack.c.b16 %v3158, %v3151
        %v3243 = vpack.c.b16 %v3166, %v3159
        %v3244 = vpack.c.b16 %v3167, %v3160
        %v3245 = vpack.c.b16 %v3168, %v3161
        %v3246 = vpack.c.b16 %v3169, %v3162
        %v3247 = vpack.c.b16 %v3170, %v3163
        %v3248 = vpack.c.b16 %v3171, %v3164
        %v3249 = vpack.c.b16 %v3172, %v3165
        %v3250 = vpack.c.b16 %v3180, %v3173
        %v3251 = vpack.c.b16 %v3181, %v3174
        %v3252 = vpack.c.b16 %v3182, %v3175
        %v3253 = vpack.c.b16 %v3183, %v3176
        %v3254 = vpack.c.b16 %v3184, %v3177
        %v3255 = vpack.c.b16 %v3185, %v3178
        %v3256 = vpack.c.b16 %v3186, %v3179
        %v3257 = vpack.c.b16 %v3194, %v3187
        %v3258 = vpack.c.b16 %v3195, %v3188
        %v3259 = vpack.c.b16 %v3196, %v3189
        %v3260 = vpack.c.b16 %v3197, %v3190
        %v3261 = vpack.c.b16 %v3198, %v3191
        %v3262 = vpack.c.b16 %v3199, %v3192
        %v3263 = vpack.c.b16 %v3200, %v3193
        %v3264 = vpack.c.b16 %v3208, %v3201
        %v3265 = vpack.c.b16 %v3209, %v3202
        %v3266 = vpack.c.b16 %v3210, %v3203
        %v3267 = vpack.c.b16 %v3211, %v3204
        %v3268 = vpack.c.b16 %v3212, %v3205
        %v3269 = vpack.c.b16 %v3213, %v3206
        %v3270 = vpack.c.b16 %v3214, %v3207
        %3327 = vmatprep.subr.bf16.mxu0 %v3216
        %3328 = vmatpush1.bf16.msra.mxu0 %v3215
        %3329 = vmatprep.subr.bf16.mxu0 %v3223
        %3330 = vmatpush1.bf16.msra.mxu0 %v3222
        %3331 = vmatprep.subr.bf16.mxu0 %v3230
        %3332 = vmatpush1.bf16.msra.mxu0 %v3229
        %3333 = vmatprep.subr.bf16.mxu0 %v3237
        %3334 = vmatpush1.bf16.msra.mxu0 %v3236
        %3335 = vmatprep.subr.bf16.mxu0 %v3244
        %3336 = vmatpush1.bf16.msra.mxu0 %v3243
        %3337 = vmatprep.subr.bf16.mxu0 %v3251
        %3338 = vmatpush1.bf16.msra.mxu0 %v3250
        %3339 = vmatprep.subr.bf16.mxu0 %v3258
        %3340 = vmatpush1.bf16.msra.mxu0 %v3257
        %3341 = vmatprep.subr.bf16.mxu0 %v3265
        %3342 = vmatpush1.bf16.msra.mxu0 %v3264
        %3343 = vmatprep.subr.bf16.mxu0 0
        %3344 = vmatpush1.bf16.msra.mxu0 0
        %3345 = vmatprep.subr.bf16.mxu0 0
        %3346 = vmatpush1.bf16.msra.mxu0 0
        %3347 = vmatprep.subr.bf16.mxu0 0
        %3348 = vmatpush1.bf16.msra.mxu0 0
        %3349 = vmatprep.subr.bf16.mxu0 0
        %3350 = vmatpush1.bf16.msra.mxu0 0
        %3351 = vmatprep.subr.bf16.mxu0 0
        %3352 = vmatpush1.bf16.msra.mxu0 0
        %3353 = vmatprep.subr.bf16.mxu0 0
        %3354 = vmatpush1.bf16.msra.mxu0 0
        %3355 = vmatprep.subr.bf16.mxu0 0
        %3356 = vmatpush1.bf16.msra.mxu0 0
        %3357 = vmatprep.subr.bf16.mxu0 0
        %3358 = vmatpush1.bf16.msra.mxu0 0
        %3359 = vmatprep.mubr.bf16.mxu0 0
        %3360 = vmatmul.mubr.bf16.gmra.mrb[0].mxu0 %v2930
        %v3361 = vpop.f32.mrb[0].mxu0
        %v3362 = vadd.f32 %v3007, %v3361
        %v3363 = vpop.f32.mrb[0].mxu0
        %v3364 = vadd.f32 %v3011, %v3363
        %v3365 = vpop.f32.mrb[0].mxu0
        %v3366 = vadd.f32 %v3007, %v3365
        %v3367 = vpop.f32.mrb[0].mxu0
        %v3368 = vadd.f32 %v3011, %v3367
        %3369 = vmatprep.mubr.bf16.mxu0 0
        %3370 = vmatmul.mubr.bf16.gmra.mrb[0].mxu0 %v2931
        %v3371 = vpop.f32.mrb[0].mxu0
        %v3372 = vadd.f32 %v3007, %v3371
        %v3373 = vpop.f32.mrb[0].mxu0
        %v3374 = vadd.f32 %v3011, %v3373
        %v3375 = vpop.f32.mrb[0].mxu0
        %v3376 = vadd.f32 %v3007, %v3375
        %v3377 = vpop.f32.mrb[0].mxu0
        %v3378 = vadd.f32 %v3011, %v3377
        %3379 = vmatprep.mubr.bf16.mxu0 0
        %3380 = vmatmul.mubr.bf16.gmra.mrb[0].mxu0 %v2932
        %v3381 = vpop.f32.mrb[0].mxu0
        %v3382 = vadd.f32 %v3007, %v3381
        %v3383 = vpop.f32.mrb[0].mxu0
        %v3384 = vadd.f32 %v3011, %v3383
        %v3385 = vpop.f32.mrb[0].mxu0
        %v3386 = vadd.f32 %v3007, %v3385
        %v3387 = vpop.f32.mrb[0].mxu0
        %v3388 = vadd.f32 %v3011, %v3387
        %3389 = vmatprep.mubr.bf16.mxu0 0
        %3390 = vmatmul.mubr.bf16.gmra.mrb[0].mxu0 %v2933
        %v3391 = vpop.f32.mrb[0].mxu0
        %v3392 = vadd.f32 %v3007, %v3391
        %v3393 = vpop.f32.mrb[0].mxu0
        %v3394 = vadd.f32 %v3011, %v3393
        %v3395 = vpop.f32.mrb[0].mxu0
        %v3396 = vadd.f32 %v3007, %v3395
        %v3397 = vpop.f32.mrb[0].mxu0
        %v3398 = vadd.f32 %v3011, %v3397
        %3399 = vmatprep.mubr.bf16.mxu0 0
        %3400 = vmatmul.mubr.bf16.gmra.mrb[0].mxu0 %v2934
        %v3401 = vpop.f32.mrb[0].mxu0
        %v3402 = vadd.f32 %v3007, %v3401
        %v3403 = vpop.f32.mrb[0].mxu0
        %v3404 = vadd.f32 %v3011, %v3403
        %v3405 = vpop.f32.mrb[0].mxu0
        %v3406 = vadd.f32 %v3007, %v3405
        %v3407 = vpop.f32.mrb[0].mxu0
        %v3408 = vadd.f32 %v3011, %v3407
        %3409 = vmatprep.mubr.bf16.mxu0 0
        %3410 = vmatmul.mubr.bf16.gmra.mrb[0].mxu0 %v2935
        %v3411 = vpop.f32.mrb[0].mxu0
        %v3412 = vadd.f32 %v3007, %v3411
        %v3413 = vpop.f32.mrb[0].mxu0
        %v3414 = vadd.f32 %v3011, %v3413
        %v3415 = vpop.f32.mrb[0].mxu0
        %v3416 = vadd.f32 %v3007, %v3415
        %v3417 = vpop.f32.mrb[0].mxu0
        %v3418 = vadd.f32 %v3011, %v3417
        %3419 = vmatprep.mubr.bf16.mxu0 0
        %3420 = vmatmul.mubr.bf16.gmra.mrb[0].mxu0 %v2936
        %v3421 = vpop.f32.mrb[0].mxu0
        %v3422 = vadd.f32 %v3007, %v3421
        %v3423 = vpop.f32.mrb[0].mxu0
        %v3424 = vadd.f32 %v3011, %v3423
        %v3425 = vpop.f32.mrb[0].mxu0
        %v3426 = vadd.f32 %v3007, %v3425
        %v3427 = vpop.f32.mrb[0].mxu0
        %v3428 = vadd.f32 %v3011, %v3427
        %3429 = vmatprep.mubr.bf16.mxu0 0
        %3430 = vmatmul.mubr.bf16.gmra.mrb[0].mxu0 %v2937
        %v3431 = vpop.f32.mrb[0].mxu0
        %v3432 = vadd.f32 %v3007, %v3431
        %v3433 = vpop.f32.mrb[0].mxu0
        %v3434 = vadd.f32 %v3011, %v3433
        %v3435 = vpop.f32.mrb[0].mxu0
        %v3436 = vadd.f32 %v3007, %v3435
        %v3437 = vpop.f32.mrb[0].mxu0
        %v3438 = vadd.f32 %v3011, %v3437
        %3439 = vdwg.mxu0
        %3440 = vmatprep.subr.bf16.mxu0 %v3218
        %3441 = vmatpush1.bf16.msra.mxu0 %v3217
        %3442 = vmatprep.subr.bf16.mxu0 %v3225
        %3443 = vmatpush1.bf16.msra.mxu0 %v3224
        %3444 = vmatprep.subr.bf16.mxu0 %v3232
        %3445 = vmatpush1.bf16.msra.mxu0 %v3231
        %3446 = vmatprep.subr.bf16.mxu0 %v3239
        %3447 = vmatpush1.bf16.msra.mxu0 %v3238
        %3448 = vmatprep.subr.bf16.mxu0 %v3246
        %3449 = vmatpush1.bf16.msra.mxu0 %v3245
        %3450 = vmatprep.subr.bf16.mxu0 %v3253
        %3451 = vmatpush1.bf16.msra.mxu0 %v3252
        %3452 = vmatprep.subr.bf16.mxu0 %v3260
        %3453 = vmatpush1.bf16.msra.mxu0 %v3259
        %3454 = vmatprep.subr.bf16.mxu0 %v3267
        %3455 = vmatpush1.bf16.msra.mxu0 %v3266
        %3456 = vmatprep.subr.bf16.mxu0 0
        %3457 = vmatpush1.bf16.msra.mxu0 0
        %3458 = vmatprep.subr.bf16.mxu0 0
        %3459 = vmatpush1.bf16.msra.mxu0 0
        %3460 = vmatprep.subr.bf16.mxu0 0
        %3461 = vmatpush1.bf16.msra.mxu0 0
        %3462 = vmatprep.subr.bf16.mxu0 0
        %3463 = vmatpush1.bf16.msra.mxu0 0
        %3464 = vmatprep.subr.bf16.mxu0 0
        %3465 = vmatpush1.bf16.msra.mxu0 0
        %3466 = vmatprep.subr.bf16.mxu0 0
        %3467 = vmatpush1.bf16.msra.mxu0 0
        %3468 = vmatprep.subr.bf16.mxu0 0
        %3469 = vmatpush1.bf16.msra.mxu0 0
        %3470 = vmatprep.subr.bf16.mxu0 0
        %3471 = vmatpush1.bf16.msra.mxu0 0
        %3472 = vmatprep.mubr.bf16.mxu0 0
        %3473 = vmatmul.mubr.bf16.gmra.mrb[0].mxu0 %v2930
        %v3474 = vpop.f32.mrb[0].mxu0
        %v3475 = vadd.f32 %v3015, %v3474
        %v3476 = vpop.f32.mrb[0].mxu0
        %v3477 = vadd.f32 %v3019, %v3476
        %v3478 = vpop.f32.mrb[0].mxu0
        %v3479 = vadd.f32 %v3015, %v3478
        %v3480 = vpop.f32.mrb[0].mxu0
        %v3481 = vadd.f32 %v3019, %v3480
        %3482 = vmatprep.mubr.bf16.mxu0 0
        %3483 = vmatmul.mubr.bf16.gmra.mrb[0].mxu0 %v2931
        %v3484 = vpop.f32.mrb[0].mxu0
        %v3485 = vadd.f32 %v3015, %v3484
        %v3486 = vpop.f32.mrb[0].mxu0
        %v3487 = vadd.f32 %v3019, %v3486
        %v3488 = vpop.f32.mrb[0].mxu0
        %v3489 = vadd.f32 %v3015, %v3488
        %v3490 = vpop.f32.mrb[0].mxu0
        %v3491 = vadd.f32 %v3019, %v3490
        %3492 = vmatprep.mubr.bf16.mxu0 0
        %3493 = vmatmul.mubr.bf16.gmra.mrb[0].mxu0 %v2932
        %v3494 = vpop.f32.mrb[0].mxu0
        %v3495 = vadd.f32 %v3015, %v3494
        %v3496 = vpop.f32.mrb[0].mxu0
        %v3497 = vadd.f32 %v3019, %v3496
        %v3498 = vpop.f32.mrb[0].mxu0
        %v3499 = vadd.f32 %v3015, %v3498
        %v3500 = vpop.f32.mrb[0].mxu0
        %v3501 = vadd.f32 %v3019, %v3500
        %3502 = vmatprep.mubr.bf16.mxu0 0
        %3503 = vmatmul.mubr.bf16.gmra.mrb[0].mxu0 %v2933
        %v3504 = vpop.f32.mrb[0].mxu0
        %v3505 = vadd.f32 %v3015, %v3504
        %v3506 = vpop.f32.mrb[0].mxu0
        %v3507 = vadd.f32 %v3019, %v3506
        %v3508 = vpop.f32.mrb[0].mxu0
        %v3509 = vadd.f32 %v3015, %v3508
        %v3510 = vpop.f32.mrb[0].mxu0
        %v3511 = vadd.f32 %v3019, %v3510
        %3512 = vmatprep.mubr.bf16.mxu0 0
        %3513 = vmatmul.mubr.bf16.gmra.mrb[0].mxu0 %v2934
        %v3514 = vpop.f32.mrb[0].mxu0
        %v3515 = vadd.f32 %v3015, %v3514
        %v3516 = vpop.f32.mrb[0].mxu0
        %v3517 = vadd.f32 %v3019, %v3516
        %v3518 = vpop.f32.mrb[0].mxu0
        %v3519 = vadd.f32 %v3015, %v3518
        %v3520 = vpop.f32.mrb[0].mxu0
        %v3521 = vadd.f32 %v3019, %v3520
        %3522 = vmatprep.mubr.bf16.mxu0 0
        %3523 = vmatmul.mubr.bf16.gmra.mrb[0].mxu0 %v2935
        %v3524 = vpop.f32.mrb[0].mxu0
        %v3525 = vadd.f32 %v3015, %v3524
        %v3526 = vpop.f32.mrb[0].mxu0
        %v3527 = vadd.f32 %v3019, %v3526
        %v3528 = vpop.f32.mrb[0].mxu0
        %v3529 = vadd.f32 %v3015, %v3528
        %v3530 = vpop.f32.mrb[0].mxu0
        %v3531 = vadd.f32 %v3019, %v3530
        %3532 = vmatprep.mubr.bf16.mxu0 0
        %3533 = vmatmul.mubr.bf16.gmra.mrb[0].mxu0 %v2936
        %v3534 = vpop.f32.mrb[0].mxu0
        %v3535 = vadd.f32 %v3015, %v3534
        %v3536 = vpop.f32.mrb[0].mxu0
        %v3537 = vadd.f32 %v3019, %v3536
        %v3538 = vpop.f32.mrb[0].mxu0
        %v3539 = vadd.f32 %v3015, %v3538
        %v3540 = vpop.f32.mrb[0].mxu0
        %v3541 = vadd.f32 %v3019, %v3540
        %3542 = vmatprep.mubr.bf16.mxu0 0
        %3543 = vmatmul.mubr.bf16.gmra.mrb[0].mxu0 %v2937
        %v3544 = vpop.f32.mrb[0].mxu0
        %v3545 = vadd.f32 %v3015, %v3544
        %v3546 = vpop.f32.mrb[0].mxu0
        %v3547 = vadd.f32 %v3019, %v3546
        %v3548 = vpop.f32.mrb[0].mxu0
        %v3549 = vadd.f32 %v3015, %v3548
        %v3550 = vpop.f32.mrb[0].mxu0
        %v3551 = vadd.f32 %v3019, %v3550
        %3552 = vdwg.mxu0
        %3553 = vmatprep.subr.bf16.mxu0 %v3220
        %3554 = vmatpush1.bf16.msra.mxu0 %v3219
        %3555 = vmatprep.subr.bf16.mxu0 %v3227
        %3556 = vmatpush1.bf16.msra.mxu0 %v3226
        %3557 = vmatprep.subr.bf16.mxu0 %v3234
        %3558 = vmatpush1.bf16.msra.mxu0 %v3233
        %3559 = vmatprep.subr.bf16.mxu0 %v3241
        %3560 = vmatpush1.bf16.msra.mxu0 %v3240
        %3561 = vmatprep.subr.bf16.mxu0 %v3248
        %3562 = vmatpush1.bf16.msra.mxu0 %v3247
        %3563 = vmatprep.subr.bf16.mxu0 %v3255
        %3564 = vmatpush1.bf16.msra.mxu0 %v3254
        %3565 = vmatprep.subr.bf16.mxu0 %v3262
        %3566 = vmatpush1.bf16.msra.mxu0 %v3261
        %3567 = vmatprep.subr.bf16.mxu0 %v3269
        %3568 = vmatpush1.bf16.msra.mxu0 %v3268
        %3569 = vmatprep.subr.bf16.mxu0 0
        %3570 = vmatpush1.bf16.msra.mxu0 0
        %3571 = vmatprep.subr.bf16.mxu0 0
        %3572 = vmatpush1.bf16.msra.mxu0 0
        %3573 = vmatprep.subr.bf16.mxu0 0
        %3574 = vmatpush1.bf16.msra.mxu0 0
        %3575 = vmatprep.subr.bf16.mxu0 0
        %3576 = vmatpush1.bf16.msra.mxu0 0
        %3577 = vmatprep.subr.bf16.mxu0 0
        %3578 = vmatpush1.bf16.msra.mxu0 0
        %3579 = vmatprep.subr.bf16.mxu0 0
        %3580 = vmatpush1.bf16.msra.mxu0 0
        %3581 = vmatprep.subr.bf16.mxu0 0
        %3582 = vmatpush1.bf16.msra.mxu0 0
        %3583 = vmatprep.subr.bf16.mxu0 0
        %3584 = vmatpush1.bf16.msra.mxu0 0
        %3585 = vmatprep.mubr.bf16.mxu0 0
        %3586 = vmatmul.mubr.bf16.gmra.mrb[0].mxu0 %v2930
        %v3587 = vpop.f32.mrb[0].mxu0
        %v3588 = vadd.f32 %v3023, %v3587
        %v3589 = vpop.f32.mrb[0].mxu0
        %v3590 = vadd.f32 %v3027, %v3589
        %v3591 = vpop.f32.mrb[0].mxu0
        %v3592 = vadd.f32 %v3023, %v3591
        %v3593 = vpop.f32.mrb[0].mxu0
        %v3594 = vadd.f32 %v3027, %v3593
        %3595 = vmatprep.mubr.bf16.mxu0 0
        %3596 = vmatmul.mubr.bf16.gmra.mrb[0].mxu0 %v2931
        %v3597 = vpop.f32.mrb[0].mxu0
        %v3598 = vadd.f32 %v3023, %v3597
        %v3599 = vpop.f32.mrb[0].mxu0
        %v3600 = vadd.f32 %v3027, %v3599
        %v3601 = vpop.f32.mrb[0].mxu0
        %v3602 = vadd.f32 %v3023, %v3601
        %v3603 = vpop.f32.mrb[0].mxu0
        %v3604 = vadd.f32 %v3027, %v3603
        %3605 = vmatprep.mubr.bf16.mxu0 0
        %3606 = vmatmul.mubr.bf16.gmra.mrb[0].mxu0 %v2932
        %v3607 = vpop.f32.mrb[0].mxu0
        %v3608 = vadd.f32 %v3023, %v3607
        %v3609 = vpop.f32.mrb[0].mxu0
        %v3610 = vadd.f32 %v3027, %v3609
        %v3611 = vpop.f32.mrb[0].mxu0
        %v3612 = vadd.f32 %v3023, %v3611
        %v3613 = vpop.f32.mrb[0].mxu0
        %v3614 = vadd.f32 %v3027, %v3613
        %3615 = vmatprep.mubr.bf16.mxu0 0
        %3616 = vmatmul.mubr.bf16.gmra.mrb[0].mxu0 %v2933
        %v3617 = vpop.f32.mrb[0].mxu0
        %v3618 = vadd.f32 %v3023, %v3617
        %v3619 = vpop.f32.mrb[0].mxu0
        %v3620 = vadd.f32 %v3027, %v3619
        %v3621 = vpop.f32.mrb[0].mxu0
        %v3622 = vadd.f32 %v3023, %v3621
        %v3623 = vpop.f32.mrb[0].mxu0
        %v3624 = vadd.f32 %v3027, %v3623
        %3625 = vmatprep.mubr.bf16.mxu0 0
        %3626 = vmatmul.mubr.bf16.gmra.mrb[0].mxu0 %v2934
        %v3627 = vpop.f32.mrb[0].mxu0
        %v3628 = vadd.f32 %v3023, %v3627
        %v3629 = vpop.f32.mrb[0].mxu0
        %v3630 = vadd.f32 %v3027, %v3629
        %v3631 = vpop.f32.mrb[0].mxu0
        %v3632 = vadd.f32 %v3023, %v3631
        %v3633 = vpop.f32.mrb[0].mxu0
        %v3634 = vadd.f32 %v3027, %v3633
        %3635 = vmatprep.mubr.bf16.mxu0 0
        %3636 = vmatmul.mubr.bf16.gmra.mrb[0].mxu0 %v2935
        %v3637 = vpop.f32.mrb[0].mxu0
        %v3638 = vadd.f32 %v3023, %v3637
        %v3639 = vpop.f32.mrb[0].mxu0
        %v3640 = vadd.f32 %v3027, %v3639
        %v3641 = vpop.f32.mrb[0].mxu0
        %v3642 = vadd.f32 %v3023, %v3641
        %v3643 = vpop.f32.mrb[0].mxu0
        %v3644 = vadd.f32 %v3027, %v3643
        %3645 = vmatprep.mubr.bf16.mxu0 0
        %3646 = vmatmul.mubr.bf16.gmra.mrb[0].mxu0 %v2936
        %v3647 = vpop.f32.mrb[0].mxu0
        %v3648 = vadd.f32 %v3023, %v3647
        %v3649 = vpop.f32.mrb[0].mxu0
        %v3650 = vadd.f32 %v3027, %v3649
        %v3651 = vpop.f32.mrb[0].mxu0
        %v3652 = vadd.f32 %v3023, %v3651
        %v3653 = vpop.f32.mrb[0].mxu0
        %v3654 = vadd.f32 %v3027, %v3653
        %3655 = vmatprep.mubr.bf16.mxu0 0
        %3656 = vmatmul.mubr.bf16.gmra.mrb[0].mxu0 %v2937
        %v3657 = vpop.f32.mrb[0].mxu0
        %v3658 = vadd.f32 %v3023, %v3657
        %v3659 = vpop.f32.mrb[0].mxu0
        %v3660 = vadd.f32 %v3027, %v3659
        %v3661 = vpop.f32.mrb[0].mxu0
        %v3662 = vadd.f32 %v3023, %v3661
        %v3663 = vpop.f32.mrb[0].mxu0
        %v3664 = vadd.f32 %v3027, %v3663
        %3665 = vdwg.mxu0
        %3666 = vmatprep.subr.bf16.mxu0 0
        %3667 = vmatpush1.bf16.msra.mxu0 %v3221
        %3668 = vmatprep.subr.bf16.mxu0 0
        %3669 = vmatpush1.bf16.msra.mxu0 %v3228
        %3670 = vmatprep.subr.bf16.mxu0 0
        %3671 = vmatpush1.bf16.msra.mxu0 %v3235
        %3672 = vmatprep.subr.bf16.mxu0 0
        %3673 = vmatpush1.bf16.msra.mxu0 %v3242
        %3674 = vmatprep.subr.bf16.mxu0 0
        %3675 = vmatpush1.bf16.msra.mxu0 %v3249
        %3676 = vmatprep.subr.bf16.mxu0 0
        %3677 = vmatpush1.bf16.msra.mxu0 %v3256
        %3678 = vmatprep.subr.bf16.mxu0 0
        %3679 = vmatpush1.bf16.msra.mxu0 %v3263
        %3680 = vmatprep.subr.bf16.mxu0 0
        %3681 = vmatpush1.bf16.msra.mxu0 %v3270
        %3682 = vmatprep.subr.bf16.mxu0 0
        %3683 = vmatpush1.bf16.msra.mxu0 0
        %3684 = vmatprep.subr.bf16.mxu0 0
        %3685 = vmatpush1.bf16.msra.mxu0 0
        %3686 = vmatprep.subr.bf16.mxu0 0
        %3687 = vmatpush1.bf16.msra.mxu0 0
        %3688 = vmatprep.subr.bf16.mxu0 0
        %3689 = vmatpush1.bf16.msra.mxu0 0
        %3690 = vmatprep.subr.bf16.mxu0 0
        %3691 = vmatpush1.bf16.msra.mxu0 0
        %3692 = vmatprep.subr.bf16.mxu0 0
        %3693 = vmatpush1.bf16.msra.mxu0 0
        %3694 = vmatprep.subr.bf16.mxu0 0
        %3695 = vmatpush1.bf16.msra.mxu0 0
        %3696 = vmatprep.subr.bf16.mxu0 0
        %3697 = vmatpush1.bf16.msra.mxu0 0
        %3698 = vmatprep.mubr.bf16.mxu0 0
        %3699 = vmatmul.mubr.bf16.gmra.mrb[0].mxu0 %v2930
        %v3700 = vpop.f32.mrb[0].mxu0
        %v3701 = vadd.f32 %v3031, %v3700
        %v3702 = vpop.f32.mrb[0].mxu0
        %v3703 = vpop.f32.mrb[0].mxu0
        %v3704 = vadd.f32 %v3031, %v3703
        %v3705 = vpop.f32.mrb[0].mxu0
        %3706 = vmatprep.mubr.bf16.mxu0 0
        %3707 = vmatmul.mubr.bf16.gmra.mrb[0].mxu0 %v2931
        %v3708 = vpop.f32.mrb[0].mxu0
        %v3709 = vadd.f32 %v3031, %v3708
        %v3710 = vpop.f32.mrb[0].mxu0
        %v3711 = vpop.f32.mrb[0].mxu0
        %v3712 = vadd.f32 %v3031, %v3711
        %v3713 = vpop.f32.mrb[0].mxu0
        %3714 = vmatprep.mubr.bf16.mxu0 0
        %3715 = vmatmul.mubr.bf16.gmra.mrb[0].mxu0 %v2932
        %v3716 = vpop.f32.mrb[0].mxu0
        %v3717 = vadd.f32 %v3031, %v3716
        %v3718 = vpop.f32.mrb[0].mxu0
        %v3719 = vpop.f32.mrb[0].mxu0
        %v3720 = vadd.f32 %v3031, %v3719
        %v3721 = vpop.f32.mrb[0].mxu0
        %3722 = vmatprep.mubr.bf16.mxu0 0
        %3723 = vmatmul.mubr.bf16.gmra.mrb[0].mxu0 %v2933
        %v3724 = vpop.f32.mrb[0].mxu0
        %v3725 = vadd.f32 %v3031, %v3724
        %v3726 = vpop.f32.mrb[0].mxu0
        %v3727 = vpop.f32.mrb[0].mxu0
        %v3728 = vadd.f32 %v3031, %v3727
        %v3729 = vpop.f32.mrb[0].mxu0
        %3730 = vmatprep.mubr.bf16.mxu0 0
        %3731 = vmatmul.mubr.bf16.gmra.mrb[0].mxu0 %v2934
        %v3732 = vpop.f32.mrb[0].mxu0
        %v3733 = vadd.f32 %v3031, %v3732
        %v3734 = vpop.f32.mrb[0].mxu0
        %v3735 = vpop.f32.mrb[0].mxu0
        %v3736 = vadd.f32 %v3031, %v3735
        %v3737 = vpop.f32.mrb[0].mxu0
        %3738 = vmatprep.mubr.bf16.mxu0 0
        %3739 = vmatmul.mubr.bf16.gmra.mrb[0].mxu0 %v2935
        %v3740 = vpop.f32.mrb[0].mxu0
        %v3741 = vadd.f32 %v3031, %v3740
        %v3742 = vpop.f32.mrb[0].mxu0
        %v3743 = vpop.f32.mrb[0].mxu0
        %v3744 = vadd.f32 %v3031, %v3743
        %v3745 = vpop.f32.mrb[0].mxu0
        %3746 = vmatprep.mubr.bf16.mxu0 0
        %3747 = vmatmul.mubr.bf16.gmra.mrb[0].mxu0 %v2936
        %v3748 = vpop.f32.mrb[0].mxu0
        %v3749 = vadd.f32 %v3031, %v3748
        %v3750 = vpop.f32.mrb[0].mxu0
        %v3751 = vpop.f32.mrb[0].mxu0
        %v3752 = vadd.f32 %v3031, %v3751
        %v3753 = vpop.f32.mrb[0].mxu0
        %3754 = vmatprep.mubr.bf16.mxu0 0
        %3755 = vmatmul.mubr.bf16.gmra.mrb[0].mxu0 %v2937
        %v3756 = vpop.f32.mrb[0].mxu0
        %v3757 = vadd.f32 %v3031, %v3756
        %v3758 = vpop.f32.mrb[0].mxu0
        %v3759 = vpop.f32.mrb[0].mxu0
        %v3760 = vadd.f32 %v3031, %v3759
        %v3761 = vpop.f32.mrb[0].mxu0
        %3762 = vdwg.mxu0
        %v3763 = vand.u32 2147483647, %v3362
        %v3764 = vand.u32 2147483647, %v3364
        %v3765 = vand.u32 2147483647, %v3475
        %v3766 = vand.u32 2147483647, %v3477
        %v3767 = vand.u32 2147483647, %v3588
        %v3768 = vand.u32 2147483647, %v3590
        %v3769 = vand.u32 2147483647, %v3701
        %v3770 = vand.u32 2147483647, %v3366
        %v3771 = vand.u32 2147483647, %v3368
        %v3772 = vand.u32 2147483647, %v3479
        %v3773 = vand.u32 2147483647, %v3481
        %v3774 = vand.u32 2147483647, %v3592
        %v3775 = vand.u32 2147483647, %v3594
        %v3776 = vand.u32 2147483647, %v3704
        %v3777 = vand.u32 2147483647, %v3372
        %v3778 = vand.u32 2147483647, %v3374
        %v3779 = vand.u32 2147483647, %v3485
        %v3780 = vand.u32 2147483647, %v3487
        %v3781 = vand.u32 2147483647, %v3598
        %v3782 = vand.u32 2147483647, %v3600
        %v3783 = vand.u32 2147483647, %v3709
        %v3784 = vand.u32 2147483647, %v3376
        %v3785 = vand.u32 2147483647, %v3378
        %v3786 = vand.u32 2147483647, %v3489
        %v3787 = vand.u32 2147483647, %v3491
        %v3788 = vand.u32 2147483647, %v3602
        %v3789 = vand.u32 2147483647, %v3604
        %v3790 = vand.u32 2147483647, %v3712
        %v3791 = vand.u32 2147483647, %v3382
        %v3792 = vand.u32 2147483647, %v3384
        %v3793 = vand.u32 2147483647, %v3495
        %v3794 = vand.u32 2147483647, %v3497
        %v3795 = vand.u32 2147483647, %v3608
        %v3796 = vand.u32 2147483647, %v3610
        %v3797 = vand.u32 2147483647, %v3717
        %v3798 = vand.u32 2147483647, %v3386
        %v3799 = vand.u32 2147483647, %v3388
        %v3800 = vand.u32 2147483647, %v3499
        %v3801 = vand.u32 2147483647, %v3501
        %v3802 = vand.u32 2147483647, %v3612
        %v3803 = vand.u32 2147483647, %v3614
        %v3804 = vand.u32 2147483647, %v3720
        %v3805 = vand.u32 2147483647, %v3392
        %v3806 = vand.u32 2147483647, %v3394
        %v3807 = vand.u32 2147483647, %v3505
        %v3808 = vand.u32 2147483647, %v3507
        %v3809 = vand.u32 2147483647, %v3618
        %v3810 = vand.u32 2147483647, %v3620
        %v3811 = vand.u32 2147483647, %v3725
        %v3812 = vand.u32 2147483647, %v3396
        %v3813 = vand.u32 2147483647, %v3398
        %v3814 = vand.u32 2147483647, %v3509
        %v3815 = vand.u32 2147483647, %v3511
        %v3816 = vand.u32 2147483647, %v3622
        %v3817 = vand.u32 2147483647, %v3624
        %v3818 = vand.u32 2147483647, %v3728
        %v3819 = vand.u32 2147483647, %v3402
        %v3820 = vand.u32 2147483647, %v3404
        %v3821 = vand.u32 2147483647, %v3515
        %v3822 = vand.u32 2147483647, %v3517
        %v3823 = vand.u32 2147483647, %v3628
        %v3824 = vand.u32 2147483647, %v3630
        %v3825 = vand.u32 2147483647, %v3733
        %v3826 = vand.u32 2147483647, %v3406
        %v3827 = vand.u32 2147483647, %v3408
        %v3828 = vand.u32 2147483647, %v3519
        %v3829 = vand.u32 2147483647, %v3521
        %v3830 = vand.u32 2147483647, %v3632
        %v3831 = vand.u32 2147483647, %v3634
        %v3832 = vand.u32 2147483647, %v3736
        %v3833 = vand.u32 2147483647, %v3412
        %v3834 = vand.u32 2147483647, %v3414
        %v3835 = vand.u32 2147483647, %v3525
        %v3836 = vand.u32 2147483647, %v3527
        %v3837 = vand.u32 2147483647, %v3638
        %v3838 = vand.u32 2147483647, %v3640
        %v3839 = vand.u32 2147483647, %v3741
        %v3840 = vand.u32 2147483647, %v3416
        %v3841 = vand.u32 2147483647, %v3418
        %v3842 = vand.u32 2147483647, %v3529
        %v3843 = vand.u32 2147483647, %v3531
        %v3844 = vand.u32 2147483647, %v3642
        %v3845 = vand.u32 2147483647, %v3644
        %v3846 = vand.u32 2147483647, %v3744
        %v3847 = vand.u32 2147483647, %v3422
        %v3848 = vand.u32 2147483647, %v3424
        %v3849 = vand.u32 2147483647, %v3535
        %v3850 = vand.u32 2147483647, %v3537
        %v3851 = vand.u32 2147483647, %v3648
        %v3852 = vand.u32 2147483647, %v3650
        %v3853 = vand.u32 2147483647, %v3749
        %v3854 = vand.u32 2147483647, %v3426
        %v3855 = vand.u32 2147483647, %v3428
        %v3856 = vand.u32 2147483647, %v3539
        %v3857 = vand.u32 2147483647, %v3541
        %v3858 = vand.u32 2147483647, %v3652
        %v3859 = vand.u32 2147483647, %v3654
        %v3860 = vand.u32 2147483647, %v3752
        %v3861 = vand.u32 2147483647, %v3432
        %v3862 = vand.u32 2147483647, %v3434
        %v3863 = vand.u32 2147483647, %v3545
        %v3864 = vand.u32 2147483647, %v3547
        %v3865 = vand.u32 2147483647, %v3658
        %v3866 = vand.u32 2147483647, %v3660
        %v3867 = vand.u32 2147483647, %v3757
        %v3868 = vand.u32 2147483647, %v3436
        %v3869 = vand.u32 2147483647, %v3438
        %v3870 = vand.u32 2147483647, %v3549
        %v3871 = vand.u32 2147483647, %v3551
        %v3872 = vand.u32 2147483647, %v3662
        %v3873 = vand.u32 2147483647, %v3664
        %v3874 = vand.u32 2147483647, %v3760
        %v3875 = vsub.f32 0.0, %v3763
        %v3876 = vsub.f32 0.0, %v3764
        %v3877 = vsub.f32 0.0, %v3765
        %v3878 = vsub.f32 0.0, %v3766
        %v3879 = vsub.f32 0.0, %v3767
        %v3880 = vsub.f32 0.0, %v3768
        %v3881 = vsub.f32 0.0, %v3769
        %v3882 = vsub.f32 0.0, %v3770
        %v3883 = vsub.f32 0.0, %v3771
        %v3884 = vsub.f32 0.0, %v3772
        %v3885 = vsub.f32 0.0, %v3773
        %v3886 = vsub.f32 0.0, %v3774
        %v3887 = vsub.f32 0.0, %v3775
        %v3888 = vsub.f32 0.0, %v3776
        %v3889 = vsub.f32 0.0, %v3777
        %v3890 = vsub.f32 0.0, %v3778
        %v3891 = vsub.f32 0.0, %v3779
        %v3892 = vsub.f32 0.0, %v3780
        %v3893 = vsub.f32 0.0, %v3781
        %v3894 = vsub.f32 0.0, %v3782
        %v3895 = vsub.f32 0.0, %v3783
        %v3896 = vsub.f32 0.0, %v3784
        %v3897 = vsub.f32 0.0, %v3785
        %v3898 = vsub.f32 0.0, %v3786
        %v3899 = vsub.f32 0.0, %v3787
        %v3900 = vsub.f32 0.0, %v3788
        %v3901 = vsub.f32 0.0, %v3789
        %v3902 = vsub.f32 0.0, %v3790
        %v3903 = vsub.f32 0.0, %v3791
        %v3904 = vsub.f32 0.0, %v3792
        %v3905 = vsub.f32 0.0, %v3793
        %v3906 = vsub.f32 0.0, %v3794
        %v3907 = vsub.f32 0.0, %v3795
        %v3908 = vsub.f32 0.0, %v3796
        %v3909 = vsub.f32 0.0, %v3797
        %v3910 = vsub.f32 0.0, %v3798
        %v3911 = vsub.f32 0.0, %v3799
        %v3912 = vsub.f32 0.0, %v3800
        %v3913 = vsub.f32 0.0, %v3801
        %v3914 = vsub.f32 0.0, %v3802
        %v3915 = vsub.f32 0.0, %v3803
        %v3916 = vsub.f32 0.0, %v3804
        %v3917 = vsub.f32 0.0, %v3805
        %v3918 = vsub.f32 0.0, %v3806
        %v3919 = vsub.f32 0.0, %v3807
        %v3920 = vsub.f32 0.0, %v3808
        %v3921 = vsub.f32 0.0, %v3809
        %v3922 = vsub.f32 0.0, %v3810
        %v3923 = vsub.f32 0.0, %v3811
        %v3924 = vsub.f32 0.0, %v3812
        %v3925 = vsub.f32 0.0, %v3813
        %v3926 = vsub.f32 0.0, %v3814
        %v3927 = vsub.f32 0.0, %v3815
        %v3928 = vsub.f32 0.0, %v3816
        %v3929 = vsub.f32 0.0, %v3817
        %v3930 = vsub.f32 0.0, %v3818
        %v3931 = vsub.f32 0.0, %v3819
        %v3932 = vsub.f32 0.0, %v3820
        %v3933 = vsub.f32 0.0, %v3821
        %v3934 = vsub.f32 0.0, %v3822
        %v3935 = vsub.f32 0.0, %v3823
        %v3936 = vsub.f32 0.0, %v3824
        %v3937 = vsub.f32 0.0, %v3825
        %v3938 = vsub.f32 0.0, %v3826
        %v3939 = vsub.f32 0.0, %v3827
        %v3940 = vsub.f32 0.0, %v3828
        %v3941 = vsub.f32 0.0, %v3829
        %v3942 = vsub.f32 0.0, %v3830
        %v3943 = vsub.f32 0.0, %v3831
        %v3944 = vsub.f32 0.0, %v3832
        %v3945 = vsub.f32 0.0, %v3833
        %v3946 = vsub.f32 0.0, %v3834
        %v3947 = vsub.f32 0.0, %v3835
        %v3948 = vsub.f32 0.0, %v3836
        %v3949 = vsub.f32 0.0, %v3837
        %v3950 = vsub.f32 0.0, %v3838
        %v3951 = vsub.f32 0.0, %v3839
        %v3952 = vsub.f32 0.0, %v3840
        %v3953 = vsub.f32 0.0, %v3841
        %v3954 = vsub.f32 0.0, %v3842
        %v3955 = vsub.f32 0.0, %v3843
        %v3956 = vsub.f32 0.0, %v3844
        %v3957 = vsub.f32 0.0, %v3845
        %v3958 = vsub.f32 0.0, %v3846
        %v3959 = vsub.f32 0.0, %v3847
        %v3960 = vsub.f32 0.0, %v3848
        %v3961 = vsub.f32 0.0, %v3849
        %v3962 = vsub.f32 0.0, %v3850
        %v3963 = vsub.f32 0.0, %v3851
        %v3964 = vsub.f32 0.0, %v3852
        %v3965 = vsub.f32 0.0, %v3853
        %v3966 = vsub.f32 0.0, %v3854
        %v3967 = vsub.f32 0.0, %v3855
        %v3968 = vsub.f32 0.0, %v3856
        %v3969 = vsub.f32 0.0, %v3857
        %v3970 = vsub.f32 0.0, %v3858
        %v3971 = vsub.f32 0.0, %v3859
        %v3972 = vsub.f32 0.0, %v3860
        %v3973 = vsub.f32 0.0, %v3861
        %v3974 = vsub.f32 0.0, %v3862
        %v3975 = vsub.f32 0.0, %v3863
        %v3976 = vsub.f32 0.0, %v3864
        %v3977 = vsub.f32 0.0, %v3865
        %v3978 = vsub.f32 0.0, %v3866
        %v3979 = vsub.f32 0.0, %v3867
        %v3980 = vsub.f32 0.0, %v3868
        %v3981 = vsub.f32 0.0, %v3869
        %v3982 = vsub.f32 0.0, %v3870
        %v3983 = vsub.f32 0.0, %v3871
        %v3984 = vsub.f32 0.0, %v3872
        %v3985 = vsub.f32 0.0, %v3873
        %v3986 = vsub.f32 0.0, %v3874
        %v3987 = vmul.f32 %v3875, 1.442695
        %v3988 = vpow.pop %v3987
        %v3989 = vmul.f32 %v3876, 1.442695
        %v3990 = vpow.pop %v3989
        %v3991 = vmul.f32 %v3877, 1.442695
        %v3992 = vpow.pop %v3991
        %v3993 = vmul.f32 %v3878, 1.442695
        %v3994 = vpow.pop %v3993
        %v3995 = vmul.f32 %v3879, 1.442695
        %v3996 = vpow.pop %v3995
        %v3997 = vmul.f32 %v3880, 1.442695
        %v3998 = vpow.pop %v3997
        %v3999 = vmul.f32 %v3881, 1.442695
        %v4000 = vpow.pop %v3999
        %v4001 = vmul.f32 %v3882, 1.442695
        %v4002 = vpow.pop %v4001
        %v4003 = vmul.f32 %v3883, 1.442695
        %v4004 = vpow.pop %v4003
        %v4005 = vmul.f32 %v3884, 1.442695
        %v4006 = vpow.pop %v4005
        %v4007 = vmul.f32 %v3885, 1.442695
        %v4008 = vpow.pop %v4007
        %v4009 = vmul.f32 %v3886, 1.442695
        %v4010 = vpow.pop %v4009
        %v4011 = vmul.f32 %v3887, 1.442695
        %v4012 = vpow.pop %v4011
        %v4013 = vmul.f32 %v3888, 1.442695
        %v4014 = vpow.pop %v4013
        %v4015 = vmul.f32 %v3889, 1.442695
        %v4016 = vpow.pop %v4015
        %v4017 = vmul.f32 %v3890, 1.442695
        %v4018 = vpow.pop %v4017
        %v4019 = vmul.f32 %v3891, 1.442695
        %v4020 = vpow.pop %v4019
        %v4021 = vmul.f32 %v3892, 1.442695
        %v4022 = vpow.pop %v4021
        %v4023 = vmul.f32 %v3893, 1.442695
        %v4024 = vpow.pop %v4023
        %v4025 = vmul.f32 %v3894, 1.442695
        %v4026 = vpow.pop %v4025
        %v4027 = vmul.f32 %v3895, 1.442695
        %v4028 = vpow.pop %v4027
        %v4029 = vmul.f32 %v3896, 1.442695
        %v4030 = vpow.pop %v4029
        %v4031 = vmul.f32 %v3897, 1.442695
        %v4032 = vpow.pop %v4031
        %v4033 = vmul.f32 %v3898, 1.442695
        %v4034 = vpow.pop %v4033
        %v4035 = vmul.f32 %v3899, 1.442695
        %v4036 = vpow.pop %v4035
        %v4037 = vmul.f32 %v3900, 1.442695
        %v4038 = vpow.pop %v4037
        %v4039 = vmul.f32 %v3901, 1.442695
        %v4040 = vpow.pop %v4039
        %v4041 = vmul.f32 %v3902, 1.442695
        %v4042 = vpow.pop %v4041
        %v4043 = vmul.f32 %v3903, 1.442695
        %v4044 = vpow.pop %v4043
        %v4045 = vmul.f32 %v3904, 1.442695
        %v4046 = vpow.pop %v4045
        %v4047 = vmul.f32 %v3905, 1.442695
        %v4048 = vpow.pop %v4047
        %v4049 = vmul.f32 %v3906, 1.442695
        %v4050 = vpow.pop %v4049
        %v4051 = vmul.f32 %v3907, 1.442695
        %v4052 = vpow.pop %v4051
        %v4053 = vmul.f32 %v3908, 1.442695
        %v4054 = vpow.pop %v4053
        %v4055 = vmul.f32 %v3909, 1.442695
        %v4056 = vpow.pop %v4055
        %v4057 = vmul.f32 %v3910, 1.442695
        %v4058 = vpow.pop %v4057
        %v4059 = vmul.f32 %v3911, 1.442695
        %v4060 = vpow.pop %v4059
        %v4061 = vmul.f32 %v3912, 1.442695
        %v4062 = vpow.pop %v4061
        %v4063 = vmul.f32 %v3913, 1.442695
        %v4064 = vpow.pop %v4063
        %v4065 = vmul.f32 %v3914, 1.442695
        %v4066 = vpow.pop %v4065
        %v4067 = vmul.f32 %v3915, 1.442695
        %v4068 = vpow.pop %v4067
        %v4069 = vmul.f32 %v3916, 1.442695
        %v4070 = vpow.pop %v4069
        %v4071 = vmul.f32 %v3917, 1.442695
        %v4072 = vpow.pop %v4071
        %v4073 = vmul.f32 %v3918, 1.442695
        %v4074 = vpow.pop %v4073
        %v4075 = vmul.f32 %v3919, 1.442695
        %v4076 = vpow.pop %v4075
        %v4077 = vmul.f32 %v3920, 1.442695
        %v4078 = vpow.pop %v4077
        %v4079 = vmul.f32 %v3921, 1.442695
        %v4080 = vpow.pop %v4079
        %v4081 = vmul.f32 %v3922, 1.442695
        %v4082 = vpow.pop %v4081
        %v4083 = vmul.f32 %v3923, 1.442695
        %v4084 = vpow.pop %v4083
        %v4085 = vmul.f32 %v3924, 1.442695
        %v4086 = vpow.pop %v4085
        %v4087 = vmul.f32 %v3925, 1.442695
        %v4088 = vpow.pop %v4087
        %v4089 = vmul.f32 %v3926, 1.442695
        %v4090 = vpow.pop %v4089
        %v4091 = vmul.f32 %v3927, 1.442695
        %v4092 = vpow.pop %v4091
        %v4093 = vmul.f32 %v3928, 1.442695
        %v4094 = vpow.pop %v4093
        %v4095 = vmul.f32 %v3929, 1.442695
        %v4096 = vpow.pop %v4095
        %v4097 = vmul.f32 %v3930, 1.442695
        %v4098 = vpow.pop %v4097
        %v4099 = vmul.f32 %v3931, 1.442695
        %v4100 = vpow.pop %v4099
        %v4101 = vmul.f32 %v3932, 1.442695
        %v4102 = vpow.pop %v4101
        %v4103 = vmul.f32 %v3933, 1.442695
        %v4104 = vpow.pop %v4103
        %v4105 = vmul.f32 %v3934, 1.442695
        %v4106 = vpow.pop %v4105
        %v4107 = vmul.f32 %v3935, 1.442695
        %v4108 = vpow.pop %v4107
        %v4109 = vmul.f32 %v3936, 1.442695
        %v4110 = vpow.pop %v4109
        %v4111 = vmul.f32 %v3937, 1.442695
        %v4112 = vpow.pop %v4111
        %v4113 = vmul.f32 %v3938, 1.442695
        %v4114 = vpow.pop %v4113
        %v4115 = vmul.f32 %v3939, 1.442695
        %v4116 = vpow.pop %v4115
        %v4117 = vmul.f32 %v3940, 1.442695
        %v4118 = vpow.pop %v4117
        %v4119 = vmul.f32 %v3941, 1.442695
        %v4120 = vpow.pop %v4119
        %v4121 = vmul.f32 %v3942, 1.442695
        %v4122 = vpow.pop %v4121
        %v4123 = vmul.f32 %v3943, 1.442695
        %v4124 = vpow.pop %v4123
        %v4125 = vmul.f32 %v3944, 1.442695
        %v4126 = vpow.pop %v4125
        %v4127 = vmul.f32 %v3945, 1.442695
        %v4128 = vpow.pop %v4127
        %v4129 = vmul.f32 %v3946, 1.442695
        %v4130 = vpow.pop %v4129
        %v4131 = vmul.f32 %v3947, 1.442695
        %v4132 = vpow.pop %v4131
        %v4133 = vmul.f32 %v3948, 1.442695
        %v4134 = vpow.pop %v4133
        %v4135 = vmul.f32 %v3949, 1.442695
        %v4136 = vpow.pop %v4135
        %v4137 = vmul.f32 %v3950, 1.442695
        %v4138 = vpow.pop %v4137
        %v4139 = vmul.f32 %v3951, 1.442695
        %v4140 = vpow.pop %v4139
        %v4141 = vmul.f32 %v3952, 1.442695
        %v4142 = vpow.pop %v4141
        %v4143 = vmul.f32 %v3953, 1.442695
        %v4144 = vpow.pop %v4143
        %v4145 = vmul.f32 %v3954, 1.442695
        %v4146 = vpow.pop %v4145
        %v4147 = vmul.f32 %v3955, 1.442695
        %v4148 = vpow.pop %v4147
        %v4149 = vmul.f32 %v3956, 1.442695
        %v4150 = vpow.pop %v4149
        %v4151 = vmul.f32 %v3957, 1.442695
        %v4152 = vpow.pop %v4151
        %v4153 = vmul.f32 %v3958, 1.442695
        %v4154 = vpow.pop %v4153
        %v4155 = vmul.f32 %v3959, 1.442695
        %v4156 = vpow.pop %v4155
        %v4157 = vmul.f32 %v3960, 1.442695
        %v4158 = vpow.pop %v4157
        %v4159 = vmul.f32 %v3961, 1.442695
        %v4160 = vpow.pop %v4159
        %v4161 = vmul.f32 %v3962, 1.442695
        %v4162 = vpow.pop %v4161
        %v4163 = vmul.f32 %v3963, 1.442695
        %v4164 = vpow.pop %v4163
        %v4165 = vmul.f32 %v3964, 1.442695
        %v4166 = vpow.pop %v4165
        %v4167 = vmul.f32 %v3965, 1.442695
        %v4168 = vpow.pop %v4167
        %v4169 = vmul.f32 %v3966, 1.442695
        %v4170 = vpow.pop %v4169
        %v4171 = vmul.f32 %v3967, 1.442695
        %v4172 = vpow.pop %v4171
        %v4173 = vmul.f32 %v3968, 1.442695
        %v4174 = vpow.pop %v4173
        %v4175 = vmul.f32 %v3969, 1.442695
        %v4176 = vpow.pop %v4175
        %v4177 = vmul.f32 %v3970, 1.442695
        %v4178 = vpow.pop %v4177
        %v4179 = vmul.f32 %v3971, 1.442695
        %v4180 = vpow.pop %v4179
        %v4181 = vmul.f32 %v3972, 1.442695
        %v4182 = vpow.pop %v4181
        %v4183 = vmul.f32 %v3973, 1.442695
        %v4184 = vpow.pop %v4183
        %v4185 = vmul.f32 %v3974, 1.442695
        %v4186 = vpow.pop %v4185
        %v4187 = vmul.f32 %v3975, 1.442695
        %v4188 = vpow.pop %v4187
        %v4189 = vmul.f32 %v3976, 1.442695
        %v4190 = vpow.pop %v4189
        %v4191 = vmul.f32 %v3977, 1.442695
        %v4192 = vpow.pop %v4191
        %v4193 = vmul.f32 %v3978, 1.442695
        %v4194 = vpow.pop %v4193
        %v4195 = vmul.f32 %v3979, 1.442695
        %v4196 = vpow.pop %v4195
        %v4197 = vmul.f32 %v3980, 1.442695
        %v4198 = vpow.pop %v4197
        %v4199 = vmul.f32 %v3981, 1.442695
        %v4200 = vpow.pop %v4199
        %v4201 = vmul.f32 %v3982, 1.442695
        %v4202 = vpow.pop %v4201
        %v4203 = vmul.f32 %v3983, 1.442695
        %v4204 = vpow.pop %v4203
        %v4205 = vmul.f32 %v3984, 1.442695
        %v4206 = vpow.pop %v4205
        %v4207 = vmul.f32 %v3985, 1.442695
        %v4208 = vpow.pop %v4207
        %v4209 = vmul.f32 %v3986, 1.442695
        %v4210 = vpow.pop %v4209
        %vm4211 = vcmp.ge.f32.partialorder %v3362, 0.0
        %vm4212 = vcmp.ge.f32.partialorder %v3364, 0.0
        %vm4213 = vcmp.ge.f32.partialorder %v3475, 0.0
        %vm4214 = vcmp.ge.f32.partialorder %v3477, 0.0
        %vm4215 = vcmp.ge.f32.partialorder %v3588, 0.0
        %vm4216 = vcmp.ge.f32.partialorder %v3590, 0.0
        %vm4217 = vcmp.ge.f32.partialorder %v3701, 0.0
        %vm4218 = vcmp.ge.f32.partialorder %v3366, 0.0
        %vm4219 = vcmp.ge.f32.partialorder %v3368, 0.0
        %vm4220 = vcmp.ge.f32.partialorder %v3479, 0.0
        %vm4221 = vcmp.ge.f32.partialorder %v3481, 0.0
        %vm4222 = vcmp.ge.f32.partialorder %v3592, 0.0
        %vm4223 = vcmp.ge.f32.partialorder %v3594, 0.0
        %vm4224 = vcmp.ge.f32.partialorder %v3704, 0.0
        %vm4225 = vcmp.ge.f32.partialorder %v3372, 0.0
        %vm4226 = vcmp.ge.f32.partialorder %v3374, 0.0
        %vm4227 = vcmp.ge.f32.partialorder %v3485, 0.0
        %vm4228 = vcmp.ge.f32.partialorder %v3487, 0.0
        %vm4229 = vcmp.ge.f32.partialorder %v3598, 0.0
        %vm4230 = vcmp.ge.f32.partialorder %v3600, 0.0
        %vm4231 = vcmp.ge.f32.partialorder %v3709, 0.0
        %vm4232 = vcmp.ge.f32.partialorder %v3376, 0.0
        %vm4233 = vcmp.ge.f32.partialorder %v3378, 0.0
        %vm4234 = vcmp.ge.f32.partialorder %v3489, 0.0
        %vm4235 = vcmp.ge.f32.partialorder %v3491, 0.0
        %vm4236 = vcmp.ge.f32.partialorder %v3602, 0.0
        %vm4237 = vcmp.ge.f32.partialorder %v3604, 0.0
        %vm4238 = vcmp.ge.f32.partialorder %v3712, 0.0
        %vm4239 = vcmp.ge.f32.partialorder %v3382, 0.0
        %vm4240 = vcmp.ge.f32.partialorder %v3384, 0.0
        %vm4241 = vcmp.ge.f32.partialorder %v3495, 0.0
        %vm4242 = vcmp.ge.f32.partialorder %v3497, 0.0
        %vm4243 = vcmp.ge.f32.partialorder %v3608, 0.0
        %vm4244 = vcmp.ge.f32.partialorder %v3610, 0.0
        %vm4245 = vcmp.ge.f32.partialorder %v3717, 0.0
        %vm4246 = vcmp.ge.f32.partialorder %v3386, 0.0
        %vm4247 = vcmp.ge.f32.partialorder %v3388, 0.0
        %vm4248 = vcmp.ge.f32.partialorder %v3499, 0.0
        %vm4249 = vcmp.ge.f32.partialorder %v3501, 0.0
        %vm4250 = vcmp.ge.f32.partialorder %v3612, 0.0
        %vm4251 = vcmp.ge.f32.partialorder %v3614, 0.0
        %vm4252 = vcmp.ge.f32.partialorder %v3720, 0.0
        %vm4253 = vcmp.ge.f32.partialorder %v3392, 0.0
        %vm4254 = vcmp.ge.f32.partialorder %v3394, 0.0
        %vm4255 = vcmp.ge.f32.partialorder %v3505, 0.0
        %vm4256 = vcmp.ge.f32.partialorder %v3507, 0.0
        %vm4257 = vcmp.ge.f32.partialorder %v3618, 0.0
        %vm4258 = vcmp.ge.f32.partialorder %v3620, 0.0
        %vm4259 = vcmp.ge.f32.partialorder %v3725, 0.0
        %vm4260 = vcmp.ge.f32.partialorder %v3396, 0.0
        %vm4261 = vcmp.ge.f32.partialorder %v3398, 0.0
        %vm4262 = vcmp.ge.f32.partialorder %v3509, 0.0
        %vm4263 = vcmp.ge.f32.partialorder %v3511, 0.0
        %vm4264 = vcmp.ge.f32.partialorder %v3622, 0.0
        %vm4265 = vcmp.ge.f32.partialorder %v3624, 0.0
        %vm4266 = vcmp.ge.f32.partialorder %v3728, 0.0
        %vm4267 = vcmp.ge.f32.partialorder %v3402, 0.0
        %vm4268 = vcmp.ge.f32.partialorder %v3404, 0.0
        %vm4269 = vcmp.ge.f32.partialorder %v3515, 0.0
        %vm4270 = vcmp.ge.f32.partialorder %v3517, 0.0
        %vm4271 = vcmp.ge.f32.partialorder %v3628, 0.0
        %vm4272 = vcmp.ge.f32.partialorder %v3630, 0.0
        %vm4273 = vcmp.ge.f32.partialorder %v3733, 0.0
        %vm4274 = vcmp.ge.f32.partialorder %v3406, 0.0
        %vm4275 = vcmp.ge.f32.partialorder %v3408, 0.0
        %vm4276 = vcmp.ge.f32.partialorder %v3519, 0.0
        %vm4277 = vcmp.ge.f32.partialorder %v3521, 0.0
        %vm4278 = vcmp.ge.f32.partialorder %v3632, 0.0
        %vm4279 = vcmp.ge.f32.partialorder %v3634, 0.0
        %vm4280 = vcmp.ge.f32.partialorder %v3736, 0.0
        %vm4281 = vcmp.ge.f32.partialorder %v3412, 0.0
        %vm4282 = vcmp.ge.f32.partialorder %v3414, 0.0
        %vm4283 = vcmp.ge.f32.partialorder %v3525, 0.0
        %vm4284 = vcmp.ge.f32.partialorder %v3527, 0.0
        %vm4285 = vcmp.ge.f32.partialorder %v3638, 0.0
        %vm4286 = vcmp.ge.f32.partialorder %v3640, 0.0
        %vm4287 = vcmp.ge.f32.partialorder %v3741, 0.0
        %vm4288 = vcmp.ge.f32.partialorder %v3416, 0.0
        %vm4289 = vcmp.ge.f32.partialorder %v3418, 0.0
        %vm4290 = vcmp.ge.f32.partialorder %v3529, 0.0
        %vm4291 = vcmp.ge.f32.partialorder %v3531, 0.0
        %vm4292 = vcmp.ge.f32.partialorder %v3642, 0.0
        %vm4293 = vcmp.ge.f32.partialorder %v3644, 0.0
        %vm4294 = vcmp.ge.f32.partialorder %v3744, 0.0
        %vm4295 = vcmp.ge.f32.partialorder %v3422, 0.0
        %vm4296 = vcmp.ge.f32.partialorder %v3424, 0.0
        %vm4297 = vcmp.ge.f32.partialorder %v3535, 0.0
        %vm4298 = vcmp.ge.f32.partialorder %v3537, 0.0
        %vm4299 = vcmp.ge.f32.partialorder %v3648, 0.0
        %vm4300 = vcmp.ge.f32.partialorder %v3650, 0.0
        %vm4301 = vcmp.ge.f32.partialorder %v3749, 0.0
        %vm4302 = vcmp.ge.f32.partialorder %v3426, 0.0
        %vm4303 = vcmp.ge.f32.partialorder %v3428, 0.0
        %vm4304 = vcmp.ge.f32.partialorder %v3539, 0.0
        %vm4305 = vcmp.ge.f32.partialorder %v3541, 0.0
        %vm4306 = vcmp.ge.f32.partialorder %v3652, 0.0
        %vm4307 = vcmp.ge.f32.partialorder %v3654, 0.0
        %vm4308 = vcmp.ge.f32.partialorder %v3752, 0.0
        %vm4309 = vcmp.ge.f32.partialorder %v3432, 0.0
        %vm4310 = vcmp.ge.f32.partialorder %v3434, 0.0
        %vm4311 = vcmp.ge.f32.partialorder %v3545, 0.0
        %vm4312 = vcmp.ge.f32.partialorder %v3547, 0.0
        %vm4313 = vcmp.ge.f32.partialorder %v3658, 0.0
        %vm4314 = vcmp.ge.f32.partialorder %v3660, 0.0
        %vm4315 = vcmp.ge.f32.partialorder %v3757, 0.0
        %vm4316 = vcmp.ge.f32.partialorder %v3436, 0.0
        %vm4317 = vcmp.ge.f32.partialorder %v3438, 0.0
        %vm4318 = vcmp.ge.f32.partialorder %v3549, 0.0
        %vm4319 = vcmp.ge.f32.partialorder %v3551, 0.0
        %vm4320 = vcmp.ge.f32.partialorder %v3662, 0.0
        %vm4321 = vcmp.ge.f32.partialorder %v3664, 0.0
        %vm4322 = vcmp.ge.f32.partialorder %v3760, 0.0
        %v4323 = vsel %vm4211, 1.0, %v3988
        %v4324 = vsel %vm4212, 1.0, %v3990
        %v4325 = vsel %vm4213, 1.0, %v3992
        %v4326 = vsel %vm4214, 1.0, %v3994
        %v4327 = vsel %vm4215, 1.0, %v3996
        %v4328 = vsel %vm4216, 1.0, %v3998
        %v4329 = vsel %vm4217, 1.0, %v4000
        %v4330 = vsel %vm4218, 1.0, %v4002
        %v4331 = vsel %vm4219, 1.0, %v4004
        %v4332 = vsel %vm4220, 1.0, %v4006
        %v4333 = vsel %vm4221, 1.0, %v4008
        %v4334 = vsel %vm4222, 1.0, %v4010
        %v4335 = vsel %vm4223, 1.0, %v4012
        %v4336 = vsel %vm4224, 1.0, %v4014
        %v4337 = vsel %vm4225, 1.0, %v4016
        %v4338 = vsel %vm4226, 1.0, %v4018
        %v4339 = vsel %vm4227, 1.0, %v4020
        %v4340 = vsel %vm4228, 1.0, %v4022
        %v4341 = vsel %vm4229, 1.0, %v4024
        %v4342 = vsel %vm4230, 1.0, %v4026
        %v4343 = vsel %vm4231, 1.0, %v4028
        %v4344 = vsel %vm4232, 1.0, %v4030
        %v4345 = vsel %vm4233, 1.0, %v4032
        %v4346 = vsel %vm4234, 1.0, %v4034
        %v4347 = vsel %vm4235, 1.0, %v4036
        %v4348 = vsel %vm4236, 1.0, %v4038
        %v4349 = vsel %vm4237, 1.0, %v4040
        %v4350 = vsel %vm4238, 1.0, %v4042
        %v4351 = vsel %vm4239, 1.0, %v4044
        %v4352 = vsel %vm4240, 1.0, %v4046
        %v4353 = vsel %vm4241, 1.0, %v4048
        %v4354 = vsel %vm4242, 1.0, %v4050
        %v4355 = vsel %vm4243, 1.0, %v4052
        %v4356 = vsel %vm4244, 1.0, %v4054
        %v4357 = vsel %vm4245, 1.0, %v4056
        %v4358 = vsel %vm4246, 1.0, %v4058
        %v4359 = vsel %vm4247, 1.0, %v4060
        %v4360 = vsel %vm4248, 1.0, %v4062
        %v4361 = vsel %vm4249, 1.0, %v4064
        %v4362 = vsel %vm4250, 1.0, %v4066
        %v4363 = vsel %vm4251, 1.0, %v4068
        %v4364 = vsel %vm4252, 1.0, %v4070
        %v4365 = vsel %vm4253, 1.0, %v4072
        %v4366 = vsel %vm4254, 1.0, %v4074
        %v4367 = vsel %vm4255, 1.0, %v4076
        %v4368 = vsel %vm4256, 1.0, %v4078
        %v4369 = vsel %vm4257, 1.0, %v4080
        %v4370 = vsel %vm4258, 1.0, %v4082
        %v4371 = vsel %vm4259, 1.0, %v4084
        %v4372 = vsel %vm4260, 1.0, %v4086
        %v4373 = vsel %vm4261, 1.0, %v4088
        %v4374 = vsel %vm4262, 1.0, %v4090
        %v4375 = vsel %vm4263, 1.0, %v4092
        %v4376 = vsel %vm4264, 1.0, %v4094
        %v4377 = vsel %vm4265, 1.0, %v4096
        %v4378 = vsel %vm4266, 1.0, %v4098
        %v4379 = vsel %vm4267, 1.0, %v4100
        %v4380 = vsel %vm4268, 1.0, %v4102
        %v4381 = vsel %vm4269, 1.0, %v4104
        %v4382 = vsel %vm4270, 1.0, %v4106
        %v4383 = vsel %vm4271, 1.0, %v4108
        %v4384 = vsel %vm4272, 1.0, %v4110
        %v4385 = vsel %vm4273, 1.0, %v4112
        %v4386 = vsel %vm4274, 1.0, %v4114
        %v4387 = vsel %vm4275, 1.0, %v4116
        %v4388 = vsel %vm4276, 1.0, %v4118
        %v4389 = vsel %vm4277, 1.0, %v4120
        %v4390 = vsel %vm4278, 1.0, %v4122
        %v4391 = vsel %vm4279, 1.0, %v4124
        %v4392 = vsel %vm4280, 1.0, %v4126
        %v4393 = vsel %vm4281, 1.0, %v4128
        %v4394 = vsel %vm4282, 1.0, %v4130
        %v4395 = vsel %vm4283, 1.0, %v4132
        %v4396 = vsel %vm4284, 1.0, %v4134
        %v4397 = vsel %vm4285, 1.0, %v4136
        %v4398 = vsel %vm4286, 1.0, %v4138
        %v4399 = vsel %vm4287, 1.0, %v4140
        %v4400 = vsel %vm4288, 1.0, %v4142
        %v4401 = vsel %vm4289, 1.0, %v4144
        %v4402 = vsel %vm4290, 1.0, %v4146
        %v4403 = vsel %vm4291, 1.0, %v4148
        %v4404 = vsel %vm4292, 1.0, %v4150
        %v4405 = vsel %vm4293, 1.0, %v4152
        %v4406 = vsel %vm4294, 1.0, %v4154
        %v4407 = vsel %vm4295, 1.0, %v4156
        %v4408 = vsel %vm4296, 1.0, %v4158
        %v4409 = vsel %vm4297, 1.0, %v4160
        %v4410 = vsel %vm4298, 1.0, %v4162
        %v4411 = vsel %vm4299, 1.0, %v4164
        %v4412 = vsel %vm4300, 1.0, %v4166
        %v4413 = vsel %vm4301, 1.0, %v4168
        %v4414 = vsel %vm4302, 1.0, %v4170
        %v4415 = vsel %vm4303, 1.0, %v4172
        %v4416 = vsel %vm4304, 1.0, %v4174
        %v4417 = vsel %vm4305, 1.0, %v4176
        %v4418 = vsel %vm4306, 1.0, %v4178
        %v4419 = vsel %vm4307, 1.0, %v4180
        %v4420 = vsel %vm4308, 1.0, %v4182
        %v4421 = vsel %vm4309, 1.0, %v4184
        %v4422 = vsel %vm4310, 1.0, %v4186
        %v4423 = vsel %vm4311, 1.0, %v4188
        %v4424 = vsel %vm4312, 1.0, %v4190
        %v4425 = vsel %vm4313, 1.0, %v4192
        %v4426 = vsel %vm4314, 1.0, %v4194
        %v4427 = vsel %vm4315, 1.0, %v4196
        %v4428 = vsel %vm4316, 1.0, %v4198
        %v4429 = vsel %vm4317, 1.0, %v4200
        %v4430 = vsel %vm4318, 1.0, %v4202
        %v4431 = vsel %vm4319, 1.0, %v4204
        %v4432 = vsel %vm4320, 1.0, %v4206
        %v4433 = vsel %vm4321, 1.0, %v4208
        %v4434 = vsel %vm4322, 1.0, %v4210
        %v4435 = vadd.f32 %v3988, 1.0
        %v4436 = vadd.f32 %v3990, 1.0
        %v4437 = vadd.f32 %v3992, 1.0
        %v4438 = vadd.f32 %v3994, 1.0
        %v4439 = vadd.f32 %v3996, 1.0
        %v4440 = vadd.f32 %v3998, 1.0
        %v4441 = vadd.f32 %v4000, 1.0
        %v4442 = vadd.f32 %v4002, 1.0
        %v4443 = vadd.f32 %v4004, 1.0
        %v4444 = vadd.f32 %v4006, 1.0
        %v4445 = vadd.f32 %v4008, 1.0
        %v4446 = vadd.f32 %v4010, 1.0
        %v4447 = vadd.f32 %v4012, 1.0
        %v4448 = vadd.f32 %v4014, 1.0
        %v4449 = vadd.f32 %v4016, 1.0
        %v4450 = vadd.f32 %v4018, 1.0
        %v4451 = vadd.f32 %v4020, 1.0
        %v4452 = vadd.f32 %v4022, 1.0
        %v4453 = vadd.f32 %v4024, 1.0
        %v4454 = vadd.f32 %v4026, 1.0
        %v4455 = vadd.f32 %v4028, 1.0
        %v4456 = vadd.f32 %v4030, 1.0
        %v4457 = vadd.f32 %v4032, 1.0
        %v4458 = vadd.f32 %v4034, 1.0
        %v4459 = vadd.f32 %v4036, 1.0
        %v4460 = vadd.f32 %v4038, 1.0
        %v4461 = vadd.f32 %v4040, 1.0
        %v4462 = vadd.f32 %v4042, 1.0
        %v4463 = vadd.f32 %v4044, 1.0
        %v4464 = vadd.f32 %v4046, 1.0
        %v4465 = vadd.f32 %v4048, 1.0
        %v4466 = vadd.f32 %v4050, 1.0
        %v4467 = vadd.f32 %v4052, 1.0
        %v4468 = vadd.f32 %v4054, 1.0
        %v4469 = vadd.f32 %v4056, 1.0
        %v4470 = vadd.f32 %v4058, 1.0
        %v4471 = vadd.f32 %v4060, 1.0
        %v4472 = vadd.f32 %v4062, 1.0
        %v4473 = vadd.f32 %v4064, 1.0
        %v4474 = vadd.f32 %v4066, 1.0
        %v4475 = vadd.f32 %v4068, 1.0
        %v4476 = vadd.f32 %v4070, 1.0
        %v4477 = vadd.f32 %v4072, 1.0
        %v4478 = vadd.f32 %v4074, 1.0
        %v4479 = vadd.f32 %v4076, 1.0
        %v4480 = vadd.f32 %v4078, 1.0
        %v4481 = vadd.f32 %v4080, 1.0
        %v4482 = vadd.f32 %v4082, 1.0
        %v4483 = vadd.f32 %v4084, 1.0
        %v4484 = vadd.f32 %v4086, 1.0
        %v4485 = vadd.f32 %v4088, 1.0
        %v4486 = vadd.f32 %v4090, 1.0
        %v4487 = vadd.f32 %v4092, 1.0
        %v4488 = vadd.f32 %v4094, 1.0
        %v4489 = vadd.f32 %v4096, 1.0
        %v4490 = vadd.f32 %v4098, 1.0
        %v4491 = vadd.f32 %v4100, 1.0
        %v4492 = vadd.f32 %v4102, 1.0
        %v4493 = vadd.f32 %v4104, 1.0
        %v4494 = vadd.f32 %v4106, 1.0
        %v4495 = vadd.f32 %v4108, 1.0
        %v4496 = vadd.f32 %v4110, 1.0
        %v4497 = vadd.f32 %v4112, 1.0
        %v4498 = vadd.f32 %v4114, 1.0
        %v4499 = vadd.f32 %v4116, 1.0
        %v4500 = vadd.f32 %v4118, 1.0
        %v4501 = vadd.f32 %v4120, 1.0
        %v4502 = vadd.f32 %v4122, 1.0
        %v4503 = vadd.f32 %v4124, 1.0
        %v4504 = vadd.f32 %v4126, 1.0
        %v4505 = vadd.f32 %v4128, 1.0
        %v4506 = vadd.f32 %v4130, 1.0
        %v4507 = vadd.f32 %v4132, 1.0
        %v4508 = vadd.f32 %v4134, 1.0
        %v4509 = vadd.f32 %v4136, 1.0
        %v4510 = vadd.f32 %v4138, 1.0
        %v4511 = vadd.f32 %v4140, 1.0
        %v4512 = vadd.f32 %v4142, 1.0
        %v4513 = vadd.f32 %v4144, 1.0
        %v4514 = vadd.f32 %v4146, 1.0
        %v4515 = vadd.f32 %v4148, 1.0
        %v4516 = vadd.f32 %v4150, 1.0
        %v4517 = vadd.f32 %v4152, 1.0
        %v4518 = vadd.f32 %v4154, 1.0
        %v4519 = vadd.f32 %v4156, 1.0
        %v4520 = vadd.f32 %v4158, 1.0
        %v4521 = vadd.f32 %v4160, 1.0
        %v4522 = vadd.f32 %v4162, 1.0
        %v4523 = vadd.f32 %v4164, 1.0
        %v4524 = vadd.f32 %v4166, 1.0
        %v4525 = vadd.f32 %v4168, 1.0
        %v4526 = vadd.f32 %v4170, 1.0
        %v4527 = vadd.f32 %v4172, 1.0
        %v4528 = vadd.f32 %v4174, 1.0
        %v4529 = vadd.f32 %v4176, 1.0
        %v4530 = vadd.f32 %v4178, 1.0
        %v4531 = vadd.f32 %v4180, 1.0
        %v4532 = vadd.f32 %v4182, 1.0
        %v4533 = vadd.f32 %v4184, 1.0
        %v4534 = vadd.f32 %v4186, 1.0
        %v4535 = vadd.f32 %v4188, 1.0
        %v4536 = vadd.f32 %v4190, 1.0
        %v4537 = vadd.f32 %v4192, 1.0
        %v4538 = vadd.f32 %v4194, 1.0
        %v4539 = vadd.f32 %v4196, 1.0
        %v4540 = vadd.f32 %v4198, 1.0
        %v4541 = vadd.f32 %v4200, 1.0
        %v4542 = vadd.f32 %v4202, 1.0
        %v4543 = vadd.f32 %v4204, 1.0
        %v4544 = vadd.f32 %v4206, 1.0
        %v4545 = vadd.f32 %v4208, 1.0
        %v4546 = vadd.f32 %v4210, 1.0
        %v4547 = vrcp.pop %v4435
        %v4548 = vrcp.pop %v4436
        %v4549 = vrcp.pop %v4437
        %v4550 = vrcp.pop %v4438
        %v4551 = vrcp.pop %v4439
        %v4552 = vrcp.pop %v4440
        %v4553 = vrcp.pop %v4441
        %v4554 = vrcp.pop %v4442
        %v4555 = vrcp.pop %v4443
        %v4556 = vrcp.pop %v4444
        %v4557 = vrcp.pop %v4445
        %v4558 = vrcp.pop %v4446
        %v4559 = vrcp.pop %v4447
        %v4560 = vrcp.pop %v4448
        %v4561 = vrcp.pop %v4449
        %v4562 = vrcp.pop %v4450
        %v4563 = vrcp.pop %v4451
        %v4564 = vrcp.pop %v4452
        %v4565 = vrcp.pop %v4453
        %v4566 = vrcp.pop %v4454
        %v4567 = vrcp.pop %v4455
        %v4568 = vrcp.pop %v4456
        %v4569 = vrcp.pop %v4457
        %v4570 = vrcp.pop %v4458
        %v4571 = vrcp.pop %v4459
        %v4572 = vrcp.pop %v4460
        %v4573 = vrcp.pop %v4461
        %v4574 = vrcp.pop %v4462
        %v4575 = vrcp.pop %v4463
        %v4576 = vrcp.pop %v4464
        %v4577 = vrcp.pop %v4465
        %v4578 = vrcp.pop %v4466
        %v4579 = vrcp.pop %v4467
        %v4580 = vrcp.pop %v4468
        %v4581 = vrcp.pop %v4469
        %v4582 = vrcp.pop %v4470
        %v4583 = vrcp.pop %v4471
        %v4584 = vrcp.pop %v4472
        %v4585 = vrcp.pop %v4473
        %v4586 = vrcp.pop %v4474
        %v4587 = vrcp.pop %v4475
        %v4588 = vrcp.pop %v4476
        %v4589 = vrcp.pop %v4477
        %v4590 = vrcp.pop %v4478
        %v4591 = vrcp.pop %v4479
        %v4592 = vrcp.pop %v4480
        %v4593 = vrcp.pop %v4481
        %v4594 = vrcp.pop %v4482
        %v4595 = vrcp.pop %v4483
        %v4596 = vrcp.pop %v4484
        %v4597 = vrcp.pop %v4485
        %v4598 = vrcp.pop %v4486
        %v4599 = vrcp.pop %v4487
        %v4600 = vrcp.pop %v4488
        %v4601 = vrcp.pop %v4489
        %v4602 = vrcp.pop %v4490
        %v4603 = vrcp.pop %v4491
        %v4604 = vrcp.pop %v4492
        %v4605 = vrcp.pop %v4493
        %v4606 = vrcp.pop %v4494
        %v4607 = vrcp.pop %v4495
        %v4608 = vrcp.pop %v4496
        %v4609 = vrcp.pop %v4497
        %v4610 = vrcp.pop %v4498
        %v4611 = vrcp.pop %v4499
        %v4612 = vrcp.pop %v4500
        %v4613 = vrcp.pop %v4501
        %v4614 = vrcp.pop %v4502
        %v4615 = vrcp.pop %v4503
        %v4616 = vrcp.pop %v4504
        %v4617 = vrcp.pop %v4505
        %v4618 = vrcp.pop %v4506
        %v4619 = vrcp.pop %v4507
        %v4620 = vrcp.pop %v4508
        %v4621 = vrcp.pop %v4509
        %v4622 = vrcp.pop %v4510
        %v4623 = vrcp.pop %v4511
        %v4624 = vrcp.pop %v4512
        %v4625 = vrcp.pop %v4513
        %v4626 = vrcp.pop %v4514
        %v4627 = vrcp.pop %v4515
        %v4628 = vrcp.pop %v4516
        %v4629 = vrcp.pop %v4517
        %v4630 = vrcp.pop %v4518
        %v4631 = vrcp.pop %v4519
        %v4632 = vrcp.pop %v4520
        %v4633 = vrcp.pop %v4521
        %v4634 = vrcp.pop %v4522
        %v4635 = vrcp.pop %v4523
        %v4636 = vrcp.pop %v4524
        %v4637 = vrcp.pop %v4525
        %v4638 = vrcp.pop %v4526
        %v4639 = vrcp.pop %v4527
        %v4640 = vrcp.pop %v4528
        %v4641 = vrcp.pop %v4529
        %v4642 = vrcp.pop %v4530
        %v4643 = vrcp.pop %v4531
        %v4644 = vrcp.pop %v4532
        %v4645 = vrcp.pop %v4533
        %v4646 = vrcp.pop %v4534
        %v4647 = vrcp.pop %v4535
        %v4648 = vrcp.pop %v4536
        %v4649 = vrcp.pop %v4537
        %v4650 = vrcp.pop %v4538
        %v4651 = vrcp.pop %v4539
        %v4652 = vrcp.pop %v4540
        %v4653 = vrcp.pop %v4541
        %v4654 = vrcp.pop %v4542
        %v4655 = vrcp.pop %v4543
        %v4656 = vrcp.pop %v4544
        %v4657 = vrcp.pop %v4545
        %v4658 = vrcp.pop %v4546
        %v4659 = vmul.f32 %v4323, %v4547
        %v4660 = vmul.f32 %v4324, %v4548
        %v4661 = vmul.f32 %v4325, %v4549
        %v4662 = vmul.f32 %v4326, %v4550
        %v4663 = vmul.f32 %v4327, %v4551
        %v4664 = vmul.f32 %v4328, %v4552
        %v4665 = vmul.f32 %v4329, %v4553
        %v4666 = vmul.f32 %v4330, %v4554
        %v4667 = vmul.f32 %v4331, %v4555
        %v4668 = vmul.f32 %v4332, %v4556
        %v4669 = vmul.f32 %v4333, %v4557
        %v4670 = vmul.f32 %v4334, %v4558
        %v4671 = vmul.f32 %v4335, %v4559
        %v4672 = vmul.f32 %v4336, %v4560
        %v4673 = vmul.f32 %v4337, %v4561
        %v4674 = vmul.f32 %v4338, %v4562
        %v4675 = vmul.f32 %v4339, %v4563
        %v4676 = vmul.f32 %v4340, %v4564
        %v4677 = vmul.f32 %v4341, %v4565
        %v4678 = vmul.f32 %v4342, %v4566
        %v4679 = vmul.f32 %v4343, %v4567
        %v4680 = vmul.f32 %v4344, %v4568
        %v4681 = vmul.f32 %v4345, %v4569
        %v4682 = vmul.f32 %v4346, %v4570
        %v4683 = vmul.f32 %v4347, %v4571
        %v4684 = vmul.f32 %v4348, %v4572
        %v4685 = vmul.f32 %v4349, %v4573
        %v4686 = vmul.f32 %v4350, %v4574
        %v4687 = vmul.f32 %v4351, %v4575
        %v4688 = vmul.f32 %v4352, %v4576
        %v4689 = vmul.f32 %v4353, %v4577
        %v4690 = vmul.f32 %v4354, %v4578
        %v4691 = vmul.f32 %v4355, %v4579
        %v4692 = vmul.f32 %v4356, %v4580
        %v4693 = vmul.f32 %v4357, %v4581
        %v4694 = vmul.f32 %v4358, %v4582
        %v4695 = vmul.f32 %v4359, %v4583
        %v4696 = vmul.f32 %v4360, %v4584
        %v4697 = vmul.f32 %v4361, %v4585
        %v4698 = vmul.f32 %v4362, %v4586
        %v4699 = vmul.f32 %v4363, %v4587
        %v4700 = vmul.f32 %v4364, %v4588
        %v4701 = vmul.f32 %v4365, %v4589
        %v4702 = vmul.f32 %v4366, %v4590
        %v4703 = vmul.f32 %v4367, %v4591
        %v4704 = vmul.f32 %v4368, %v4592
        %v4705 = vmul.f32 %v4369, %v4593
        %v4706 = vmul.f32 %v4370, %v4594
        %v4707 = vmul.f32 %v4371, %v4595
        %v4708 = vmul.f32 %v4372, %v4596
        %v4709 = vmul.f32 %v4373, %v4597
        %v4710 = vmul.f32 %v4374, %v4598
        %v4711 = vmul.f32 %v4375, %v4599
        %v4712 = vmul.f32 %v4376, %v4600
        %v4713 = vmul.f32 %v4377, %v4601
        %v4714 = vmul.f32 %v4378, %v4602
        %v4715 = vmul.f32 %v4379, %v4603
        %v4716 = vmul.f32 %v4380, %v4604
        %v4717 = vmul.f32 %v4381, %v4605
        %v4718 = vmul.f32 %v4382, %v4606
        %v4719 = vmul.f32 %v4383, %v4607
        %v4720 = vmul.f32 %v4384, %v4608
        %v4721 = vmul.f32 %v4385, %v4609
        %v4722 = vmul.f32 %v4386, %v4610
        %v4723 = vmul.f32 %v4387, %v4611
        %v4724 = vmul.f32 %v4388, %v4612
        %v4725 = vmul.f32 %v4389, %v4613
        %v4726 = vmul.f32 %v4390, %v4614
        %v4727 = vmul.f32 %v4391, %v4615
        %v4728 = vmul.f32 %v4392, %v4616
        %v4729 = vmul.f32 %v4393, %v4617
        %v4730 = vmul.f32 %v4394, %v4618
        %v4731 = vmul.f32 %v4395, %v4619
        %v4732 = vmul.f32 %v4396, %v4620
        %v4733 = vmul.f32 %v4397, %v4621
        %v4734 = vmul.f32 %v4398, %v4622
        %v4735 = vmul.f32 %v4399, %v4623
        %v4736 = vmul.f32 %v4400, %v4624
        %v4737 = vmul.f32 %v4401, %v4625
        %v4738 = vmul.f32 %v4402, %v4626
        %v4739 = vmul.f32 %v4403, %v4627
        %v4740 = vmul.f32 %v4404, %v4628
        %v4741 = vmul.f32 %v4405, %v4629
        %v4742 = vmul.f32 %v4406, %v4630
        %v4743 = vmul.f32 %v4407, %v4631
        %v4744 = vmul.f32 %v4408, %v4632
        %v4745 = vmul.f32 %v4409, %v4633
        %v4746 = vmul.f32 %v4410, %v4634
        %v4747 = vmul.f32 %v4411, %v4635
        %v4748 = vmul.f32 %v4412, %v4636
        %v4749 = vmul.f32 %v4413, %v4637
        %v4750 = vmul.f32 %v4414, %v4638
        %v4751 = vmul.f32 %v4415, %v4639
        %v4752 = vmul.f32 %v4416, %v4640
        %v4753 = vmul.f32 %v4417, %v4641
        %v4754 = vmul.f32 %v4418, %v4642
        %v4755 = vmul.f32 %v4419, %v4643
        %v4756 = vmul.f32 %v4420, %v4644
        %v4757 = vmul.f32 %v4421, %v4645
        %v4758 = vmul.f32 %v4422, %v4646
        %v4759 = vmul.f32 %v4423, %v4647
        %v4760 = vmul.f32 %v4424, %v4648
        %v4761 = vmul.f32 %v4425, %v4649
        %v4762 = vmul.f32 %v4426, %v4650
        %v4763 = vmul.f32 %v4427, %v4651
        %v4764 = vmul.f32 %v4428, %v4652
        %v4765 = vmul.f32 %v4429, %v4653
        %v4766 = vmul.f32 %v4430, %v4654
        %v4767 = vmul.f32 %v4431, %v4655
        %v4768 = vmul.f32 %v4432, %v4656
        %v4769 = vmul.f32 %v4433, %v4657
        %v4770 = vmul.f32 %v4434, %v4658
        %v4771 = vpack.c.bf16 %v4666, %v4659
        %v4772 = vpack.c.bf16 %v4667, %v4660
        %v4773 = vpack.c.bf16 %v4668, %v4661
        %v4774 = vpack.c.bf16 %v4669, %v4662
        %v4775 = vpack.c.bf16 %v4670, %v4663
        %v4776 = vpack.c.bf16 %v4671, %v4664
        %v4777 = vpack.c.bf16 %v4672, %v4665
        %v4778 = vpack.c.bf16 %v4680, %v4673
        %v4779 = vpack.c.bf16 %v4681, %v4674
        %v4780 = vpack.c.bf16 %v4682, %v4675
        %v4781 = vpack.c.bf16 %v4683, %v4676
        %v4782 = vpack.c.bf16 %v4684, %v4677
        %v4783 = vpack.c.bf16 %v4685, %v4678
        %v4784 = vpack.c.bf16 %v4686, %v4679
        %v4785 = vpack.c.bf16 %v4694, %v4687
        %v4786 = vpack.c.bf16 %v4695, %v4688
        %v4787 = vpack.c.bf16 %v4696, %v4689
        %v4788 = vpack.c.bf16 %v4697, %v4690
        %v4789 = vpack.c.bf16 %v4698, %v4691
        %v4790 = vpack.c.bf16 %v4699, %v4692
        %v4791 = vpack.c.bf16 %v4700, %v4693
        %v4792 = vpack.c.bf16 %v4708, %v4701
        %v4793 = vpack.c.bf16 %v4709, %v4702
        %v4794 = vpack.c.bf16 %v4710, %v4703
        %v4795 = vpack.c.bf16 %v4711, %v4704
        %v4796 = vpack.c.bf16 %v4712, %v4705
        %v4797 = vpack.c.bf16 %v4713, %v4706
        %v4798 = vpack.c.bf16 %v4714, %v4707
        %v4799 = vpack.c.bf16 %v4722, %v4715
        %v4800 = vpack.c.bf16 %v4723, %v4716
        %v4801 = vpack.c.bf16 %v4724, %v4717
        %v4802 = vpack.c.bf16 %v4725, %v4718
        %v4803 = vpack.c.bf16 %v4726, %v4719
        %v4804 = vpack.c.bf16 %v4727, %v4720
        %v4805 = vpack.c.bf16 %v4728, %v4721
        %v4806 = vpack.c.bf16 %v4736, %v4729
        %v4807 = vpack.c.bf16 %v4737, %v4730
        %v4808 = vpack.c.bf16 %v4738, %v4731
        %v4809 = vpack.c.bf16 %v4739, %v4732
        %v4810 = vpack.c.bf16 %v4740, %v4733
        %v4811 = vpack.c.bf16 %v4741, %v4734
        %v4812 = vpack.c.bf16 %v4742, %v4735
        %v4813 = vpack.c.bf16 %v4750, %v4743
        %v4814 = vpack.c.bf16 %v4751, %v4744
        %v4815 = vpack.c.bf16 %v4752, %v4745
        %v4816 = vpack.c.bf16 %v4753, %v4746
        %v4817 = vpack.c.bf16 %v4754, %v4747
        %v4818 = vpack.c.bf16 %v4755, %v4748
        %v4819 = vpack.c.bf16 %v4756, %v4749
        %v4820 = vpack.c.bf16 %v4764, %v4757
        %v4821 = vpack.c.bf16 %v4765, %v4758
        %v4822 = vpack.c.bf16 %v4766, %v4759
        %v4823 = vpack.c.bf16 %v4767, %v4760
        %v4824 = vpack.c.bf16 %v4768, %v4761
        %v4825 = vpack.c.bf16 %v4769, %v4762
        %v4826 = vpack.c.bf16 %v4770, %v4763
        %v4883 = vunpack.c.l.b16 %v4771
        %v4884 = vunpack.c.l.b16 %v4772
        %v4885 = vunpack.c.l.b16 %v4773
        %v4886 = vunpack.c.l.b16 %v4774
        %v4887 = vunpack.c.l.b16 %v4775
        %v4888 = vunpack.c.l.b16 %v4776
        %v4889 = vunpack.c.l.b16 %v4777
        %v4890 = vunpack.c.h.b16 %v4771
        %v4891 = vunpack.c.h.b16 %v4772
        %v4892 = vunpack.c.h.b16 %v4773
        %v4893 = vunpack.c.h.b16 %v4774
        %v4894 = vunpack.c.h.b16 %v4775
        %v4895 = vunpack.c.h.b16 %v4776
        %v4896 = vunpack.c.h.b16 %v4777
        %v4897 = vunpack.c.l.b16 %v4778
        %v4898 = vunpack.c.l.b16 %v4779
        %v4899 = vunpack.c.l.b16 %v4780
        %v4900 = vunpack.c.l.b16 %v4781
        %v4901 = vunpack.c.l.b16 %v4782
        %v4902 = vunpack.c.l.b16 %v4783
        %v4903 = vunpack.c.l.b16 %v4784
        %v4904 = vunpack.c.h.b16 %v4778
        %v4905 = vunpack.c.h.b16 %v4779
        %v4906 = vunpack.c.h.b16 %v4780
        %v4907 = vunpack.c.h.b16 %v4781
        %v4908 = vunpack.c.h.b16 %v4782
        %v4909 = vunpack.c.h.b16 %v4783
        %v4910 = vunpack.c.h.b16 %v4784
        %v4911 = vunpack.c.l.b16 %v4785
        %v4912 = vunpack.c.l.b16 %v4786
        %v4913 = vunpack.c.l.b16 %v4787
        %v4914 = vunpack.c.l.b16 %v4788
        %v4915 = vunpack.c.l.b16 %v4789
        %v4916 = vunpack.c.l.b16 %v4790
        %v4917 = vunpack.c.l.b16 %v4791
        %v4918 = vunpack.c.h.b16 %v4785
        %v4919 = vunpack.c.h.b16 %v4786
        %v4920 = vunpack.c.h.b16 %v4787
        %v4921 = vunpack.c.h.b16 %v4788
        %v4922 = vunpack.c.h.b16 %v4789
        %v4923 = vunpack.c.h.b16 %v4790
        %v4924 = vunpack.c.h.b16 %v4791
        %v4925 = vunpack.c.l.b16 %v4792
        %v4926 = vunpack.c.l.b16 %v4793
        %v4927 = vunpack.c.l.b16 %v4794
        %v4928 = vunpack.c.l.b16 %v4795
        %v4929 = vunpack.c.l.b16 %v4796
        %v4930 = vunpack.c.l.b16 %v4797
        %v4931 = vunpack.c.l.b16 %v4798
        %v4932 = vunpack.c.h.b16 %v4792
        %v4933 = vunpack.c.h.b16 %v4793
        %v4934 = vunpack.c.h.b16 %v4794
        %v4935 = vunpack.c.h.b16 %v4795
        %v4936 = vunpack.c.h.b16 %v4796
        %v4937 = vunpack.c.h.b16 %v4797
        %v4938 = vunpack.c.h.b16 %v4798
        %v4939 = vunpack.c.l.b16 %v4799
        %v4940 = vunpack.c.l.b16 %v4800
        %v4941 = vunpack.c.l.b16 %v4801
        %v4942 = vunpack.c.l.b16 %v4802
        %v4943 = vunpack.c.l.b16 %v4803
        %v4944 = vunpack.c.l.b16 %v4804
        %v4945 = vunpack.c.l.b16 %v4805
        %v4946 = vunpack.c.h.b16 %v4799
        %v4947 = vunpack.c.h.b16 %v4800
        %v4948 = vunpack.c.h.b16 %v4801
        %v4949 = vunpack.c.h.b16 %v4802
        %v4950 = vunpack.c.h.b16 %v4803
        %v4951 = vunpack.c.h.b16 %v4804
        %v4952 = vunpack.c.h.b16 %v4805
        %v4953 = vunpack.c.l.b16 %v4806
        %v4954 = vunpack.c.l.b16 %v4807
        %v4955 = vunpack.c.l.b16 %v4808
        %v4956 = vunpack.c.l.b16 %v4809
        %v4957 = vunpack.c.l.b16 %v4810
        %v4958 = vunpack.c.l.b16 %v4811
        %v4959 = vunpack.c.l.b16 %v4812
        %v4960 = vunpack.c.h.b16 %v4806
        %v4961 = vunpack.c.h.b16 %v4807
        %v4962 = vunpack.c.h.b16 %v4808
        %v4963 = vunpack.c.h.b16 %v4809
        %v4964 = vunpack.c.h.b16 %v4810
        %v4965 = vunpack.c.h.b16 %v4811
        %v4966 = vunpack.c.h.b16 %v4812
        %v4967 = vunpack.c.l.b16 %v4813
        %v4968 = vunpack.c.l.b16 %v4814
        %v4969 = vunpack.c.l.b16 %v4815
        %v4970 = vunpack.c.l.b16 %v4816
        %v4971 = vunpack.c.l.b16 %v4817
        %v4972 = vunpack.c.l.b16 %v4818
        %v4973 = vunpack.c.l.b16 %v4819
        %v4974 = vunpack.c.h.b16 %v4813
        %v4975 = vunpack.c.h.b16 %v4814
        %v4976 = vunpack.c.h.b16 %v4815
        %v4977 = vunpack.c.h.b16 %v4816
        %v4978 = vunpack.c.h.b16 %v4817
        %v4979 = vunpack.c.h.b16 %v4818
        %v4980 = vunpack.c.h.b16 %v4819
        %v4981 = vunpack.c.l.b16 %v4820
        %v4982 = vunpack.c.l.b16 %v4821
        %v4983 = vunpack.c.l.b16 %v4822
        %v4984 = vunpack.c.l.b16 %v4823
        %v4985 = vunpack.c.l.b16 %v4824
        %v4986 = vunpack.c.l.b16 %v4825
        %v4987 = vunpack.c.l.b16 %v4826
        %v4988 = vunpack.c.h.b16 %v4820
        %v4989 = vunpack.c.h.b16 %v4821
        %v4990 = vunpack.c.h.b16 %v4822
        %v4991 = vunpack.c.h.b16 %v4823
        %v4992 = vunpack.c.h.b16 %v4824
        %v4993 = vunpack.c.h.b16 %v4825
        %v4994 = vunpack.c.h.b16 %v4826
        %v4995 = vpack.c.b16 %v4884, %v4883
        %v4996 = vpack.c.b16 %v4886, %v4885
        %v4997 = vpack.c.b16 %v4888, %v4887
        %v4998 = vpack.c.b16 %v4889, %v4889
        %v4999 = vpack.c.b16 %v4891, %v4890
        %v5000 = vpack.c.b16 %v4893, %v4892
        %v5001 = vpack.c.b16 %v4895, %v4894
        %v5002 = vpack.c.b16 %v4896, %v4896
        %v5003 = vpack.c.b16 %v4898, %v4897
        %v5004 = vpack.c.b16 %v4900, %v4899
        %v5005 = vpack.c.b16 %v4902, %v4901
        %v5006 = vpack.c.b16 %v4903, %v4903
        %v5007 = vpack.c.b16 %v4905, %v4904
        %v5008 = vpack.c.b16 %v4907, %v4906
        %v5009 = vpack.c.b16 %v4909, %v4908
        %v5010 = vpack.c.b16 %v4910, %v4910
        %v5011 = vpack.c.b16 %v4912, %v4911
        %v5012 = vpack.c.b16 %v4914, %v4913
        %v5013 = vpack.c.b16 %v4916, %v4915
        %v5014 = vpack.c.b16 %v4917, %v4917
        %v5015 = vpack.c.b16 %v4919, %v4918
        %v5016 = vpack.c.b16 %v4921, %v4920
        %v5017 = vpack.c.b16 %v4923, %v4922
        %v5018 = vpack.c.b16 %v4924, %v4924
        %v5019 = vpack.c.b16 %v4926, %v4925
        %v5020 = vpack.c.b16 %v4928, %v4927
        %v5021 = vpack.c.b16 %v4930, %v4929
        %v5022 = vpack.c.b16 %v4931, %v4931
        %v5023 = vpack.c.b16 %v4933, %v4932
        %v5024 = vpack.c.b16 %v4935, %v4934
        %v5025 = vpack.c.b16 %v4937, %v4936
        %v5026 = vpack.c.b16 %v4938, %v4938
        %v5027 = vpack.c.b16 %v4940, %v4939
        %v5028 = vpack.c.b16 %v4942, %v4941
        %v5029 = vpack.c.b16 %v4944, %v4943
        %v5030 = vpack.c.b16 %v4945, %v4945
        %v5031 = vpack.c.b16 %v4947, %v4946
        %v5032 = vpack.c.b16 %v4949, %v4948
        %v5033 = vpack.c.b16 %v4951, %v4950
        %v5034 = vpack.c.b16 %v4952, %v4952
        %v5035 = vpack.c.b16 %v4954, %v4953
        %v5036 = vpack.c.b16 %v4956, %v4955
        %v5037 = vpack.c.b16 %v4958, %v4957
        %v5038 = vpack.c.b16 %v4959, %v4959
        %v5039 = vpack.c.b16 %v4961, %v4960
        %v5040 = vpack.c.b16 %v4963, %v4962
        %v5041 = vpack.c.b16 %v4965, %v4964
        %v5042 = vpack.c.b16 %v4966, %v4966
        %v5043 = vpack.c.b16 %v4968, %v4967
        %v5044 = vpack.c.b16 %v4970, %v4969
        %v5045 = vpack.c.b16 %v4972, %v4971
        %v5046 = vpack.c.b16 %v4973, %v4973
        %v5047 = vpack.c.b16 %v4975, %v4974
        %v5048 = vpack.c.b16 %v4977, %v4976
        %v5049 = vpack.c.b16 %v4979, %v4978
        %v5050 = vpack.c.b16 %v4980, %v4980
        %v5051 = vpack.c.b16 %v4982, %v4981
        %v5052 = vpack.c.b16 %v4984, %v4983
        %v5053 = vpack.c.b16 %v4986, %v4985
        %v5054 = vpack.c.b16 %v4987, %v4987
        %v5055 = vpack.c.b16 %v4989, %v4988
        %v5056 = vpack.c.b16 %v4991, %v4990
        %v5057 = vpack.c.b16 %v4993, %v4992
        %v5058 = vpack.c.b16 %v4994, %v4994
        %5123 = vst [vmem:[%s593] sm:$0xff] %v4995
        %5124 = vst [vmem:[%s593 + $0x8] sm:$0xff] %v4996
        %5125 = vst [vmem:[%s593 + $0x10] sm:$0xff] %v4997
        %vm5126 = vcmask 125952
        %5127 = vst.msk [vmem:[%s593 + $0x18] sm:$0xf] %vm5126, %v4998
        %5128 = vst [vmem:[%s593 + $0x1c] sm:$0xff] %v4999
        %5129 = vst [vmem:[%s593 + $0x24] sm:$0xff] %v5000
        %5130 = vst [vmem:[%s593 + $0x2c] sm:$0xff] %v5001
        %5131 = vst.msk [vmem:[%s593 + $0x34] sm:$0xf] %vm5126, %v5002
        %5132 = vst [vmem:[%s593 + $0x38] sm:$0xff] %v5003
        %5133 = vst [vmem:[%s593 + $0x40] sm:$0xff] %v5004
        %5134 = vst [vmem:[%s593 + $0x48] sm:$0xff] %v5005
        %5135 = vst.msk [vmem:[%s593 + $0x50] sm:$0xf] %vm5126, %v5006
        %5136 = vst [vmem:[%s593 + $0x54] sm:$0xff] %v5007
        %5137 = vst [vmem:[%s593 + $0x5c] sm:$0xff] %v5008
        %5138 = vst [vmem:[%s593 + $0x64] sm:$0xff] %v5009
        %5139 = vst.msk [vmem:[%s593 + $0x6c] sm:$0xf] %vm5126, %v5010
        %5140 = vst [vmem:[%s593 + $0x70] sm:$0xff] %v5011
        %5141 = vst [vmem:[%s593 + $0x78] sm:$0xff] %v5012
        %5142 = vst [vmem:[%s593 + $0x80] sm:$0xff] %v5013
        %5143 = vst.msk [vmem:[%s593 + $0x88] sm:$0xf] %vm5126, %v5014
        %5144 = vst [vmem:[%s593 + $0x8c] sm:$0xff] %v5015
        %5145 = vst [vmem:[%s593 + $0x94] sm:$0xff] %v5016
        %5146 = vst [vmem:[%s593 + $0x9c] sm:$0xff] %v5017
        %5147 = vst.msk [vmem:[%s593 + $0xa4] sm:$0xf] %vm5126, %v5018
        %5148 = vst [vmem:[%s593 + $0xa8] sm:$0xff] %v5019
        %5149 = vst [vmem:[%s593 + $0xb0] sm:$0xff] %v5020
        %5150 = vst [vmem:[%s593 + $0xb8] sm:$0xff] %v5021
        %5151 = vst.msk [vmem:[%s593 + $0xc0] sm:$0xf] %vm5126, %v5022
        %5152 = vst [vmem:[%s593 + $0xc4] sm:$0xff] %v5023
        %5153 = vst [vmem:[%s593 + $0xcc] sm:$0xff] %v5024
        %5154 = vst [vmem:[%s593 + $0xd4] sm:$0xff] %v5025
        %5155 = vst.msk [vmem:[%s593 + $0xdc] sm:$0xf] %vm5126, %v5026
        %5156 = vst [vmem:[%s593 + $0xe0] sm:$0xff] %v5027
        %5157 = vst [vmem:[%s593 + $0xe8] sm:$0xff] %v5028
        %5158 = vst [vmem:[%s593 + $0xf0] sm:$0xff] %v5029
        %5159 = vst.msk [vmem:[%s593 + $0xf8] sm:$0xf] %vm5126, %v5030
        %5160 = vst [vmem:[%s593 + $0xfc] sm:$0xff] %v5031
        %5161 = vst [vmem:[%s593 + $0x104] sm:$0xff] %v5032
        %5162 = vst [vmem:[%s593 + $0x10c] sm:$0xff] %v5033
        %5163 = vst.msk [vmem:[%s593 + $0x114] sm:$0xf] %vm5126, %v5034
        %5164 = vst [vmem:[%s593 + $0x118] sm:$0xff] %v5035
        %5165 = vst [vmem:[%s593 + $0x120] sm:$0xff] %v5036
        %5166 = vst [vmem:[%s593 + $0x128] sm:$0xff] %v5037
        %5167 = vst.msk [vmem:[%s593 + $0x130] sm:$0xf] %vm5126, %v5038
        %5168 = vst [vmem:[%s593 + $0x134] sm:$0xff] %v5039
        %5169 = vst [vmem:[%s593 + $0x13c] sm:$0xff] %v5040
        %5170 = vst [vmem:[%s593 + $0x144] sm:$0xff] %v5041
        %5171 = vst.msk [vmem:[%s593 + $0x14c] sm:$0xf] %vm5126, %v5042
        %5172 = vst [vmem:[%s593 + $0x150] sm:$0xff] %v5043
        %5173 = vst [vmem:[%s593 + $0x158] sm:$0xff] %v5044
        %5174 = vst [vmem:[%s593 + $0x160] sm:$0xff] %v5045
        %5175 = vst.msk [vmem:[%s593 + $0x168] sm:$0xf] %vm5126, %v5046
        %5176 = vst [vmem:[%s593 + $0x16c] sm:$0xff] %v5047
        %5177 = vst [vmem:[%s593 + $0x174] sm:$0xff] %v5048
        %5178 = vst [vmem:[%s593 + $0x17c] sm:$0xff] %v5049
        %5179 = vst.msk [vmem:[%s593 + $0x184] sm:$0xf] %vm5126, %v5050
        %5180 = vst [vmem:[%s593 + $0x188] sm:$0xff] %v5051
        %5181 = vst [vmem:[%s593 + $0x190] sm:$0xff] %v5052
        %5182 = vst [vmem:[%s593 + $0x198] sm:$0xff] %v5053
        %5183 = vst.msk [vmem:[%s593 + $0x1a0] sm:$0xf] %vm5126, %v5054
        %5184 = vst [vmem:[%s593 + $0x1a4] sm:$0xff] %v5055
        %5185 = vst [vmem:[%s593 + $0x1ac] sm:$0xff] %v5056
        %5186 = vst [vmem:[%s593 + $0x1b4] sm:$0xff] %v5057
        %5187 = vst.msk [vmem:[%s593 + $0x1bc] sm:$0xf] %vm5126, %v5058
        %s5188 = sand.u32 %s403, 1
        %s5189 = sand.u32 %s403, 1
        %s5190 = smul.addr %s5189, 64
        %s5191 = scalar_lea.vmem [#allocation2], %s5190
        %s5192 = sand.u32 %s429, 1
        %s5193 = scalar_lea.sflag [#allocation4], %s5192
        %s5194 = sand.u32 %s429, 1
        %s5195 = smul.addr %s5194, 448
        %s5196 = scalar_lea.vmem [#allocation3], %s5195
        // Predicated region
        $region89: #{autoencoder_forward.1} parent=87 // pred_check
          %p5197 = pneg %p413
        $region90: #{autoencoder_forward.1} parent=87 // pred_check_branch
          %5199 = sbr.rel (%p5197) target = $region92
        $region91: #{autoencoder_forward.1} parent=87 // pred_region
          %s5200 = smul.u32 16, %s33
          %s5201 = ssub.s32 25, %s5200
          %p5202 = scmp.lt.s32.totalorder %s5201, 16
          %s5203 = scalar_select %p5202, %s5201, 16
          %s5204 = smul.u32 64, %s5203
          %p5205 = scmp.ne.s32.totalorder 0, %s5204
          %s5206 = smul.addr %s5200, 4
          %s5207 = scalar_lea.vmem %s17, %s5206
          // Predicated region
          $region93: #{autoencoder_forward.1} parent=91 // pred_check
            %p5208 = pneg %p5205
          $region94: #{autoencoder_forward.1} parent=91 // pred_check_branch
            %5210 = sbr.rel (%p5208) target = $region96
          $region95: #{autoencoder_forward.1} parent=91 // pred_region
            // Predicated region
            $region97: #{autoencoder_forward.1} parent=95 // pred_check
              _
            $region98: #{autoencoder_forward.1} parent=95 // pred_check_branch
              %5212 = sbr.rel target = $region100
            $region99: #{autoencoder_forward.1} parent=95 // pred_region
              // Predicated region
              $region119: #{autoencoder_forward.1} parent=99 // pred_check
                _
              $region120: #{autoencoder_forward.1} parent=99 // pred_check_branch
                %5291 = sbr.rel (0) target = $region122
              $region121: #{autoencoder_forward.1} parent=99 // pred_region
                %s5293 = sshrl.u32 %s5203, 4
                // While loop
                $region123: #{autoencoder_forward.1} parent=121 // loop_pre_header
                  _
                $region124: #{autoencoder_forward.1} parent=121 // loop_header
                  %s5295 = sphi 0, %s5297
                  %p5296 = scmp.ge.s32.totalorder %s5295, %s5293
                  %s5300 = sphi 0, %s5337
                  %s5301 = sphi %s5191, %s5340
                  %s5302 = sphi %s5207, %s5341
                $region125: #{autoencoder_forward.1} parent=121 // loop_header_branch
                  %5299 = sbr.rel (%p5296) target = $region129
                $region126: #{autoencoder_forward.1} parent=121 // loop_body
                  %v5303 = vld [vmem:[%s5301] sm:$0xf]
                  %5304 = vst [vmem:[%s5302] sm:$0xf] %v5303
                  %v5305 = vld [vmem:[%s5301 + $0x4] sm:$0xf]
                  %5306 = vst [vmem:[%s5302 + $0x4] sm:$0xf] %v5305
                  %v5307 = vld [vmem:[%s5301 + $0x8] sm:$0xf]
                  %5308 = vst [vmem:[%s5302 + $0x8] sm:$0xf] %v5307
                  %v5309 = vld [vmem:[%s5301 + $0xc] sm:$0xf]
                  %5310 = vst [vmem:[%s5302 + $0xc] sm:$0xf] %v5309
                  %v5311 = vld [vmem:[%s5301 + $0x10] sm:$0xf]
                  %5312 = vst [vmem:[%s5302 + $0x10] sm:$0xf] %v5311
                  %v5313 = vld [vmem:[%s5301 + $0x14] sm:$0xf]
                  %5314 = vst [vmem:[%s5302 + $0x14] sm:$0xf] %v5313
                  %v5315 = vld [vmem:[%s5301 + $0x18] sm:$0xf]
                  %5316 = vst [vmem:[%s5302 + $0x18] sm:$0xf] %v5315
                  %v5317 = vld [vmem:[%s5301 + $0x1c] sm:$0xf]
                  %5318 = vst [vmem:[%s5302 + $0x1c] sm:$0xf] %v5317
                  %v5319 = vld [vmem:[%s5301 + $0x20] sm:$0xf]
                  %5320 = vst [vmem:[%s5302 + $0x20] sm:$0xf] %v5319
                  %v5321 = vld [vmem:[%s5301 + $0x24] sm:$0xf]
                  %5322 = vst [vmem:[%s5302 + $0x24] sm:$0xf] %v5321
                  %v5323 = vld [vmem:[%s5301 + $0x28] sm:$0xf]
                  %5324 = vst [vmem:[%s5302 + $0x28] sm:$0xf] %v5323
                  %v5325 = vld [vmem:[%s5301 + $0x2c] sm:$0xf]
                  %5326 = vst [vmem:[%s5302 + $0x2c] sm:$0xf] %v5325
                  %v5327 = vld [vmem:[%s5301 + $0x30] sm:$0xf]
                  %5328 = vst [vmem:[%s5302 + $0x30] sm:$0xf] %v5327
                  %v5329 = vld [vmem:[%s5301 + $0x34] sm:$0xf]
                  %5330 = vst [vmem:[%s5302 + $0x34] sm:$0xf] %v5329
                  %v5331 = vld [vmem:[%s5301 + $0x38] sm:$0xf]
                  %5332 = vst [vmem:[%s5302 + $0x38] sm:$0xf] %v5331
                  %v5333 = vld [vmem:[%s5301 + $0x3c] sm:$0xf]
                  %5334 = vst [vmem:[%s5302 + $0x3c] sm:$0xf] %v5333
                  %s5335 = sadd.s32 1, %s5300
                  %p5336 = scmp.ge.s32.totalorder %s5335, %s5293
                  %s5337 = scalar_select %p5336, 0, %s5335
                  %s5338 = smul.u32 %s5337, 64
                  %s5339 = smul.u32 %s5337, 64
                  %s5340 = scalar_lea.vmem %s5191, %s5338 [#allocation2]
                  %s5341 = scalar_lea.vmem %s5207, %s5339
                $region127: #{autoencoder_forward.1} parent=121 // loop_footer
                  %s5297 = sadd.s32 %s5295, 1
                $region128: #{autoencoder_forward.1} parent=121 // loop_footer_branch
                  %5294 = sbr.rel target = $region124
                $region129: #{autoencoder_forward.1} parent=121 // loop_exit
                  _
                %s5342 = sshrl.u32 %s5203, 4
                %s5343 = sand.u32 %s5203, 15
                %s5344 = smul.u32 %s5342, 16
                %s5345 = smul.u32 4, %s5344
                %s5346 = scalar_lea.vmem %s5191, %s5345 [#allocation2]
                %s5347 = smul.u32 4, %s5344
                %s5348 = scalar_lea.vmem %s5207, %s5347
                // While loop
                $region130: #{autoencoder_forward.1} parent=121 // loop_pre_header
                  _
                $region131: #{autoencoder_forward.1} parent=121 // loop_header
                  %s5350 = sphi 0, %s5352
                  %p5351 = scmp.ge.s32.totalorder %s5350, %s5343
                  %s5355 = sphi 0, %s5362
                  %s5356 = sphi %s5346, %s5365
                  %s5357 = sphi %s5348, %s5366
                $region132: #{autoencoder_forward.1} parent=121 // loop_header_branch
                  %5354 = sbr.rel (%p5351) target = $region136
                $region133: #{autoencoder_forward.1} parent=121 // loop_body
                  %v5358 = vld [vmem:[%s5356] sm:$0xf]
                  %5359 = vst [vmem:[%s5357] sm:$0xf] %v5358
                  %s5360 = sadd.s32 1, %s5355
                  %p5361 = scmp.ge.s32.totalorder %s5360, %s5343
                  %s5362 = scalar_select %p5361, 0, %s5360
                  %s5363 = smul.u32 %s5362, 4
                  %s5364 = smul.u32 %s5362, 4
                  %s5365 = scalar_lea.vmem %s5346, %s5363 [#allocation2]
                  %s5366 = scalar_lea.vmem %s5348, %s5364
                $region134: #{autoencoder_forward.1} parent=121 // loop_footer
                  %s5352 = sadd.s32 %s5350, 1
                $region135: #{autoencoder_forward.1} parent=121 // loop_footer_branch
                  %5349 = sbr.rel target = $region131
                $region136: #{autoencoder_forward.1} parent=121 // loop_exit
                  _
              $region122: #{autoencoder_forward.1} parent=99 // pred_fallthru
                _
            $region100: #{autoencoder_forward.1} parent=95 // pred_fallthru
              _
            // Predicated region
            $region101: #{autoencoder_forward.1} parent=95 // pred_check
              _
            $region102: #{autoencoder_forward.1} parent=95 // pred_check_branch
              %5214 = sbr.rel (0) target = $region104
            $region103: #{autoencoder_forward.1} parent=95 // pred_region
              %s5216 = sshrl.u32 %s5203, 4
              // While loop
              $region105: #{autoencoder_forward.1} parent=103 // loop_pre_header
                _
              $region106: #{autoencoder_forward.1} parent=103 // loop_header
                %s5218 = sphi 0, %s5220
                %p5219 = scmp.ge.s32.totalorder %s5218, %s5216
                %s5223 = sphi 0, %s5260
                %s5224 = sphi %s5191, %s5263
                %s5225 = sphi %s5207, %s5264
              $region107: #{autoencoder_forward.1} parent=103 // loop_header_branch
                %5222 = sbr.rel (%p5219) target = $region111
              $region108: #{autoencoder_forward.1} parent=103 // loop_body
                %v5226 = vld [vmem:[%s5224] sm:$0xf]
                %5227 = vst [vmem:[%s5225] sm:$0xf] %v5226
                %v5228 = vld [vmem:[%s5224 + $0x4] sm:$0xf]
                %5229 = vst [vmem:[%s5225 + $0x4] sm:$0xf] %v5228
                %v5230 = vld [vmem:[%s5224 + $0x8] sm:$0xf]
                %5231 = vst [vmem:[%s5225 + $0x8] sm:$0xf] %v5230
                %v5232 = vld [vmem:[%s5224 + $0xc] sm:$0xf]
                %5233 = vst [vmem:[%s5225 + $0xc] sm:$0xf] %v5232
                %v5234 = vld [vmem:[%s5224 + $0x10] sm:$0xf]
                %5235 = vst [vmem:[%s5225 + $0x10] sm:$0xf] %v5234
                %v5236 = vld [vmem:[%s5224 + $0x14] sm:$0xf]
                %5237 = vst [vmem:[%s5225 + $0x14] sm:$0xf] %v5236
                %v5238 = vld [vmem:[%s5224 + $0x18] sm:$0xf]
                %5239 = vst [vmem:[%s5225 + $0x18] sm:$0xf] %v5238
                %v5240 = vld [vmem:[%s5224 + $0x1c] sm:$0xf]
                %5241 = vst [vmem:[%s5225 + $0x1c] sm:$0xf] %v5240
                %v5242 = vld [vmem:[%s5224 + $0x20] sm:$0xf]
                %5243 = vst [vmem:[%s5225 + $0x20] sm:$0xf] %v5242
                %v5244 = vld [vmem:[%s5224 + $0x24] sm:$0xf]
                %5245 = vst [vmem:[%s5225 + $0x24] sm:$0xf] %v5244
                %v5246 = vld [vmem:[%s5224 + $0x28] sm:$0xf]
                %5247 = vst [vmem:[%s5225 + $0x28] sm:$0xf] %v5246
                %v5248 = vld [vmem:[%s5224 + $0x2c] sm:$0xf]
                %5249 = vst [vmem:[%s5225 + $0x2c] sm:$0xf] %v5248
                %v5250 = vld [vmem:[%s5224 + $0x30] sm:$0xf]
                %5251 = vst [vmem:[%s5225 + $0x30] sm:$0xf] %v5250
                %v5252 = vld [vmem:[%s5224 + $0x34] sm:$0xf]
                %5253 = vst [vmem:[%s5225 + $0x34] sm:$0xf] %v5252
                %v5254 = vld [vmem:[%s5224 + $0x38] sm:$0xf]
                %5255 = vst [vmem:[%s5225 + $0x38] sm:$0xf] %v5254
                %v5256 = vld [vmem:[%s5224 + $0x3c] sm:$0xf]
                %5257 = vst [vmem:[%s5225 + $0x3c] sm:$0xf] %v5256
                %s5258 = sadd.s32 1, %s5223
                %p5259 = scmp.ge.s32.totalorder %s5258, %s5216
                %s5260 = scalar_select %p5259, 0, %s5258
                %s5261 = smul.u32 %s5260, 64
                %s5262 = smul.u32 %s5260, 64
                %s5263 = scalar_lea.vmem %s5191, %s5261 [#allocation2]
                %s5264 = scalar_lea.vmem %s5207, %s5262
              $region109: #{autoencoder_forward.1} parent=103 // loop_footer
                %s5220 = sadd.s32 %s5218, 1
              $region110: #{autoencoder_forward.1} parent=103 // loop_footer_branch
                %5217 = sbr.rel target = $region106
              $region111: #{autoencoder_forward.1} parent=103 // loop_exit
                _
              %s5265 = sshrl.u32 %s5203, 4
              %s5266 = sand.u32 %s5203, 15
              %s5267 = smul.u32 %s5265, 16
              %s5268 = smul.u32 4, %s5267
              %s5269 = scalar_lea.vmem %s5191, %s5268 [#allocation2]
              %s5270 = smul.u32 4, %s5267
              %s5271 = scalar_lea.vmem %s5207, %s5270
              // While loop
              $region112: #{autoencoder_forward.1} parent=103 // loop_pre_header
                _
              $region113: #{autoencoder_forward.1} parent=103 // loop_header
                %s5273 = sphi 0, %s5275
                %p5274 = scmp.ge.s32.totalorder %s5273, %s5266
                %s5278 = sphi 0, %s5285
                %s5279 = sphi %s5269, %s5288
                %s5280 = sphi %s5271, %s5289
              $region114: #{autoencoder_forward.1} parent=103 // loop_header_branch
                %5277 = sbr.rel (%p5274) target = $region118
              $region115: #{autoencoder_forward.1} parent=103 // loop_body
                %v5281 = vld [vmem:[%s5279] sm:$0xf]
                %5282 = vst [vmem:[%s5280] sm:$0xf] %v5281
                %s5283 = sadd.s32 1, %s5278
                %p5284 = scmp.ge.s32.totalorder %s5283, %s5266
                %s5285 = scalar_select %p5284, 0, %s5283
                %s5286 = smul.u32 %s5285, 4
                %s5287 = smul.u32 %s5285, 4
                %s5288 = scalar_lea.vmem %s5269, %s5286 [#allocation2]
                %s5289 = scalar_lea.vmem %s5271, %s5287
              $region116: #{autoencoder_forward.1} parent=103 // loop_footer
                %s5275 = sadd.s32 %s5273, 1
              $region117: #{autoencoder_forward.1} parent=103 // loop_footer_branch
                %5272 = sbr.rel target = $region113
              $region118: #{autoencoder_forward.1} parent=103 // loop_exit
                _
            $region104: #{autoencoder_forward.1} parent=95 // pred_fallthru
              _
          $region96: #{autoencoder_forward.1} parent=91 // pred_fallthru
            _
          %5367 = vnop
        $region92: #{autoencoder_forward.1} parent=87 // pred_fallthru
          _
        // Predicated region
        $region137: #{autoencoder_forward.1} parent=87 // pred_check
          %p5368 = pneg %p439
        $region138: #{autoencoder_forward.1} parent=87 // pred_check_branch
          %5370 = sbr.rel (%p5368) target = $region140
        $region139: #{autoencoder_forward.1} parent=87 // pred_region
          %s5371 = smul.u32 16, %s33
          %s5372 = ssub.s32 25, %s5371
          %p5373 = scmp.lt.s32.totalorder %s5372, 16
          %s5374 = scalar_select %p5373, %s5372, 16
          %s5375 = smul.u32 64, %s5374
          %s5376 = smul.u32 %s5375, 7
          %s5378 = ssub.s32 7168, %s5376
          %5379 = vsyncadd %s5193, %s5378
          %p5380 = scmp.ne.s32.totalorder 0, %s5376
          %s5381 = smul.addr %s5371, 7
          %s5382 = smul.addr %s5381, 64
          %s5383 = scalar_lea.hbm %s18, %s5382
          %s5384 = smul.u32 28, %s5374
          %s5385 = sshll.u32 %s5196, 4
          %s5386 = int_to_ptr.vmem [resolvable:$true] %s5385
          %s5387 = sshll.u32 %s5384, 4
          %5391 = dma.vmem_to_hbm [thread:$0]  (%p5380), %s5386, %s5387, %s5383, %s5193, 448, 448, 28
        $region140: #{autoencoder_forward.1} parent=87 // pred_fallthru
          _
      $region88: #{autoencoder_forward.1} parent=5 // pred_fallthru
        _
      %p5392 = scmp.le.s32.totalorder 2, %s28
      // Predicated region
      $region141: #{autoencoder_forward.1} parent=5 // pred_check
        %p5393 = pneg %p5392
      $region142: #{autoencoder_forward.1} parent=5 // pred_check_branch
        %5395 = sbr.rel (%p5393) target = $region144
      $region143: #{autoencoder_forward.1} parent=5 // pred_region
        %s5396 = ssub.s32 %s28, 2
        // Predicated region
        $region145: #{autoencoder_forward.1} parent=143 // pred_check
          %p5397 = pneg %p419
        $region146: #{autoencoder_forward.1} parent=143 // pred_check_branch
          %5399 = sbr.rel (%p5397) target = $region148
        $region147: #{autoencoder_forward.1} parent=143 // pred_region
          %s5400 = sand.u32 %s404, 1
          %s5401 = sand.u32 %s404, 1
          %s5402 = smul.addr %s5401, 64
          %s5403 = scalar_lea.vmem [#allocation2], %s5402
        $region148: #{autoencoder_forward.1} parent=143 // pred_fallthru
          _
        // Predicated region
        $region149: #{autoencoder_forward.1} parent=143 // pred_check
          %p5404 = pneg %p445
        $region150: #{autoencoder_forward.1} parent=143 // pred_check_branch
          %5406 = sbr.rel (%p5404) target = $region152
        $region151: #{autoencoder_forward.1} parent=143 // pred_region
          %s5407 = sand.u32 %s430, 1
          %s5408 = scalar_lea.sflag [#allocation4], %s5407
          %s5409 = sand.u32 %s430, 1
          %s5410 = smul.addr %s5409, 448
          %s5411 = scalar_lea.vmem [#allocation3], %s5410
          %5412 = dma.done %s5408, 7168
        $region152: #{autoencoder_forward.1} parent=143 // pred_fallthru
          _
      $region144: #{autoencoder_forward.1} parent=5 // pred_fallthru
        _
    $region6: #{autoencoder_forward.1} parent=1 // loop_footer
      %s32 = sadd.s32 1, %s28
    $region7: #{autoencoder_forward.1} parent=1 // loop_footer_branch
      %27 = sbr.rel target = $region3
    $region8: #{autoencoder_forward.1} parent=1 // loop_exit
      _
    %5413 = vsyncpa [#allocation4], 1
    %s5414 = scalar_lea.sflag [#allocation4], 1
    %5415 = vsyncpa %s5414, 1

</llo_original>
